<compile_context>
chip_gen: v5e
topology: v5e:2x2
jax: 0.10.0
libtpu: 0.0.40
codegen_flags: <defaults>
</compile_context>

<pallas_src>
import functools
import math

import jax
import jax.numpy as jnp
from jax.experimental import pallas as pl
from jax.experimental.pallas import tpu as pltpu


# ----------------------------------------------------------------------------
# In-kernel helpers (traced inside the Pallas kernel bodies)
# ----------------------------------------------------------------------------
def _res_layernorm(x, y, gamma, beta, eps=1e-5):
    """LayerNorm(x + y) over the last dim (residual add fused in), f32."""
    z = x + y
    mean = jnp.mean(z, axis=-1, keepdims=True)
    var = jnp.mean((z - mean) ** 2, axis=-1, keepdims=True)
    return (z - mean) * jax.lax.rsqrt(var + eps) * gamma + beta


def _mha(q, k, v, *, Bb, Sq, Sk, H, dh, mask=None):
    """Multi-head attention, batched over all batch elements per head.

    q: [Bb*Sq, H*dh] f32 (attention scale already folded into the query
    projection), k/v: [Bb*Sk, H*dh] f32, rows batch-major.  Loops only over
    the (small, fixed) head count; each head's score / softmax / PV step is
    one batched op over all Bb batch elements.  Returns [Bb*Sq, H*dh] f32.
    """
    q3 = q.reshape(Bb, Sq, H * dh).astype(jnp.bfloat16)
    k3 = k.reshape(Bb, Sk, H * dh).astype(jnp.bfloat16)
    v3 = v.reshape(Bb, Sk, H * dh).astype(jnp.bfloat16)
    outs = []
    for h in range(H):
        sl = slice(h * dh, (h + 1) * dh)
        s = jnp.einsum('bqd,bkd->bqk', q3[:, :, sl], k3[:, :, sl],
                       preferred_element_type=jnp.float32)      # [Bb, Sq, Sk]
        if mask is not None:
            s = s + mask
        s = s - jnp.max(s, axis=-1, keepdims=True)
        e = jnp.exp(s)
        p = e * pl.reciprocal(jnp.sum(e, axis=-1, keepdims=True), approx=True)
        o = jnp.einsum('bqk,bkd->bqd', p.astype(jnp.bfloat16), v3[:, :, sl],
                       preferred_element_type=jnp.float32)      # [Bb, Sq, dh]
        outs.append(o)
    out = jnp.concatenate(outs, axis=-1)                        # [Bb, Sq, D]
    return out.reshape(Bb * Sq, H * dh)


# ----------------------------------------------------------------------------
# Fused encoder stack: grid=(batch_blocks, num_layers)
# ----------------------------------------------------------------------------
def _encoder_stack_kernel(src_ref, pos_ref,
                          wqk_ref, bqk_ref, wv_ref, bv_ref, wo_ref, bo_ref,
                          w1_ref, b1_ref, w2_ref, b2_ref,
                          ln1g_ref, ln1b_ref, ln2g_ref, ln2b_ref,
                          out_ref, x_sc, *, Bb, S, H, dh):
    l = pl.program_id(1)
    D = H * dh
    Nb = Bb * S

    @pl.when(l == 0)
    def _():
        x_sc[...] = src_ref[...]

    x = x_sc[...]                                         # [Nb, D] f32
    # positional encoding is unreplicated [S, D]; broadcast over batch here
    q_in = ((x.reshape(Bb, S, D) + pos_ref[...])
            .reshape(Nb, D).astype(jnp.bfloat16))
    xb = x.astype(jnp.bfloat16)

    # fused Q/K projection (scale folded into q-half of wqk/bqk) + V projection
    qk = jnp.dot(q_in, wqk_ref[0], preferred_element_type=jnp.float32) + bqk_ref[0]
    v = jnp.dot(xb, wv_ref[0], preferred_element_type=jnp.float32) + bv_ref[0]

    attn = _mha(qk[:, :D], qk[:, D:], v, Bb=Bb, Sq=S, Sk=S, H=H, dh=dh)
    attn = jnp.dot(attn.astype(jnp.bfloat16), wo_ref[0],
                   preferred_element_type=jnp.float32) + bo_ref[0]
    x = _res_layernorm(x, attn, ln1g_ref[0], ln1b_ref[0])

    # feed-forward
    h1 = jnp.maximum(jnp.dot(x.astype(jnp.bfloat16), w1_ref[0],
                             preferred_element_type=jnp.float32) + b1_ref[0], 0.0)
    h2 = jnp.dot(h1.astype(jnp.bfloat16), w2_ref[0],
                 preferred_element_type=jnp.float32) + b2_ref[0]
    x = _res_layernorm(x, h2, ln2g_ref[0], ln2b_ref[0])

    x_sc[...] = x
    out_ref[...] = x        # cheap VMEM write; HBM writeback only on bb change


def encoder_stack(ep, src2d, pos2d, B, S, num_heads, num_batch_blocks=1):
    N, D = src2d.shape
    L = ep["wqk"].shape[0]
    F = ep["w1"].shape[2]
    dh = D // num_heads
    assert B % num_batch_blocks == 0
    Bb = B // num_batch_blocks
    Nb = Bb * S
    assert num_batch_blocks == 1 or Nb % 8 == 0

    act = pl.BlockSpec((Nb, D), lambda bb, l: (bb, 0))
    shared = pl.BlockSpec((S, D), lambda bb, l: (0, 0))

    def per_layer(r, c):
        return pl.BlockSpec((1, r, c), lambda bb, l: (l, 0, 0))

    kernel = functools.partial(_encoder_stack_kernel, Bb=Bb, S=S,
                               H=num_heads, dh=dh)
    return pl.pallas_call(
        kernel,
        grid=(num_batch_blocks, L),
        out_shape=jax.ShapeDtypeStruct((N, D), jnp.float32),
        in_specs=[
            act, shared,
            per_layer(D, 2 * D), per_layer(1, 2 * D),
            per_layer(D, D), per_layer(1, D),
            per_layer(D, D), per_layer(1, D),
            per_layer(D, F), per_layer(1, F),
            per_layer(F, D), per_layer(1, D),
            per_layer(1, D), per_layer(1, D),
            per_layer(1, D), per_layer(1, D),
        ],
        out_specs=pl.BlockSpec((Nb, D), lambda bb, l: (bb, 0)),
        scratch_shapes=[pltpu.VMEM((Nb, D), jnp.float32)],
        compiler_params=pltpu.CompilerParams(
            dimension_semantics=("parallel", "arbitrary"),
            vmem_limit_bytes=64 * 1024 * 1024),
    )(src2d, pos2d,
      ep["wqk"], ep["bqk"], ep["wv"], ep["bv"], ep["wo"], ep["bo"],
      ep["w1"], ep["b1"], ep["w2"], ep["b2"],
      ep["ln1g"], ep["ln1b"], ep["ln2g"], ep["ln2b"])


# ----------------------------------------------------------------------------
# Fused decoder stack: grid=(batch_blocks, num_layers), per-layer outputs
# ----------------------------------------------------------------------------
def _decoder_stack_kernel(tgt_ref, dpos_ref, mem_ref, epos_ref, mask_ref,
                          swqk_ref, sbqk_ref, swv_ref, sbv_ref, swo_ref, sbo_ref,
                          cwq_ref, cbq_ref, cwk_ref, cbk_ref,
                          cwv_ref, cbv_ref, cwo_ref, cbo_ref,
                          w1_ref, b1_ref, w2_ref, b2_ref,
                          ln1g_ref, ln1b_ref, ln2g_ref, ln2b_ref,
                          ln3g_ref, ln3b_ref,
                          out_ref, x_sc, memk_sc, memv_sc, *, Bb, T, S, H, dh):
    l = pl.program_id(1)
    D = H * dh
    Nt = Bb * T
    Ns = Bb * S

    @pl.when(l == 0)
    def _():
        x_sc[...] = tgt_ref[...]
        mem = mem_ref[...]                                  # [Ns, D] f32
        memv_sc[...] = mem.astype(jnp.bfloat16)
        # cross-attention keys get the encoder positional encoding
        memk_sc[...] = ((mem.reshape(Bb, S, D) + epos_ref[...])
                        .reshape(Ns, D).astype(jnp.bfloat16))

    x = x_sc[...]                                           # [Nt, D] f32
    dpos = dpos_ref[...]                                    # [T, D] f32

    # --- masked self-attention (look-ahead additive bias) ---
    q_in = ((x.reshape(Bb, T, D) + dpos)
            .reshape(Nt, D).astype(jnp.bfloat16))
    xb = x.astype(jnp.bfloat16)
    qk = jnp.dot(q_in, swqk_ref[0], preferred_element_type=jnp.float32) + sbqk_ref[0]
    v = jnp.dot(xb, swv_ref[0], preferred_element_type=jnp.float32) + sbv_ref[0]
    sa = _mha(qk[:, :D], qk[:, D:], v, Bb=Bb, Sq=T, Sk=T, H=H, dh=dh,
              mask=mask_ref[...])
    sa = jnp.dot(sa.astype(jnp.bfloat16), swo_ref[0],
                 preferred_element_type=jnp.float32) + sbo_ref[0]
    x = _res_layernorm(x, sa, ln1g_ref[0], ln1b_ref[0])

    # --- cross-attention to encoder memory (key gets pos, value does not) ---
    cq_in = ((x.reshape(Bb, T, D) + dpos)
             .reshape(Nt, D).astype(jnp.bfloat16))
    q = jnp.dot(cq_in, cwq_ref[0], preferred_element_type=jnp.float32) + cbq_ref[0]
    k = jnp.dot(memk_sc[...], cwk_ref[0], preferred_element_type=jnp.float32) + cbk_ref[0]
    v = jnp.dot(memv_sc[...], cwv_ref[0], preferred_element_type=jnp.float32) + cbv_ref[0]
    ca = _mha(q, k, v, Bb=Bb, Sq=T, Sk=S, H=H, dh=dh)
    ca = jnp.dot(ca.astype(jnp.bfloat16), cwo_ref[0],
                 preferred_element_type=jnp.float32) + cbo_ref[0]
    x = _res_layernorm(x, ca, ln2g_ref[0], ln2b_ref[0])

    # --- feed-forward ---
    h1 = jnp.maximum(jnp.dot(x.astype(jnp.bfloat16), w1_ref[0],
                             preferred_element_type=jnp.float32) + b1_ref[0], 0.0)
    h2 = jnp.dot(h1.astype(jnp.bfloat16), w2_ref[0],
                 preferred_element_type=jnp.float32) + b2_ref[0]
    x = _res_layernorm(x, h2, ln3g_ref[0], ln3b_ref[0])

    x_sc[...] = x
    out_ref[0] = x          # POTR decoder returns every layer's output


def decoder_stack(dp, tgt2d, dpos2d, mem2d, epos2d, la_bias,
                  B, T, S, num_heads, num_batch_blocks=1):
    Nt, D = tgt2d.shape
    L = dp["swqk"].shape[0]
    F = dp["w1"].shape[2]
    dh = D // num_heads
    assert B % num_batch_blocks == 0
    Bb = B // num_batch_blocks
    Ntb = Bb * T
    Nsb = Bb * S
    assert num_batch_blocks == 1 or (Ntb % 8 == 0 and Nsb % 8 == 0)

    def full(r, c):
        return pl.BlockSpec((r, c), lambda bb, l: (0, 0))

    def per_layer(r, c):
        return pl.BlockSpec((1, r, c), lambda bb, l: (l, 0, 0))

    kernel = functools.partial(_decoder_stack_kernel, Bb=Bb, T=T, S=S,
                               H=num_heads, dh=dh)
    return pl.pallas_call(
        kernel,
        grid=(num_batch_blocks, L),
        out_shape=jax.ShapeDtypeStruct((L, Nt, D), jnp.float32),
        in_specs=[
            pl.BlockSpec((Ntb, D), lambda bb, l: (bb, 0)),   # tgt
            full(T, D),                                      # decoder pos [T, D]
            pl.BlockSpec((Nsb, D), lambda bb, l: (bb, 0)),   # memory
            full(S, D),                                      # encoder pos [S, D]
            full(T, T),                                      # look-ahead bias
            per_layer(D, 2 * D), per_layer(1, 2 * D),
            per_layer(D, D), per_layer(1, D),
            per_layer(D, D), per_layer(1, D),
            per_layer(D, D), per_layer(1, D),
            per_layer(D, D), per_layer(1, D),
            per_layer(D, D), per_layer(1, D),
            per_layer(D, D), per_layer(1, D),
            per_layer(D, F), per_layer(1, F),
            per_layer(F, D), per_layer(1, D),
            per_layer(1, D), per_layer(1, D),
            per_layer(1, D), per_layer(1, D),
            per_layer(1, D), per_layer(1, D),
        ],
        out_specs=pl.BlockSpec((1, Ntb, D), lambda bb, l: (l, bb, 0)),
        scratch_shapes=[pltpu.VMEM((Ntb, D), jnp.float32),
                        pltpu.VMEM((Nsb, D), jnp.bfloat16),
                        pltpu.VMEM((Nsb, D), jnp.bfloat16)],
        compiler_params=pltpu.CompilerParams(
            dimension_semantics=("parallel", "arbitrary"),
            vmem_limit_bytes=64 * 1024 * 1024),
    )(tgt2d, dpos2d, mem2d, epos2d, la_bias,
      dp["swqk"], dp["sbqk"], dp["swv"], dp["sbv"], dp["swo"], dp["sbo"],
      dp["cwq"], dp["cbq"], dp["cwk"], dp["cbk"],
      dp["cwv"], dp["cbv"], dp["cwo"], dp["cbo"],
      dp["w1"], dp["b1"], dp["w2"], dp["b2"],
      dp["ln1g"], dp["ln1b"], dp["ln2g"], dp["ln2b"],
      dp["ln3g"], dp["ln3b"])


# ----------------------------------------------------------------------------
# Transformer forward (layout plumbing in plain JAX, math in 2 Pallas calls)
# ----------------------------------------------------------------------------
def transformer_forward(params, source_seq, target_seq,
                        encoder_position_encodings, decoder_position_encodings,
                        mask_look_ahead, num_heads, get_attn_weights=False,
                        num_batch_blocks=1):
    # num_batch_blocks=1: weights streamed once per layer (v5e/v6e, single TC).
    # num_batch_blocks=2 on v7x spreads batch blocks over both TensorCores.
    S, B, D = source_seq.shape
    T = target_seq.shape[0]

    # seq-first [S, B, D] -> batch-major 2-D [B*S, D]
    src2d = source_seq.transpose(1, 0, 2).reshape(B * S, D)
    tgt2d = target_seq.transpose(1, 0, 2).reshape(B * T, D)
    # positional encodings stay unreplicated (broadcast in-kernel)
    epos2d = encoder_position_encodings.reshape(S, D)
    dpos2d = decoder_position_encodings.reshape(T, D)
    la_bias = jnp.where(mask_look_ahead, -1e9, 0.0).astype(
        jnp.float32).reshape(T, T)

    # ---- encoder (one fused pallas_call over all layers) ----
    memory2d = encoder_stack(params["encoder"], src2d, epos2d,
                             B, S, num_heads, num_batch_blocks)

    # ---- decoder (one fused pallas_call over all layers) ----
    out2d = decoder_stack(params["decoder"], tgt2d, dpos2d, memory2d, epos2d,
                          la_bias, B, T, S, num_heads, num_batch_blocks)

    memory = memory2d.reshape(B, S, D).transpose(1, 0, 2)
    L_dec = out2d.shape[0]
    out_attn = out2d.reshape(L_dec, B, T, D).transpose(0, 2, 1, 3)

    # TODO(synk): attention weights are not materialized by the fused kernels.
    out_weights_ = None
    enc_weights_ = None
    prob_matrix_ = None   # query_selection disabled
    tgt_plain = None
    return out_attn, memory, out_weights_, enc_weights_, (tgt_plain, prob_matrix_)


# ----------------------------------------------------------------------------
# Deterministic parameter initialization (weights stacked over layers, bf16)
# ----------------------------------------------------------------------------
def init_params(key, num_enc, num_dec, D, F, num_heads):
    dh = D // num_heads
    qscale = 1.0 / math.sqrt(dh)   # folded into the query projection params

    def wf32(k, shape):
        return (jax.random.normal(k, shape) * 0.02).astype(jnp.float32)

    ke = jax.random.split(jax.random.fold_in(key, 0), 5)
    wqk = wf32(ke[0], (num_enc, D, 2 * D))
    wqk = wqk.at[:, :, :D].multiply(qscale)            # scale q-half
    enc = {
        "wqk": wqk.astype(jnp.bfloat16),
        # NOTE: a PyTorch weight converter must also scale the q-half bias.
        "bqk": jnp.zeros((num_enc, 1, 2 * D), jnp.float32),
        "wv": wf32(ke[1], (num_enc, D, D)).astype(jnp.bfloat16),
        "bv": jnp.zeros((num_enc, 1, D), jnp.float32),
        "wo": wf32(ke[2], (num_enc, D, D)).astype(jnp.bfloat16),
        "bo": jnp.zeros((num_enc, 1, D), jnp.float32),
        "w1": wf32(ke[3], (num_enc, D, F)).astype(jnp.bfloat16),
        "b1": jnp.zeros((num_enc, 1, F), jnp.float32),
        "w2": wf32(ke[4], (num_enc, F, D)).astype(jnp.bfloat16),
        "b2": jnp.zeros((num_enc, 1, D), jnp.float32),
        "ln1g": jnp.ones((num_enc, 1, D), jnp.float32),
        "ln1b": jnp.zeros((num_enc, 1, D), jnp.float32),
        "ln2g": jnp.ones((num_enc, 1, D), jnp.float32),
        "ln2b": jnp.zeros((num_enc, 1, D), jnp.float32),
    }

    kd = jax.random.split(jax.random.fold_in(key, 1), 9)
    swqk = wf32(kd[0], (num_dec, D, 2 * D))
    swqk = swqk.at[:, :, :D].multiply(qscale)
    cwq = wf32(kd[3], (num_dec, D, D)) * qscale
    dec = {
        "swqk": swqk.astype(jnp.bfloat16),
        "sbqk": jnp.zeros((num_dec, 1, 2 * D), jnp.float32),
        "swv": wf32(kd[1], (num_dec, D, D)).astype(jnp.bfloat16),
        "sbv": jnp.zeros((num_dec, 1, D), jnp.float32),
        "swo": wf32(kd[2], (num_dec, D, D)).astype(jnp.bfloat16),
        "sbo": jnp.zeros((num_dec, 1, D), jnp.float32),
        "cwq": cwq.astype(jnp.bfloat16),
        "cbq": jnp.zeros((num_dec, 1, D), jnp.float32),
        "cwk": wf32(kd[4], (num_dec, D, D)).astype(jnp.bfloat16),
        "cbk": jnp.zeros((num_dec, 1, D), jnp.float32),
        "cwv": wf32(kd[5], (num_dec, D, D)).astype(jnp.bfloat16),
        "cbv": jnp.zeros((num_dec, 1, D), jnp.float32),
        "cwo": wf32(kd[6], (num_dec, D, D)).astype(jnp.bfloat16),
        "cbo": jnp.zeros((num_dec, 1, D), jnp.float32),
        "w1": wf32(kd[7], (num_dec, D, F)).astype(jnp.bfloat16),
        "b1": jnp.zeros((num_dec, 1, F), jnp.float32),
        "w2": wf32(kd[8], (num_dec, F, D)).astype(jnp.bfloat16),
        "b2": jnp.zeros((num_dec, 1, D), jnp.float32),
        "ln1g": jnp.ones((num_dec, 1, D), jnp.float32),
        "ln1b": jnp.zeros((num_dec, 1, D), jnp.float32),
        "ln2g": jnp.ones((num_dec, 1, D), jnp.float32),
        "ln2b": jnp.zeros((num_dec, 1, D), jnp.float32),
        "ln3g": jnp.ones((num_dec, 1, D), jnp.float32),
        "ln3b": jnp.zeros((num_dec, 1, D), jnp.float32),
    }
    return {"encoder": enc, "decoder": dec}


# ----------------------------------------------------------------------------
if __name__ == "__main__":
    # small config: 2 enc layers, 2 dec layers, model_dim=32, heads=4, ffn=64
    NUM_ENC, NUM_DEC = 2, 2
    MODEL_DIM, NUM_HEADS, DIM_FFN = 32, 4, 64
    SRC_LEN, TGT_LEN, BATCH = 8, 8, 2

    key = jax.random.PRNGKey(0)
    kp, k1, k2, k3, k4 = jax.random.split(key, 5)

    params = init_params(kp, NUM_ENC, NUM_DEC, MODEL_DIM, DIM_FFN, NUM_HEADS)

    source_seq = jax.random.normal(k1, (SRC_LEN, BATCH, MODEL_DIM), jnp.float32)
    target_seq = jax.random.normal(k2, (TGT_LEN, BATCH, MODEL_DIM), jnp.float32)
    enc_pos = jax.random.normal(k3, (SRC_LEN, 1, MODEL_DIM), jnp.float32) * 0.1
    dec_pos = jax.random.normal(k4, (TGT_LEN, 1, MODEL_DIM), jnp.float32) * 0.1
    # look-ahead mask: True => masked (standard causal mask)
    mask_look_ahead = jnp.triu(jnp.ones((TGT_LEN, TGT_LEN), jnp.bool_), k=1)

    fwd = jax.jit(functools.partial(transformer_forward,
                                    num_heads=NUM_HEADS,
                                    get_attn_weights=False,
                                    num_batch_blocks=1))
    out_attn, memory, out_w, enc_w, (tgt_plain, prob_m) = fwd(
        params, source_seq, target_seq, enc_pos, dec_pos, mask_look_ahead)

    jax.block_until_ready(out_attn)
    jax.block_until_ready(memory)

    assert out_attn.shape == (NUM_DEC, TGT_LEN, BATCH, MODEL_DIM)
    assert memory.shape == (SRC_LEN, BATCH, MODEL_DIM)
    assert bool(jnp.all(jnp.isfinite(out_attn)))
    assert bool(jnp.all(jnp.isfinite(memory)))

    print("KERNEL_OK")
</pallas_src>

<mosaic_0001>
module attributes {stable_mosaic.version = 11 : i64} {
  func.func @_decoder_stack_kernel(%arg0: i32, %arg1: i32, %arg2: memref<16x32xf32, #tpu.memory_space<vmem>>, %arg3: memref<8x32xf32, #tpu.memory_space<vmem>>, %arg4: memref<16x32xf32, #tpu.memory_space<vmem>>, %arg5: memref<8x32xf32, #tpu.memory_space<vmem>>, %arg6: memref<8x8xf32, #tpu.memory_space<vmem>>, %arg7: memref<1x32x64xbf16, #tpu.memory_space<vmem>>, %arg8: memref<1x1x64xf32, #tpu.memory_space<vmem>>, %arg9: memref<1x32x32xbf16, #tpu.memory_space<vmem>>, %arg10: memref<1x1x32xf32, #tpu.memory_space<vmem>>, %arg11: memref<1x32x32xbf16, #tpu.memory_space<vmem>>, %arg12: memref<1x1x32xf32, #tpu.memory_space<vmem>>, %arg13: memref<1x32x32xbf16, #tpu.memory_space<vmem>>, %arg14: memref<1x1x32xf32, #tpu.memory_space<vmem>>, %arg15: memref<1x32x32xbf16, #tpu.memory_space<vmem>>, %arg16: memref<1x1x32xf32, #tpu.memory_space<vmem>>, %arg17: memref<1x32x32xbf16, #tpu.memory_space<vmem>>, %arg18: memref<1x1x32xf32, #tpu.memory_space<vmem>>, %arg19: memref<1x32x32xbf16, #tpu.memory_space<vmem>>, %arg20: memref<1x1x32xf32, #tpu.memory_space<vmem>>, %arg21: memref<1x32x64xbf16, #tpu.memory_space<vmem>>, %arg22: memref<1x1x64xf32, #tpu.memory_space<vmem>>, %arg23: memref<1x64x32xbf16, #tpu.memory_space<vmem>>, %arg24: memref<1x1x32xf32, #tpu.memory_space<vmem>>, %arg25: memref<1x1x32xf32, #tpu.memory_space<vmem>>, %arg26: memref<1x1x32xf32, #tpu.memory_space<vmem>>, %arg27: memref<1x1x32xf32, #tpu.memory_space<vmem>>, %arg28: memref<1x1x32xf32, #tpu.memory_space<vmem>>, %arg29: memref<1x1x32xf32, #tpu.memory_space<vmem>>, %arg30: memref<1x1x32xf32, #tpu.memory_space<vmem>>, %arg31: memref<1x16x32xf32, #tpu.memory_space<vmem>>, %arg32: memref<16x32xf32, #tpu.memory_space<vmem>>, %arg33: memref<16x32xbf16, #tpu.memory_space<vmem>>, %arg34: memref<16x32xbf16, #tpu.memory_space<vmem>>) attributes {dimension_semantics = [#tpu.dimension_semantics<parallel>, #tpu.dimension_semantics<arbitrary>], iteration_bounds = array<i64: 1, 2>, scalar_prefetch = 0 : i64, scratch_operands = 3 : i64, tpu.core_type = #tpu.core_type<tc>, window_params = [{transform_indices = @transform_0, window_bounds = array<i64: 16, 32>}, {pipeline_mode = #tpu.pipeline_mode<synchronous>, transform_indices = @transform_1, window_bounds = array<i64: 8, 32>}, {transform_indices = @transform_2, window_bounds = array<i64: 16, 32>}, {pipeline_mode = #tpu.pipeline_mode<synchronous>, transform_indices = @transform_3, window_bounds = array<i64: 8, 32>}, {pipeline_mode = #tpu.pipeline_mode<synchronous>, transform_indices = @transform_4, window_bounds = array<i64: 8, 8>}, {transform_indices = @transform_5, window_bounds = array<i64: 1, 32, 64>}, {transform_indices = @transform_6, window_bounds = array<i64: 1, 1, 64>}, {transform_indices = @transform_7, window_bounds = array<i64: 1, 32, 32>}, {transform_indices = @transform_8, window_bounds = array<i64: 1, 1, 32>}, {transform_indices = @transform_9, window_bounds = array<i64: 1, 32, 32>}, {transform_indices = @transform_10, window_bounds = array<i64: 1, 1, 32>}, {transform_indices = @transform_11, window_bounds = array<i64: 1, 32, 32>}, {transform_indices = @transform_12, window_bounds = array<i64: 1, 1, 32>}, {transform_indices = @transform_13, window_bounds = array<i64: 1, 32, 32>}, {transform_indices = @transform_14, window_bounds = array<i64: 1, 1, 32>}, {transform_indices = @transform_15, window_bounds = array<i64: 1, 32, 32>}, {transform_indices = @transform_16, window_bounds = array<i64: 1, 1, 32>}, {transform_indices = @transform_17, window_bounds = array<i64: 1, 32, 32>}, {transform_indices = @transform_18, window_bounds = array<i64: 1, 1, 32>}, {transform_indices = @transform_19, window_bounds = array<i64: 1, 32, 64>}, {transform_indices = @transform_20, window_bounds = array<i64: 1, 1, 64>}, {transform_indices = @transform_21, window_bounds = array<i64: 1, 64, 32>}, {transform_indices = @transform_22, window_bounds = array<i64: 1, 1, 32>}, {transform_indices = @transform_23, window_bounds = array<i64: 1, 1, 32>}, {transform_indices = @transform_24, window_bounds = array<i64: 1, 1, 32>}, {transform_indices = @transform_25, window_bounds = array<i64: 1, 1, 32>}, {transform_indices = @transform_26, window_bounds = array<i64: 1, 1, 32>}, {transform_indices = @transform_27, window_bounds = array<i64: 1, 1, 32>}, {transform_indices = @transform_28, window_bounds = array<i64: 1, 1, 32>}, {transform_indices = @transform_29, window_bounds = array<i64: 1, 16, 32>}]} {
    %c0_i32 = arith.constant 0 : i32
    %0 = arith.cmpi eq, %arg1, %c0_i32 : i32
    %1 = arith.extui %0 : i1 to i32
    %c0_i32_0 = arith.constant 0 : i32
    %2 = arith.cmpi ne, %1, %c0_i32_0 : i32
    scf.if %2 {
      %c0_143 = arith.constant 0 : index
      %c0_144 = arith.constant 0 : index
      %333 = vector.load %arg2[%c0_143, %c0_144] : memref<16x32xf32, #tpu.memory_space<vmem>>, vector<16x32xf32>
      %c0_145 = arith.constant 0 : index
      %c0_146 = arith.constant 0 : index
      %334 = vector.load %arg32[%c0_145, %c0_146] : memref<16x32xf32, #tpu.memory_space<vmem>>, vector<16x32xf32>
      tpu.vector_store %arg32[%c0_145, %c0_146], %333 {strides = array<i32>} : memref<16x32xf32, #tpu.memory_space<vmem>>, vector<16x32xf32>,
      %c0_147 = arith.constant 0 : index
      %c0_148 = arith.constant 0 : index
      %335 = vector.load %arg4[%c0_147, %c0_148] : memref<16x32xf32, #tpu.memory_space<vmem>>, vector<16x32xf32>
      %336 = arith.truncf %335 : vector<16x32xf32> to vector<16x32xbf16>
      %c0_149 = arith.constant 0 : index
      %c0_150 = arith.constant 0 : index
      %337 = vector.load %arg34[%c0_149, %c0_150] : memref<16x32xbf16, #tpu.memory_space<vmem>>, vector<16x32xbf16>
      tpu.vector_store %arg34[%c0_149, %c0_150], %336 {strides = array<i32>} : memref<16x32xbf16, #tpu.memory_space<vmem>>, vector<16x32xbf16>,
      %338 = vector.shape_cast %335 : vector<16x32xf32> to vector<2x8x32xf32>
      %c0_151 = arith.constant 0 : index
      %c0_152 = arith.constant 0 : index
      %339 = vector.load %arg5[%c0_151, %c0_152] : memref<8x32xf32, #tpu.memory_space<vmem>>, vector<8x32xf32>
      %340 = vector.shape_cast %339 : vector<8x32xf32> to vector<1x8x32xf32>
      %341 = vector.broadcast %340 : vector<1x8x32xf32> to vector<2x8x32xf32>
      %342 = arith.addf %338, %341 : vector<2x8x32xf32>
      %343 = vector.shape_cast %342 : vector<2x8x32xf32> to vector<16x32xf32>
      %344 = arith.truncf %343 : vector<16x32xf32> to vector<16x32xbf16>
      %c0_153 = arith.constant 0 : index
      %c0_154 = arith.constant 0 : index
      %345 = vector.load %arg33[%c0_153, %c0_154] : memref<16x32xbf16, #tpu.memory_space<vmem>>, vector<16x32xbf16>
      tpu.vector_store %arg33[%c0_153, %c0_154], %344 {strides = array<i32>} : memref<16x32xbf16, #tpu.memory_space<vmem>>, vector<16x32xbf16>,
    } else {
    }
    %c0 = arith.constant 0 : index
    %c0_1 = arith.constant 0 : index
    %3 = vector.load %arg32[%c0, %c0_1] : memref<16x32xf32, #tpu.memory_space<vmem>>, vector<16x32xf32>
    %c0_2 = arith.constant 0 : index
    %c0_3 = arith.constant 0 : index
    %4 = vector.load %arg3[%c0_2, %c0_3] : memref<8x32xf32, #tpu.memory_space<vmem>>, vector<8x32xf32>
    %5 = vector.shape_cast %3 : vector<16x32xf32> to vector<2x8x32xf32>
    %6 = vector.shape_cast %4 : vector<8x32xf32> to vector<1x8x32xf32>
    %7 = vector.broadcast %6 : vector<1x8x32xf32> to vector<2x8x32xf32>
    %8 = arith.addf %5, %7 : vector<2x8x32xf32>
    %9 = vector.shape_cast %8 : vector<2x8x32xf32> to vector<16x32xf32>
    %10 = arith.truncf %9 : vector<16x32xf32> to vector<16x32xbf16>
    %11 = arith.truncf %3 : vector<16x32xf32> to vector<16x32xbf16>
    %c0_4 = arith.constant 0 : index
    %c0_5 = arith.constant 0 : index
    %c0_6 = arith.constant 0 : index
    %12 = vector.load %arg7[%c0_4, %c0_5, %c0_6] : memref<1x32x64xbf16, #tpu.memory_space<vmem>>, vector<1x32x64xbf16>
    %13 = vector.shape_cast %12 : vector<1x32x64xbf16> to vector<32x64xbf16>
    %cst = arith.constant dense<0.000000e+00> : vector<16x64xf32>
    %14 = tpu.matmul %10, %13, %cst {dimension_numbers = #tpu.dot_dimension_numbers<[1], [0], [0], [1], [0, 0, 1, 1], [], []>} : vector<16x32xbf16>, vector<32x64xbf16>, vector<16x64xf32> -> vector<16x64xf32>
    %c0_7 = arith.constant 0 : index
    %c0_8 = arith.constant 0 : index
    %c0_9 = arith.constant 0 : index
    %15 = vector.load %arg8[%c0_7, %c0_8, %c0_9] : memref<1x1x64xf32, #tpu.memory_space<vmem>>, vector<1x1x64xf32>
    %16 = vector.shape_cast %15 : vector<1x1x64xf32> to vector<1x64xf32>
    %17 = vector.broadcast %16 : vector<1x64xf32> to vector<16x64xf32>
    %18 = arith.addf %14, %17 : vector<16x64xf32>
    %c0_10 = arith.constant 0 : index
    %c0_11 = arith.constant 0 : index
    %c0_12 = arith.constant 0 : index
    %19 = vector.load %arg9[%c0_10, %c0_11, %c0_12] : memref<1x32x32xbf16, #tpu.memory_space<vmem>>, vector<1x32x32xbf16>
    %20 = vector.shape_cast %19 : vector<1x32x32xbf16> to vector<32x32xbf16>
    %cst_13 = arith.constant dense<0.000000e+00> : vector<16x32xf32>
    %21 = tpu.matmul %11, %20, %cst_13 {dimension_numbers = #tpu.dot_dimension_numbers<[1], [0], [0], [1], [0, 0, 1, 1], [], []>} : vector<16x32xbf16>, vector<32x32xbf16>, vector<16x32xf32> -> vector<16x32xf32>
    %c0_14 = arith.constant 0 : index
    %c0_15 = arith.constant 0 : index
    %c0_16 = arith.constant 0 : index
    %22 = vector.load %arg10[%c0_14, %c0_15, %c0_16] : memref<1x1x32xf32, #tpu.memory_space<vmem>>, vector<1x1x32xf32>
    %23 = vector.shape_cast %22 : vector<1x1x32xf32> to vector<1x32xf32>
    %24 = vector.broadcast %23 : vector<1x32xf32> to vector<16x32xf32>
    %25 = arith.addf %21, %24 : vector<16x32xf32>
    %26 = vector.extract_strided_slice %18 {offsets = [0, 0], sizes = [16, 32], strides = [1, 1]} : vector<16x64xf32> to vector<16x32xf32>
    %27 = vector.extract_strided_slice %18 {offsets = [0, 32], sizes = [16, 32], strides = [1, 1]} : vector<16x64xf32> to vector<16x32xf32>
    %c0_17 = arith.constant 0 : index
    %c0_18 = arith.constant 0 : index
    %28 = vector.load %arg6[%c0_17, %c0_18] : memref<8x8xf32, #tpu.memory_space<vmem>>, vector<8x8xf32>
    %29 = vector.shape_cast %26 : vector<16x32xf32> to vector<2x8x32xf32>
    %30 = arith.truncf %29 : vector<2x8x32xf32> to vector<2x8x32xbf16>
    %31 = vector.shape_cast %27 : vector<16x32xf32> to vector<2x8x32xf32>
    %32 = arith.truncf %31 : vector<2x8x32xf32> to vector<2x8x32xbf16>
    %33 = vector.shape_cast %25 : vector<16x32xf32> to vector<2x8x32xf32>
    %34 = arith.truncf %33 : vector<2x8x32xf32> to vector<2x8x32xbf16>
    %35 = vector.extract_strided_slice %30 {offsets = [0, 0, 0], sizes = [2, 8, 8], strides = [1, 1, 1]} : vector<2x8x32xbf16> to vector<2x8x8xbf16>
    %36 = vector.extract_strided_slice %32 {offsets = [0, 0, 0], sizes = [2, 8, 8], strides = [1, 1, 1]} : vector<2x8x32xbf16> to vector<2x8x8xbf16>
    "tpu.trace_start"() <{level = 10 : i32, message = "bqd,bkd->bqk"}> : () -> ()
    %cst_19 = arith.constant dense<0.000000e+00> : vector<2x8x8xf32>
    %37 = tpu.matmul %35, %36, %cst_19 {dimension_numbers = #tpu.dot_dimension_numbers<[2], [2], [1], [1], [0, 0, 0, 1, 1, 1], [0], [0]>} : vector<2x8x8xbf16>, vector<2x8x8xbf16>, vector<2x8x8xf32> -> vector<2x8x8xf32>
    "tpu.trace_stop"() : () -> ()
    %38 = vector.shape_cast %28 : vector<8x8xf32> to vector<1x8x8xf32>
    %39 = vector.broadcast %38 : vector<1x8x8xf32> to vector<2x8x8xf32>
    %40 = arith.addf %37, %39 : vector<2x8x8xf32>
    %cst_20 = arith.constant dense<0xFF800000> : vector<2x8xf32>
    %41 = vector.multi_reduction <maximumf>, %40, %cst_20 [2] : vector<2x8x8xf32> to vector<2x8xf32>
    %42 = vector.shape_cast %41 : vector<2x8xf32> to vector<2x8x1xf32>
    %43 = vector.broadcast %42 : vector<2x8x1xf32> to vector<2x8x8xf32>
    %44 = arith.subf %40, %43 : vector<2x8x8xf32>
    %45 = math.exp %44 : vector<2x8x8xf32>
    %cst_21 = arith.constant dense<0.000000e+00> : vector<2x8xf32>
    %46 = vector.multi_reduction <add>, %45, %cst_21 [2] : vector<2x8x8xf32> to vector<2x8xf32>
    %47 = vector.shape_cast %46 : vector<2x8xf32> to vector<2x8x1xf32>
    %48 = tpu.reciprocal %47 {approx = true} : vector<2x8x1xf32> -> vector<2x8x1xf32>
    %49 = vector.broadcast %48 : vector<2x8x1xf32> to vector<2x8x8xf32>
    %50 = arith.mulf %45, %49 : vector<2x8x8xf32>
    %51 = arith.truncf %50 : vector<2x8x8xf32> to vector<2x8x8xbf16>
    %52 = vector.extract_strided_slice %34 {offsets = [0, 0, 0], sizes = [2, 8, 8], strides = [1, 1, 1]} : vector<2x8x32xbf16> to vector<2x8x8xbf16>
    "tpu.trace_start"() <{level = 10 : i32, message = "bqk,bkd->bqd"}> : () -> ()
    %cst_22 = arith.constant dense<0.000000e+00> : vector<2x8x8xf32>
    %53 = tpu.matmul %51, %52, %cst_22 {dimension_numbers = #tpu.dot_dimension_numbers<[2], [1], [1], [2], [0, 0, 0, 1, 1, 2], [0], [0]>} : vector<2x8x8xbf16>, vector<2x8x8xbf16>, vector<2x8x8xf32> -> vector<2x8x8xf32>
    "tpu.trace_stop"() : () -> ()
    %54 = vector.extract_strided_slice %30 {offsets = [0, 0, 8], sizes = [2, 8, 8], strides = [1, 1, 1]} : vector<2x8x32xbf16> to vector<2x8x8xbf16>
    %55 = vector.extract_strided_slice %32 {offsets = [0, 0, 8], sizes = [2, 8, 8], strides = [1, 1, 1]} : vector<2x8x32xbf16> to vector<2x8x8xbf16>
    "tpu.trace_start"() <{level = 10 : i32, message = "bqd,bkd->bqk"}> : () -> ()
    %cst_23 = arith.constant dense<0.000000e+00> : vector<2x8x8xf32>
    %56 = tpu.matmul %54, %55, %cst_23 {dimension_numbers = #tpu.dot_dimension_numbers<[2], [2], [1], [1], [0, 0, 0, 1, 1, 1], [0], [0]>} : vector<2x8x8xbf16>, vector<2x8x8xbf16>, vector<2x8x8xf32> -> vector<2x8x8xf32>
    "tpu.trace_stop"() : () -> ()
    %57 = vector.shape_cast %28 : vector<8x8xf32> to vector<1x8x8xf32>
    %58 = vector.broadcast %57 : vector<1x8x8xf32> to vector<2x8x8xf32>
    %59 = arith.addf %56, %58 : vector<2x8x8xf32>
    %cst_24 = arith.constant dense<0xFF800000> : vector<2x8xf32>
    %60 = vector.multi_reduction <maximumf>, %59, %cst_24 [2] : vector<2x8x8xf32> to vector<2x8xf32>
    %61 = vector.shape_cast %60 : vector<2x8xf32> to vector<2x8x1xf32>
    %62 = vector.broadcast %61 : vector<2x8x1xf32> to vector<2x8x8xf32>
    %63 = arith.subf %59, %62 : vector<2x8x8xf32>
    %64 = math.exp %63 : vector<2x8x8xf32>
    %cst_25 = arith.constant dense<0.000000e+00> : vector<2x8xf32>
    %65 = vector.multi_reduction <add>, %64, %cst_25 [2] : vector<2x8x8xf32> to vector<2x8xf32>
    %66 = vector.shape_cast %65 : vector<2x8xf32> to vector<2x8x1xf32>
    %67 = tpu.reciprocal %66 {approx = true} : vector<2x8x1xf32> -> vector<2x8x1xf32>
    %68 = vector.broadcast %67 : vector<2x8x1xf32> to vector<2x8x8xf32>
    %69 = arith.mulf %64, %68 : vector<2x8x8xf32>
    %70 = arith.truncf %69 : vector<2x8x8xf32> to vector<2x8x8xbf16>
    %71 = vector.extract_strided_slice %34 {offsets = [0, 0, 8], sizes = [2, 8, 8], strides = [1, 1, 1]} : vector<2x8x32xbf16> to vector<2x8x8xbf16>
    "tpu.trace_start"() <{level = 10 : i32, message = "bqk,bkd->bqd"}> : () -> ()
    %cst_26 = arith.constant dense<0.000000e+00> : vector<2x8x8xf32>
    %72 = tpu.matmul %70, %71, %cst_26 {dimension_numbers = #tpu.dot_dimension_numbers<[2], [1], [1], [2], [0, 0, 0, 1, 1, 2], [0], [0]>} : vector<2x8x8xbf16>, vector<2x8x8xbf16>, vector<2x8x8xf32> -> vector<2x8x8xf32>
    "tpu.trace_stop"() : () -> ()
    %73 = vector.extract_strided_slice %30 {offsets = [0, 0, 16], sizes = [2, 8, 8], strides = [1, 1, 1]} : vector<2x8x32xbf16> to vector<2x8x8xbf16>
    %74 = vector.extract_strided_slice %32 {offsets = [0, 0, 16], sizes = [2, 8, 8], strides = [1, 1, 1]} : vector<2x8x32xbf16> to vector<2x8x8xbf16>
    "tpu.trace_start"() <{level = 10 : i32, message = "bqd,bkd->bqk"}> : () -> ()
    %cst_27 = arith.constant dense<0.000000e+00> : vector<2x8x8xf32>
    %75 = tpu.matmul %73, %74, %cst_27 {dimension_numbers = #tpu.dot_dimension_numbers<[2], [2], [1], [1], [0, 0, 0, 1, 1, 1], [0], [0]>} : vector<2x8x8xbf16>, vector<2x8x8xbf16>, vector<2x8x8xf32> -> vector<2x8x8xf32>
    "tpu.trace_stop"() : () -> ()
    %76 = vector.shape_cast %28 : vector<8x8xf32> to vector<1x8x8xf32>
    %77 = vector.broadcast %76 : vector<1x8x8xf32> to vector<2x8x8xf32>
    %78 = arith.addf %75, %77 : vector<2x8x8xf32>
    %cst_28 = arith.constant dense<0xFF800000> : vector<2x8xf32>
    %79 = vector.multi_reduction <maximumf>, %78, %cst_28 [2] : vector<2x8x8xf32> to vector<2x8xf32>
    %80 = vector.shape_cast %79 : vector<2x8xf32> to vector<2x8x1xf32>
    %81 = vector.broadcast %80 : vector<2x8x1xf32> to vector<2x8x8xf32>
    %82 = arith.subf %78, %81 : vector<2x8x8xf32>
    %83 = math.exp %82 : vector<2x8x8xf32>
    %cst_29 = arith.constant dense<0.000000e+00> : vector<2x8xf32>
    %84 = vector.multi_reduction <add>, %83, %cst_29 [2] : vector<2x8x8xf32> to vector<2x8xf32>
    %85 = vector.shape_cast %84 : vector<2x8xf32> to vector<2x8x1xf32>
    %86 = tpu.reciprocal %85 {approx = true} : vector<2x8x1xf32> -> vector<2x8x1xf32>
    %87 = vector.broadcast %86 : vector<2x8x1xf32> to vector<2x8x8xf32>
    %88 = arith.mulf %83, %87 : vector<2x8x8xf32>
    %89 = arith.truncf %88 : vector<2x8x8xf32> to vector<2x8x8xbf16>
    %90 = vector.extract_strided_slice %34 {offsets = [0, 0, 16], sizes = [2, 8, 8], strides = [1, 1, 1]} : vector<2x8x32xbf16> to vector<2x8x8xbf16>
    "tpu.trace_start"() <{level = 10 : i32, message = "bqk,bkd->bqd"}> : () -> ()
    %cst_30 = arith.constant dense<0.000000e+00> : vector<2x8x8xf32>
    %91 = tpu.matmul %89, %90, %cst_30 {dimension_numbers = #tpu.dot_dimension_numbers<[2], [1], [1], [2], [0, 0, 0, 1, 1, 2], [0], [0]>} : vector<2x8x8xbf16>, vector<2x8x8xbf16>, vector<2x8x8xf32> -> vector<2x8x8xf32>
    "tpu.trace_stop"() : () -> ()
    %92 = vector.extract_strided_slice %30 {offsets = [0, 0, 24], sizes = [2, 8, 8], strides = [1, 1, 1]} : vector<2x8x32xbf16> to vector<2x8x8xbf16>
    %93 = vector.extract_strided_slice %32 {offsets = [0, 0, 24], sizes = [2, 8, 8], strides = [1, 1, 1]} : vector<2x8x32xbf16> to vector<2x8x8xbf16>
    "tpu.trace_start"() <{level = 10 : i32, message = "bqd,bkd->bqk"}> : () -> ()
    %cst_31 = arith.constant dense<0.000000e+00> : vector<2x8x8xf32>
    %94 = tpu.matmul %92, %93, %cst_31 {dimension_numbers = #tpu.dot_dimension_numbers<[2], [2], [1], [1], [0, 0, 0, 1, 1, 1], [0], [0]>} : vector<2x8x8xbf16>, vector<2x8x8xbf16>, vector<2x8x8xf32> -> vector<2x8x8xf32>
    "tpu.trace_stop"() : () -> ()
    %95 = vector.shape_cast %28 : vector<8x8xf32> to vector<1x8x8xf32>
    %96 = vector.broadcast %95 : vector<1x8x8xf32> to vector<2x8x8xf32>
    %97 = arith.addf %94, %96 : vector<2x8x8xf32>
    %cst_32 = arith.constant dense<0xFF800000> : vector<2x8xf32>
    %98 = vector.multi_reduction <maximumf>, %97, %cst_32 [2] : vector<2x8x8xf32> to vector<2x8xf32>
    %99 = vector.shape_cast %98 : vector<2x8xf32> to vector<2x8x1xf32>
    %100 = vector.broadcast %99 : vector<2x8x1xf32> to vector<2x8x8xf32>
    %101 = arith.subf %97, %100 : vector<2x8x8xf32>
    %102 = math.exp %101 : vector<2x8x8xf32>
    %cst_33 = arith.constant dense<0.000000e+00> : vector<2x8xf32>
    %103 = vector.multi_reduction <add>, %102, %cst_33 [2] : vector<2x8x8xf32> to vector<2x8xf32>
    %104 = vector.shape_cast %103 : vector<2x8xf32> to vector<2x8x1xf32>
    %105 = tpu.reciprocal %104 {approx = true} : vector<2x8x1xf32> -> vector<2x8x1xf32>
    %106 = vector.broadcast %105 : vector<2x8x1xf32> to vector<2x8x8xf32>
    %107 = arith.mulf %102, %106 : vector<2x8x8xf32>
    %108 = arith.truncf %107 : vector<2x8x8xf32> to vector<2x8x8xbf16>
    %109 = vector.extract_strided_slice %34 {offsets = [0, 0, 24], sizes = [2, 8, 8], strides = [1, 1, 1]} : vector<2x8x32xbf16> to vector<2x8x8xbf16>
    "tpu.trace_start"() <{level = 10 : i32, message = "bqk,bkd->bqd"}> : () -> ()
    %cst_34 = arith.constant dense<0.000000e+00> : vector<2x8x8xf32>
    %110 = tpu.matmul %108, %109, %cst_34 {dimension_numbers = #tpu.dot_dimension_numbers<[2], [1], [1], [2], [0, 0, 0, 1, 1, 2], [0], [0]>} : vector<2x8x8xbf16>, vector<2x8x8xbf16>, vector<2x8x8xf32> -> vector<2x8x8xf32>
    "tpu.trace_stop"() : () -> ()
    %111 = tpu.concatenate %53, %72, %91, %110 in 2 : vector<2x8x8xf32>, vector<2x8x8xf32>, vector<2x8x8xf32>, vector<2x8x8xf32> -> vector<2x8x32xf32>
    %112 = vector.shape_cast %111 : vector<2x8x32xf32> to vector<16x32xf32>
    %113 = arith.truncf %112 : vector<16x32xf32> to vector<16x32xbf16>
    %c0_35 = arith.constant 0 : index
    %c0_36 = arith.constant 0 : index
    %c0_37 = arith.constant 0 : index
    %114 = vector.load %arg11[%c0_35, %c0_36, %c0_37] : memref<1x32x32xbf16, #tpu.memory_space<vmem>>, vector<1x32x32xbf16>
    %115 = vector.shape_cast %114 : vector<1x32x32xbf16> to vector<32x32xbf16>
    %cst_38 = arith.constant dense<0.000000e+00> : vector<16x32xf32>
    %116 = tpu.matmul %113, %115, %cst_38 {dimension_numbers = #tpu.dot_dimension_numbers<[1], [0], [0], [1], [0, 0, 1, 1], [], []>} : vector<16x32xbf16>, vector<32x32xbf16>, vector<16x32xf32> -> vector<16x32xf32>
    %c0_39 = arith.constant 0 : index
    %c0_40 = arith.constant 0 : index
    %c0_41 = arith.constant 0 : index
    %117 = vector.load %arg12[%c0_39, %c0_40, %c0_41] : memref<1x1x32xf32, #tpu.memory_space<vmem>>, vector<1x1x32xf32>
    %118 = vector.shape_cast %117 : vector<1x1x32xf32> to vector<1x32xf32>
    %119 = vector.broadcast %118 : vector<1x32xf32> to vector<16x32xf32>
    %120 = arith.addf %116, %119 : vector<16x32xf32>
    %c0_42 = arith.constant 0 : index
    %c0_43 = arith.constant 0 : index
    %c0_44 = arith.constant 0 : index
    %121 = vector.load %arg25[%c0_42, %c0_43, %c0_44] : memref<1x1x32xf32, #tpu.memory_space<vmem>>, vector<1x1x32xf32>
    %122 = vector.shape_cast %121 : vector<1x1x32xf32> to vector<1x32xf32>
    %c0_45 = arith.constant 0 : index
    %c0_46 = arith.constant 0 : index
    %c0_47 = arith.constant 0 : index
    %123 = vector.load %arg26[%c0_45, %c0_46, %c0_47] : memref<1x1x32xf32, #tpu.memory_space<vmem>>, vector<1x1x32xf32>
    %124 = vector.shape_cast %123 : vector<1x1x32xf32> to vector<1x32xf32>
    %125 = arith.addf %3, %120 : vector<16x32xf32>
    %cst_48 = arith.constant dense<0.000000e+00> : vector<16xf32>
    %126 = vector.multi_reduction <add>, %125, %cst_48 [1] : vector<16x32xf32> to vector<16xf32>
    %127 = vector.shape_cast %126 : vector<16xf32> to vector<16x1xf32>
    %cst_49 = arith.constant 3.200000e+01 : f32
    %128 = vector.broadcast %cst_49 : f32 to vector<16x1xf32>
    %129 = arith.divf %127, %128 : vector<16x1xf32>
    %130 = vector.broadcast %129 : vector<16x1xf32> to vector<16x32xf32>
    %131 = arith.subf %125, %130 : vector<16x32xf32>
    %132 = arith.mulf %131, %131 : vector<16x32xf32>
    %cst_50 = arith.constant dense<0.000000e+00> : vector<16xf32>
    %133 = vector.multi_reduction <add>, %132, %cst_50 [1] : vector<16x32xf32> to vector<16xf32>
    %134 = vector.shape_cast %133 : vector<16xf32> to vector<16x1xf32>
    %cst_51 = arith.constant 3.200000e+01 : f32
    %135 = vector.broadcast %cst_51 : f32 to vector<16x1xf32>
    %136 = arith.divf %134, %135 : vector<16x1xf32>
    %137 = vector.broadcast %129 : vector<16x1xf32> to vector<16x32xf32>
    %138 = arith.subf %125, %137 : vector<16x32xf32>
    %cst_52 = arith.constant 9.99999974E-6 : f32
    %139 = vector.broadcast %cst_52 : f32 to vector<16x1xf32>
    %140 = arith.addf %136, %139 : vector<16x1xf32>
    %141 = math.rsqrt %140 : vector<16x1xf32>
    %142 = vector.broadcast %141 : vector<16x1xf32> to vector<16x32xf32>
    %143 = arith.mulf %138, %142 : vector<16x32xf32>
    %144 = vector.broadcast %122 : vector<1x32xf32> to vector<16x32xf32>
    %145 = arith.mulf %143, %144 : vector<16x32xf32>
    %146 = vector.broadcast %124 : vector<1x32xf32> to vector<16x32xf32>
    %147 = arith.addf %145, %146 : vector<16x32xf32>
    %148 = vector.shape_cast %147 : vector<16x32xf32> to vector<2x8x32xf32>
    %149 = vector.shape_cast %4 : vector<8x32xf32> to vector<1x8x32xf32>
    %150 = vector.broadcast %149 : vector<1x8x32xf32> to vector<2x8x32xf32>
    %151 = arith.addf %148, %150 : vector<2x8x32xf32>
    %152 = vector.shape_cast %151 : vector<2x8x32xf32> to vector<16x32xf32>
    %153 = arith.truncf %152 : vector<16x32xf32> to vector<16x32xbf16>
    %c0_53 = arith.constant 0 : index
    %c0_54 = arith.constant 0 : index
    %c0_55 = arith.constant 0 : index
    %154 = vector.load %arg13[%c0_53, %c0_54, %c0_55] : memref<1x32x32xbf16, #tpu.memory_space<vmem>>, vector<1x32x32xbf16>
    %155 = vector.shape_cast %154 : vector<1x32x32xbf16> to vector<32x32xbf16>
    %cst_56 = arith.constant dense<0.000000e+00> : vector<16x32xf32>
    %156 = tpu.matmul %153, %155, %cst_56 {dimension_numbers = #tpu.dot_dimension_numbers<[1], [0], [0], [1], [0, 0, 1, 1], [], []>} : vector<16x32xbf16>, vector<32x32xbf16>, vector<16x32xf32> -> vector<16x32xf32>
    %c0_57 = arith.constant 0 : index
    %c0_58 = arith.constant 0 : index
    %c0_59 = arith.constant 0 : index
    %157 = vector.load %arg14[%c0_57, %c0_58, %c0_59] : memref<1x1x32xf32, #tpu.memory_space<vmem>>, vector<1x1x32xf32>
    %158 = vector.shape_cast %157 : vector<1x1x32xf32> to vector<1x32xf32>
    %159 = vector.broadcast %158 : vector<1x32xf32> to vector<16x32xf32>
    %160 = arith.addf %156, %159 : vector<16x32xf32>
    %c0_60 = arith.constant 0 : index
    %c0_61 = arith.constant 0 : index
    %161 = vector.load %arg33[%c0_60, %c0_61] : memref<16x32xbf16, #tpu.memory_space<vmem>>, vector<16x32xbf16>
    %c0_62 = arith.constant 0 : index
    %c0_63 = arith.constant 0 : index
    %c0_64 = arith.constant 0 : index
    %162 = vector.load %arg15[%c0_62, %c0_63, %c0_64] : memref<1x32x32xbf16, #tpu.memory_space<vmem>>, vector<1x32x32xbf16>
    %163 = vector.shape_cast %162 : vector<1x32x32xbf16> to vector<32x32xbf16>
    %cst_65 = arith.constant dense<0.000000e+00> : vector<16x32xf32>
    %164 = tpu.matmul %161, %163, %cst_65 {dimension_numbers = #tpu.dot_dimension_numbers<[1], [0], [0], [1], [0, 0, 1, 1], [], []>} : vector<16x32xbf16>, vector<32x32xbf16>, vector<16x32xf32> -> vector<16x32xf32>
    %c0_66 = arith.constant 0 : index
    %c0_67 = arith.constant 0 : index
    %c0_68 = arith.constant 0 : index
    %165 = vector.load %arg16[%c0_66, %c0_67, %c0_68] : memref<1x1x32xf32, #tpu.memory_space<vmem>>, vector<1x1x32xf32>
    %166 = vector.shape_cast %165 : vector<1x1x32xf32> to vector<1x32xf32>
    %167 = vector.broadcast %166 : vector<1x32xf32> to vector<16x32xf32>
    %168 = arith.addf %164, %167 : vector<16x32xf32>
    %c0_69 = arith.constant 0 : index
    %c0_70 = arith.constant 0 : index
    %169 = vector.load %arg34[%c0_69, %c0_70] : memref<16x32xbf16, #tpu.memory_space<vmem>>, vector<16x32xbf16>
    %c0_71 = arith.constant 0 : index
    %c0_72 = arith.constant 0 : index
    %c0_73 = arith.constant 0 : index
    %170 = vector.load %arg17[%c0_71, %c0_72, %c0_73] : memref<1x32x32xbf16, #tpu.memory_space<vmem>>, vector<1x32x32xbf16>
    %171 = vector.shape_cast %170 : vector<1x32x32xbf16> to vector<32x32xbf16>
    %cst_74 = arith.constant dense<0.000000e+00> : vector<16x32xf32>
    %172 = tpu.matmul %169, %171, %cst_74 {dimension_numbers = #tpu.dot_dimension_numbers<[1], [0], [0], [1], [0, 0, 1, 1], [], []>} : vector<16x32xbf16>, vector<32x32xbf16>, vector<16x32xf32> -> vector<16x32xf32>
    %c0_75 = arith.constant 0 : index
    %c0_76 = arith.constant 0 : index
    %c0_77 = arith.constant 0 : index
    %173 = vector.load %arg18[%c0_75, %c0_76, %c0_77] : memref<1x1x32xf32, #tpu.memory_space<vmem>>, vector<1x1x32xf32>
    %174 = vector.shape_cast %173 : vector<1x1x32xf32> to vector<1x32xf32>
    %175 = vector.broadcast %174 : vector<1x32xf32> to vector<16x32xf32>
    %176 = arith.addf %172, %175 : vector<16x32xf32>
    %177 = vector.shape_cast %160 : vector<16x32xf32> to vector<2x8x32xf32>
    %178 = arith.truncf %177 : vector<2x8x32xf32> to vector<2x8x32xbf16>
    %179 = vector.shape_cast %168 : vector<16x32xf32> to vector<2x8x32xf32>
    %180 = arith.truncf %179 : vector<2x8x32xf32> to vector<2x8x32xbf16>
    %181 = vector.shape_cast %176 : vector<16x32xf32> to vector<2x8x32xf32>
    %182 = arith.truncf %181 : vector<2x8x32xf32> to vector<2x8x32xbf16>
    %183 = vector.extract_strided_slice %178 {offsets = [0, 0, 0], sizes = [2, 8, 8], strides = [1, 1, 1]} : vector<2x8x32xbf16> to vector<2x8x8xbf16>
    %184 = vector.extract_strided_slice %180 {offsets = [0, 0, 0], sizes = [2, 8, 8], strides = [1, 1, 1]} : vector<2x8x32xbf16> to vector<2x8x8xbf16>
    "tpu.trace_start"() <{level = 10 : i32, message = "bqd,bkd->bqk"}> : () -> ()
    %cst_78 = arith.constant dense<0.000000e+00> : vector<2x8x8xf32>
    %185 = tpu.matmul %183, %184, %cst_78 {dimension_numbers = #tpu.dot_dimension_numbers<[2], [2], [1], [1], [0, 0, 0, 1, 1, 1], [0], [0]>} : vector<2x8x8xbf16>, vector<2x8x8xbf16>, vector<2x8x8xf32> -> vector<2x8x8xf32>
    "tpu.trace_stop"() : () -> ()
    %cst_79 = arith.constant dense<0xFF800000> : vector<2x8xf32>
    %186 = vector.multi_reduction <maximumf>, %185, %cst_79 [2] : vector<2x8x8xf32> to vector<2x8xf32>
    %187 = vector.shape_cast %186 : vector<2x8xf32> to vector<2x8x1xf32>
    %188 = vector.broadcast %187 : vector<2x8x1xf32> to vector<2x8x8xf32>
    %189 = arith.subf %185, %188 : vector<2x8x8xf32>
    %190 = math.exp %189 : vector<2x8x8xf32>
    %cst_80 = arith.constant dense<0.000000e+00> : vector<2x8xf32>
    %191 = vector.multi_reduction <add>, %190, %cst_80 [2] : vector<2x8x8xf32> to vector<2x8xf32>
    %192 = vector.shape_cast %191 : vector<2x8xf32> to vector<2x8x1xf32>
    %193 = tpu.reciprocal %192 {approx = true} : vector<2x8x1xf32> -> vector<2x8x1xf32>
    %194 = vector.broadcast %193 : vector<2x8x1xf32> to vector<2x8x8xf32>
    %195 = arith.mulf %190, %194 : vector<2x8x8xf32>
    %196 = arith.truncf %195 : vector<2x8x8xf32> to vector<2x8x8xbf16>
    %197 = vector.extract_strided_slice %182 {offsets = [0, 0, 0], sizes = [2, 8, 8], strides = [1, 1, 1]} : vector<2x8x32xbf16> to vector<2x8x8xbf16>
    "tpu.trace_start"() <{level = 10 : i32, message = "bqk,bkd->bqd"}> : () -> ()
    %cst_81 = arith.constant dense<0.000000e+00> : vector<2x8x8xf32>
    %198 = tpu.matmul %196, %197, %cst_81 {dimension_numbers = #tpu.dot_dimension_numbers<[2], [1], [1], [2], [0, 0, 0, 1, 1, 2], [0], [0]>} : vector<2x8x8xbf16>, vector<2x8x8xbf16>, vector<2x8x8xf32> -> vector<2x8x8xf32>
    "tpu.trace_stop"() : () -> ()
    %199 = vector.extract_strided_slice %178 {offsets = [0, 0, 8], sizes = [2, 8, 8], strides = [1, 1, 1]} : vector<2x8x32xbf16> to vector<2x8x8xbf16>
    %200 = vector.extract_strided_slice %180 {offsets = [0, 0, 8], sizes = [2, 8, 8], strides = [1, 1, 1]} : vector<2x8x32xbf16> to vector<2x8x8xbf16>
    "tpu.trace_start"() <{level = 10 : i32, message = "bqd,bkd->bqk"}> : () -> ()
    %cst_82 = arith.constant dense<0.000000e+00> : vector<2x8x8xf32>
    %201 = tpu.matmul %199, %200, %cst_82 {dimension_numbers = #tpu.dot_dimension_numbers<[2], [2], [1], [1], [0, 0, 0, 1, 1, 1], [0], [0]>} : vector<2x8x8xbf16>, vector<2x8x8xbf16>, vector<2x8x8xf32> -> vector<2x8x8xf32>
    "tpu.trace_stop"() : () -> ()
    %cst_83 = arith.constant dense<0xFF800000> : vector<2x8xf32>
    %202 = vector.multi_reduction <maximumf>, %201, %cst_83 [2] : vector<2x8x8xf32> to vector<2x8xf32>
    %203 = vector.shape_cast %202 : vector<2x8xf32> to vector<2x8x1xf32>
    %204 = vector.broadcast %203 : vector<2x8x1xf32> to vector<2x8x8xf32>
    %205 = arith.subf %201, %204 : vector<2x8x8xf32>
    %206 = math.exp %205 : vector<2x8x8xf32>
    %cst_84 = arith.constant dense<0.000000e+00> : vector<2x8xf32>
    %207 = vector.multi_reduction <add>, %206, %cst_84 [2] : vector<2x8x8xf32> to vector<2x8xf32>
    %208 = vector.shape_cast %207 : vector<2x8xf32> to vector<2x8x1xf32>
    %209 = tpu.reciprocal %208 {approx = true} : vector<2x8x1xf32> -> vector<2x8x1xf32>
    %210 = vector.broadcast %209 : vector<2x8x1xf32> to vector<2x8x8xf32>
    %211 = arith.mulf %206, %210 : vector<2x8x8xf32>
    %212 = arith.truncf %211 : vector<2x8x8xf32> to vector<2x8x8xbf16>
    %213 = vector.extract_strided_slice %182 {offsets = [0, 0, 8], sizes = [2, 8, 8], strides = [1, 1, 1]} : vector<2x8x32xbf16> to vector<2x8x8xbf16>
    "tpu.trace_start"() <{level = 10 : i32, message = "bqk,bkd->bqd"}> : () -> ()
    %cst_85 = arith.constant dense<0.000000e+00> : vector<2x8x8xf32>
    %214 = tpu.matmul %212, %213, %cst_85 {dimension_numbers = #tpu.dot_dimension_numbers<[2], [1], [1], [2], [0, 0, 0, 1, 1, 2], [0], [0]>} : vector<2x8x8xbf16>, vector<2x8x8xbf16>, vector<2x8x8xf32> -> vector<2x8x8xf32>
    "tpu.trace_stop"() : () -> ()
    %215 = vector.extract_strided_slice %178 {offsets = [0, 0, 16], sizes = [2, 8, 8], strides = [1, 1, 1]} : vector<2x8x32xbf16> to vector<2x8x8xbf16>
    %216 = vector.extract_strided_slice %180 {offsets = [0, 0, 16], sizes = [2, 8, 8], strides = [1, 1, 1]} : vector<2x8x32xbf16> to vector<2x8x8xbf16>
    "tpu.trace_start"() <{level = 10 : i32, message = "bqd,bkd->bqk"}> : () -> ()
    %cst_86 = arith.constant dense<0.000000e+00> : vector<2x8x8xf32>
    %217 = tpu.matmul %215, %216, %cst_86 {dimension_numbers = #tpu.dot_dimension_numbers<[2], [2], [1], [1], [0, 0, 0, 1, 1, 1], [0], [0]>} : vector<2x8x8xbf16>, vector<2x8x8xbf16>, vector<2x8x8xf32> -> vector<2x8x8xf32>
    "tpu.trace_stop"() : () -> ()
    %cst_87 = arith.constant dense<0xFF800000> : vector<2x8xf32>
    %218 = vector.multi_reduction <maximumf>, %217, %cst_87 [2] : vector<2x8x8xf32> to vector<2x8xf32>
    %219 = vector.shape_cast %218 : vector<2x8xf32> to vector<2x8x1xf32>
    %220 = vector.broadcast %219 : vector<2x8x1xf32> to vector<2x8x8xf32>
    %221 = arith.subf %217, %220 : vector<2x8x8xf32>
    %222 = math.exp %221 : vector<2x8x8xf32>
    %cst_88 = arith.constant dense<0.000000e+00> : vector<2x8xf32>
    %223 = vector.multi_reduction <add>, %222, %cst_88 [2] : vector<2x8x8xf32> to vector<2x8xf32>
    %224 = vector.shape_cast %223 : vector<2x8xf32> to vector<2x8x1xf32>
    %225 = tpu.reciprocal %224 {approx = true} : vector<2x8x1xf32> -> vector<2x8x1xf32>
    %226 = vector.broadcast %225 : vector<2x8x1xf32> to vector<2x8x8xf32>
    %227 = arith.mulf %222, %226 : vector<2x8x8xf32>
    %228 = arith.truncf %227 : vector<2x8x8xf32> to vector<2x8x8xbf16>
    %229 = vector.extract_strided_slice %182 {offsets = [0, 0, 16], sizes = [2, 8, 8], strides = [1, 1, 1]} : vector<2x8x32xbf16> to vector<2x8x8xbf16>
    "tpu.trace_start"() <{level = 10 : i32, message = "bqk,bkd->bqd"}> : () -> ()
    %cst_89 = arith.constant dense<0.000000e+00> : vector<2x8x8xf32>
    %230 = tpu.matmul %228, %229, %cst_89 {dimension_numbers = #tpu.dot_dimension_numbers<[2], [1], [1], [2], [0, 0, 0, 1, 1, 2], [0], [0]>} : vector<2x8x8xbf16>, vector<2x8x8xbf16>, vector<2x8x8xf32> -> vector<2x8x8xf32>
    "tpu.trace_stop"() : () -> ()
    %231 = vector.extract_strided_slice %178 {offsets = [0, 0, 24], sizes = [2, 8, 8], strides = [1, 1, 1]} : vector<2x8x32xbf16> to vector<2x8x8xbf16>
    %232 = vector.extract_strided_slice %180 {offsets = [0, 0, 24], sizes = [2, 8, 8], strides = [1, 1, 1]} : vector<2x8x32xbf16> to vector<2x8x8xbf16>
    "tpu.trace_start"() <{level = 10 : i32, message = "bqd,bkd->bqk"}> : () -> ()
    %cst_90 = arith.constant dense<0.000000e+00> : vector<2x8x8xf32>
    %233 = tpu.matmul %231, %232, %cst_90 {dimension_numbers = #tpu.dot_dimension_numbers<[2], [2], [1], [1], [0, 0, 0, 1, 1, 1], [0], [0]>} : vector<2x8x8xbf16>, vector<2x8x8xbf16>, vector<2x8x8xf32> -> vector<2x8x8xf32>
    "tpu.trace_stop"() : () -> ()
    %cst_91 = arith.constant dense<0xFF800000> : vector<2x8xf32>
    %234 = vector.multi_reduction <maximumf>, %233, %cst_91 [2] : vector<2x8x8xf32> to vector<2x8xf32>
    %235 = vector.shape_cast %234 : vector<2x8xf32> to vector<2x8x1xf32>
    %236 = vector.broadcast %235 : vector<2x8x1xf32> to vector<2x8x8xf32>
    %237 = arith.subf %233, %236 : vector<2x8x8xf32>
    %238 = math.exp %237 : vector<2x8x8xf32>
    %cst_92 = arith.constant dense<0.000000e+00> : vector<2x8xf32>
    %239 = vector.multi_reduction <add>, %238, %cst_92 [2] : vector<2x8x8xf32> to vector<2x8xf32>
    %240 = vector.shape_cast %239 : vector<2x8xf32> to vector<2x8x1xf32>
    %241 = tpu.reciprocal %240 {approx = true} : vector<2x8x1xf32> -> vector<2x8x1xf32>
    %242 = vector.broadcast %241 : vector<2x8x1xf32> to vector<2x8x8xf32>
    %243 = arith.mulf %238, %242 : vector<2x8x8xf32>
    %244 = arith.truncf %243 : vector<2x8x8xf32> to vector<2x8x8xbf16>
    %245 = vector.extract_strided_slice %182 {offsets = [0, 0, 24], sizes = [2, 8, 8], strides = [1, 1, 1]} : vector<2x8x32xbf16> to vector<2x8x8xbf16>
    "tpu.trace_start"() <{level = 10 : i32, message = "bqk,bkd->bqd"}> : () -> ()
    %cst_93 = arith.constant dense<0.000000e+00> : vector<2x8x8xf32>
    %246 = tpu.matmul %244, %245, %cst_93 {dimension_numbers = #tpu.dot_dimension_numbers<[2], [1], [1], [2], [0, 0, 0, 1, 1, 2], [0], [0]>} : vector<2x8x8xbf16>, vector<2x8x8xbf16>, vector<2x8x8xf32> -> vector<2x8x8xf32>
    "tpu.trace_stop"() : () -> ()
    %247 = tpu.concatenate %198, %214, %230, %246 in 2 : vector<2x8x8xf32>, vector<2x8x8xf32>, vector<2x8x8xf32>, vector<2x8x8xf32> -> vector<2x8x32xf32>
    %248 = vector.shape_cast %247 : vector<2x8x32xf32> to vector<16x32xf32>
    %249 = arith.truncf %248 : vector<16x32xf32> to vector<16x32xbf16>
    %c0_94 = arith.constant 0 : index
    %c0_95 = arith.constant 0 : index
    %c0_96 = arith.constant 0 : index
    %250 = vector.load %arg19[%c0_94, %c0_95, %c0_96] : memref<1x32x32xbf16, #tpu.memory_space<vmem>>, vector<1x32x32xbf16>
    %251 = vector.shape_cast %250 : vector<1x32x32xbf16> to vector<32x32xbf16>
    %cst_97 = arith.constant dense<0.000000e+00> : vector<16x32xf32>
    %252 = tpu.matmul %249, %251, %cst_97 {dimension_numbers = #tpu.dot_dimension_numbers<[1], [0], [0], [1], [0, 0, 1, 1], [], []>} : vector<16x32xbf16>, vector<32x32xbf16>, vector<16x32xf32> -> vector<16x32xf32>
    %c0_98 = arith.constant 0 : index
    %c0_99 = arith.constant 0 : index
    %c0_100 = arith.constant 0 : index
    %253 = vector.load %arg20[%c0_98, %c0_99, %c0_100] : memref<1x1x32xf32, #tpu.memory_space<vmem>>, vector<1x1x32xf32>
    %254 = vector.shape_cast %253 : vector<1x1x32xf32> to vector<1x32xf32>
    %255 = vector.broadcast %254 : vector<1x32xf32> to vector<16x32xf32>
    %256 = arith.addf %252, %255 : vector<16x32xf32>
    %c0_101 = arith.constant 0 : index
    %c0_102 = arith.constant 0 : index
    %c0_103 = arith.constant 0 : index
    %257 = vector.load %arg27[%c0_101, %c0_102, %c0_103] : memref<1x1x32xf32, #tpu.memory_space<vmem>>, vector<1x1x32xf32>
    %258 = vector.shape_cast %257 : vector<1x1x32xf32> to vector<1x32xf32>
    %c0_104 = arith.constant 0 : index
    %c0_105 = arith.constant 0 : index
    %c0_106 = arith.constant 0 : index
    %259 = vector.load %arg28[%c0_104, %c0_105, %c0_106] : memref<1x1x32xf32, #tpu.memory_space<vmem>>, vector<1x1x32xf32>
    %260 = vector.shape_cast %259 : vector<1x1x32xf32> to vector<1x32xf32>
    %261 = arith.addf %147, %256 : vector<16x32xf32>
    %cst_107 = arith.constant dense<0.000000e+00> : vector<16xf32>
    %262 = vector.multi_reduction <add>, %261, %cst_107 [1] : vector<16x32xf32> to vector<16xf32>
    %263 = vector.shape_cast %262 : vector<16xf32> to vector<16x1xf32>
    %cst_108 = arith.constant 3.200000e+01 : f32
    %264 = vector.broadcast %cst_108 : f32 to vector<16x1xf32>
    %265 = arith.divf %263, %264 : vector<16x1xf32>
    %266 = vector.broadcast %265 : vector<16x1xf32> to vector<16x32xf32>
    %267 = arith.subf %261, %266 : vector<16x32xf32>
    %268 = arith.mulf %267, %267 : vector<16x32xf32>
    %cst_109 = arith.constant dense<0.000000e+00> : vector<16xf32>
    %269 = vector.multi_reduction <add>, %268, %cst_109 [1] : vector<16x32xf32> to vector<16xf32>
    %270 = vector.shape_cast %269 : vector<16xf32> to vector<16x1xf32>
    %cst_110 = arith.constant 3.200000e+01 : f32
    %271 = vector.broadcast %cst_110 : f32 to vector<16x1xf32>
    %272 = arith.divf %270, %271 : vector<16x1xf32>
    %273 = vector.broadcast %265 : vector<16x1xf32> to vector<16x32xf32>
    %274 = arith.subf %261, %273 : vector<16x32xf32>
    %cst_111 = arith.constant 9.99999974E-6 : f32
    %275 = vector.broadcast %cst_111 : f32 to vector<16x1xf32>
    %276 = arith.addf %272, %275 : vector<16x1xf32>
    %277 = math.rsqrt %276 : vector<16x1xf32>
    %278 = vector.broadcast %277 : vector<16x1xf32> to vector<16x32xf32>
    %279 = arith.mulf %274, %278 : vector<16x32xf32>
    %280 = vector.broadcast %258 : vector<1x32xf32> to vector<16x32xf32>
    %281 = arith.mulf %279, %280 : vector<16x32xf32>
    %282 = vector.broadcast %260 : vector<1x32xf32> to vector<16x32xf32>
    %283 = arith.addf %281, %282 : vector<16x32xf32>
    %284 = arith.truncf %283 : vector<16x32xf32> to vector<16x32xbf16>
    %c0_112 = arith.constant 0 : index
    %c0_113 = arith.constant 0 : index
    %c0_114 = arith.constant 0 : index
    %285 = vector.load %arg21[%c0_112, %c0_113, %c0_114] : memref<1x32x64xbf16, #tpu.memory_space<vmem>>, vector<1x32x64xbf16>
    %286 = vector.shape_cast %285 : vector<1x32x64xbf16> to vector<32x64xbf16>
    %cst_115 = arith.constant dense<0.000000e+00> : vector<16x64xf32>
    %287 = tpu.matmul %284, %286, %cst_115 {dimension_numbers = #tpu.dot_dimension_numbers<[1], [0], [0], [1], [0, 0, 1, 1], [], []>} : vector<16x32xbf16>, vector<32x64xbf16>, vector<16x64xf32> -> vector<16x64xf32>
    %c0_116 = arith.constant 0 : index
    %c0_117 = arith.constant 0 : index
    %c0_118 = arith.constant 0 : index
    %288 = vector.load %arg22[%c0_116, %c0_117, %c0_118] : memref<1x1x64xf32, #tpu.memory_space<vmem>>, vector<1x1x64xf32>
    %289 = vector.shape_cast %288 : vector<1x1x64xf32> to vector<1x64xf32>
    %290 = vector.broadcast %289 : vector<1x64xf32> to vector<16x64xf32>
    %291 = arith.addf %287, %290 : vector<16x64xf32>
    %cst_119 = arith.constant 0.000000e+00 : f32
    %292 = vector.broadcast %cst_119 : f32 to vector<16x64xf32>
    %293 = arith.maximumf %291, %292 : vector<16x64xf32>
    %294 = arith.truncf %293 : vector<16x64xf32> to vector<16x64xbf16>
    %c0_120 = arith.constant 0 : index
    %c0_121 = arith.constant 0 : index
    %c0_122 = arith.constant 0 : index
    %295 = vector.load %arg23[%c0_120, %c0_121, %c0_122] : memref<1x64x32xbf16, #tpu.memory_space<vmem>>, vector<1x64x32xbf16>
    %296 = vector.shape_cast %295 : vector<1x64x32xbf16> to vector<64x32xbf16>
    %cst_123 = arith.constant dense<0.000000e+00> : vector<16x32xf32>
    %297 = tpu.matmul %294, %296, %cst_123 {dimension_numbers = #tpu.dot_dimension_numbers<[1], [0], [0], [1], [0, 0, 1, 1], [], []>} : vector<16x64xbf16>, vector<64x32xbf16>, vector<16x32xf32> -> vector<16x32xf32>
    %c0_124 = arith.constant 0 : index
    %c0_125 = arith.constant 0 : index
    %c0_126 = arith.constant 0 : index
    %298 = vector.load %arg24[%c0_124, %c0_125, %c0_126] : memref<1x1x32xf32, #tpu.memory_space<vmem>>, vector<1x1x32xf32>
    %299 = vector.shape_cast %298 : vector<1x1x32xf32> to vector<1x32xf32>
    %300 = vector.broadcast %299 : vector<1x32xf32> to vector<16x32xf32>
    %301 = arith.addf %297, %300 : vector<16x32xf32>
    %c0_127 = arith.constant 0 : index
    %c0_128 = arith.constant 0 : index
    %c0_129 = arith.constant 0 : index
    %302 = vector.load %arg29[%c0_127, %c0_128, %c0_129] : memref<1x1x32xf32, #tpu.memory_space<vmem>>, vector<1x1x32xf32>
    %303 = vector.shape_cast %302 : vector<1x1x32xf32> to vector<1x32xf32>
    %c0_130 = arith.constant 0 : index
    %c0_131 = arith.constant 0 : index
    %c0_132 = arith.constant 0 : index
    %304 = vector.load %arg30[%c0_130, %c0_131, %c0_132] : memref<1x1x32xf32, #tpu.memory_space<vmem>>, vector<1x1x32xf32>
    %305 = vector.shape_cast %304 : vector<1x1x32xf32> to vector<1x32xf32>
    %306 = arith.addf %283, %301 : vector<16x32xf32>
    %cst_133 = arith.constant dense<0.000000e+00> : vector<16xf32>
    %307 = vector.multi_reduction <add>, %306, %cst_133 [1] : vector<16x32xf32> to vector<16xf32>
    %308 = vector.shape_cast %307 : vector<16xf32> to vector<16x1xf32>
    %cst_134 = arith.constant 3.200000e+01 : f32
    %309 = vector.broadcast %cst_134 : f32 to vector<16x1xf32>
    %310 = arith.divf %308, %309 : vector<16x1xf32>
    %311 = vector.broadcast %310 : vector<16x1xf32> to vector<16x32xf32>
    %312 = arith.subf %306, %311 : vector<16x32xf32>
    %313 = arith.mulf %312, %312 : vector<16x32xf32>
    %cst_135 = arith.constant dense<0.000000e+00> : vector<16xf32>
    %314 = vector.multi_reduction <add>, %313, %cst_135 [1] : vector<16x32xf32> to vector<16xf32>
    %315 = vector.shape_cast %314 : vector<16xf32> to vector<16x1xf32>
    %cst_136 = arith.constant 3.200000e+01 : f32
    %316 = vector.broadcast %cst_136 : f32 to vector<16x1xf32>
    %317 = arith.divf %315, %316 : vector<16x1xf32>
    %318 = vector.broadcast %310 : vector<16x1xf32> to vector<16x32xf32>
    %319 = arith.subf %306, %318 : vector<16x32xf32>
    %cst_137 = arith.constant 9.99999974E-6 : f32
    %320 = vector.broadcast %cst_137 : f32 to vector<16x1xf32>
    %321 = arith.addf %317, %320 : vector<16x1xf32>
    %322 = math.rsqrt %321 : vector<16x1xf32>
    %323 = vector.broadcast %322 : vector<16x1xf32> to vector<16x32xf32>
    %324 = arith.mulf %319, %323 : vector<16x32xf32>
    %325 = vector.broadcast %303 : vector<1x32xf32> to vector<16x32xf32>
    %326 = arith.mulf %324, %325 : vector<16x32xf32>
    %327 = vector.broadcast %305 : vector<1x32xf32> to vector<16x32xf32>
    %328 = arith.addf %326, %327 : vector<16x32xf32>
    %c0_138 = arith.constant 0 : index
    %c0_139 = arith.constant 0 : index
    %329 = vector.load %arg32[%c0_138, %c0_139] : memref<16x32xf32, #tpu.memory_space<vmem>>, vector<16x32xf32>
    tpu.vector_store %arg32[%c0_138, %c0_139], %328 {strides = array<i32>} : memref<16x32xf32, #tpu.memory_space<vmem>>, vector<16x32xf32>,
    %c0_140 = arith.constant 0 : index
    %c0_141 = arith.constant 0 : index
    %c0_142 = arith.constant 0 : index
    %330 = vector.load %arg31[%c0_140, %c0_141, %c0_142] : memref<1x16x32xf32, #tpu.memory_space<vmem>>, vector<1x16x32xf32>
    %331 = vector.shape_cast %330 : vector<1x16x32xf32> to vector<16x32xf32>
    %332 = vector.shape_cast %328 : vector<16x32xf32> to vector<1x16x32xf32>
    tpu.vector_store %arg31[%c0_140, %c0_141, %c0_142], %332 {strides = array<i32>} : memref<1x16x32xf32, #tpu.memory_space<vmem>>, vector<1x16x32xf32>,
    return
  }
  func.func @transform_0(%arg0: i32, %arg1: i32) -> (i32, i32) {
    %c0_i32 = arith.constant 0 : i32
    %c0_i32_0 = arith.constant 0 : i32
    return %arg0, %c0_i32 : i32, i32
  }
  func.func @transform_1(%arg0: i32, %arg1: i32) -> (i32, i32) {
    %c0_i32 = arith.constant 0 : i32
    %c0_i32_0 = arith.constant 0 : i32
    %c0_i32_1 = arith.constant 0 : i32
    return %c0_i32, %c0_i32_0 : i32, i32
  }
  func.func @transform_2(%arg0: i32, %arg1: i32) -> (i32, i32) {
    %c0_i32 = arith.constant 0 : i32
    %c0_i32_0 = arith.constant 0 : i32
    return %arg0, %c0_i32 : i32, i32
  }
  func.func @transform_3(%arg0: i32, %arg1: i32) -> (i32, i32) {
    %c0_i32 = arith.constant 0 : i32
    %c0_i32_0 = arith.constant 0 : i32
    %c0_i32_1 = arith.constant 0 : i32
    return %c0_i32, %c0_i32_0 : i32, i32
  }
  func.func @transform_4(%arg0: i32, %arg1: i32) -> (i32, i32) {
    %c0_i32 = arith.constant 0 : i32
    %c0_i32_0 = arith.constant 0 : i32
    %c0_i32_1 = arith.constant 0 : i32
    return %c0_i32, %c0_i32_0 : i32, i32
  }
  func.func @transform_5(%arg0: i32, %arg1: i32) -> (i32, i32, i32) {
    %c0_i32 = arith.constant 0 : i32
    %c0_i32_0 = arith.constant 0 : i32
    %c0_i32_1 = arith.constant 0 : i32
    return %arg1, %c0_i32, %c0_i32_0 : i32, i32, i32
  }
  func.func @transform_6(%arg0: i32, %arg1: i32) -> (i32, i32, i32) {
    %c0_i32 = arith.constant 0 : i32
    %c0_i32_0 = arith.constant 0 : i32
    %c0_i32_1 = arith.constant 0 : i32
    return %arg1, %c0_i32, %c0_i32_0 : i32, i32, i32
  }
  func.func @transform_7(%arg0: i32, %arg1: i32) -> (i32, i32, i32) {
    %c0_i32 = arith.constant 0 : i32
    %c0_i32_0 = arith.constant 0 : i32
    %c0_i32_1 = arith.constant 0 : i32
    return %arg1, %c0_i32, %c0_i32_0 : i32, i32, i32
  }
  func.func @transform_8(%arg0: i32, %arg1: i32) -> (i32, i32, i32) {
    %c0_i32 = arith.constant 0 : i32
    %c0_i32_0 = arith.constant 0 : i32
    %c0_i32_1 = arith.constant 0 : i32
    return %arg1, %c0_i32, %c0_i32_0 : i32, i32, i32
  }
  func.func @transform_9(%arg0: i32, %arg1: i32) -> (i32, i32, i32) {
    %c0_i32 = arith.constant 0 : i32
    %c0_i32_0 = arith.constant 0 : i32
    %c0_i32_1 = arith.constant 0 : i32
    return %arg1, %c0_i32, %c0_i32_0 : i32, i32, i32
  }
  func.func @transform_10(%arg0: i32, %arg1: i32) -> (i32, i32, i32) {
    %c0_i32 = arith.constant 0 : i32
    %c0_i32_0 = arith.constant 0 : i32
    %c0_i32_1 = arith.constant 0 : i32
    return %arg1, %c0_i32, %c0_i32_0 : i32, i32, i32
  }
  func.func @transform_11(%arg0: i32, %arg1: i32) -> (i32, i32, i32) {
    %c0_i32 = arith.constant 0 : i32
    %c0_i32_0 = arith.constant 0 : i32
    %c0_i32_1 = arith.constant 0 : i32
    return %arg1, %c0_i32, %c0_i32_0 : i32, i32, i32
  }
  func.func @transform_12(%arg0: i32, %arg1: i32) -> (i32, i32, i32) {
    %c0_i32 = arith.constant 0 : i32
    %c0_i32_0 = arith.constant 0 : i32
    %c0_i32_1 = arith.constant 0 : i32
    return %arg1, %c0_i32, %c0_i32_0 : i32, i32, i32
  }
  func.func @transform_13(%arg0: i32, %arg1: i32) -> (i32, i32, i32) {
    %c0_i32 = arith.constant 0 : i32
    %c0_i32_0 = arith.constant 0 : i32
    %c0_i32_1 = arith.constant 0 : i32
    return %arg1, %c0_i32, %c0_i32_0 : i32, i32, i32
  }
  func.func @transform_14(%arg0: i32, %arg1: i32) -> (i32, i32, i32) {
    %c0_i32 = arith.constant 0 : i32
    %c0_i32_0 = arith.constant 0 : i32
    %c0_i32_1 = arith.constant 0 : i32
    return %arg1, %c0_i32, %c0_i32_0 : i32, i32, i32
  }
  func.func @transform_15(%arg0: i32, %arg1: i32) -> (i32, i32, i32) {
    %c0_i32 = arith.constant 0 : i32
    %c0_i32_0 = arith.constant 0 : i32
    %c0_i32_1 = arith.constant 0 : i32
    return %arg1, %c0_i32, %c0_i32_0 : i32, i32, i32
  }
  func.func @transform_16(%arg0: i32, %arg1: i32) -> (i32, i32, i32) {
    %c0_i32 = arith.constant 0 : i32
    %c0_i32_0 = arith.constant 0 : i32
    %c0_i32_1 = arith.constant 0 : i32
    return %arg1, %c0_i32, %c0_i32_0 : i32, i32, i32
  }
  func.func @transform_17(%arg0: i32, %arg1: i32) -> (i32, i32, i32) {
    %c0_i32 = arith.constant 0 : i32
    %c0_i32_0 = arith.constant 0 : i32
    %c0_i32_1 = arith.constant 0 : i32
    return %arg1, %c0_i32, %c0_i32_0 : i32, i32, i32
  }
  func.func @transform_18(%arg0: i32, %arg1: i32) -> (i32, i32, i32) {
    %c0_i32 = arith.constant 0 : i32
    %c0_i32_0 = arith.constant 0 : i32
    %c0_i32_1 = arith.constant 0 : i32
    return %arg1, %c0_i32, %c0_i32_0 : i32, i32, i32
  }
  func.func @transform_19(%arg0: i32, %arg1: i32) -> (i32, i32, i32) {
    %c0_i32 = arith.constant 0 : i32
    %c0_i32_0 = arith.constant 0 : i32
    %c0_i32_1 = arith.constant 0 : i32
    return %arg1, %c0_i32, %c0_i32_0 : i32, i32, i32
  }
  func.func @transform_20(%arg0: i32, %arg1: i32) -> (i32, i32, i32) {
    %c0_i32 = arith.constant 0 : i32
    %c0_i32_0 = arith.constant 0 : i32
    %c0_i32_1 = arith.constant 0 : i32
    return %arg1, %c0_i32, %c0_i32_0 : i32, i32, i32
  }
  func.func @transform_21(%arg0: i32, %arg1: i32) -> (i32, i32, i32) {
    %c0_i32 = arith.constant 0 : i32
    %c0_i32_0 = arith.constant 0 : i32
    %c0_i32_1 = arith.constant 0 : i32
    return %arg1, %c0_i32, %c0_i32_0 : i32, i32, i32
  }
  func.func @transform_22(%arg0: i32, %arg1: i32) -> (i32, i32, i32) {
    %c0_i32 = arith.constant 0 : i32
    %c0_i32_0 = arith.constant 0 : i32
    %c0_i32_1 = arith.constant 0 : i32
    return %arg1, %c0_i32, %c0_i32_0 : i32, i32, i32
  }
  func.func @transform_23(%arg0: i32, %arg1: i32) -> (i32, i32, i32) {
    %c0_i32 = arith.constant 0 : i32
    %c0_i32_0 = arith.constant 0 : i32
    %c0_i32_1 = arith.constant 0 : i32
    return %arg1, %c0_i32, %c0_i32_0 : i32, i32, i32
  }
  func.func @transform_24(%arg0: i32, %arg1: i32) -> (i32, i32, i32) {
    %c0_i32 = arith.constant 0 : i32
    %c0_i32_0 = arith.constant 0 : i32
    %c0_i32_1 = arith.constant 0 : i32
    return %arg1, %c0_i32, %c0_i32_0 : i32, i32, i32
  }
  func.func @transform_25(%arg0: i32, %arg1: i32) -> (i32, i32, i32) {
    %c0_i32 = arith.constant 0 : i32
    %c0_i32_0 = arith.constant 0 : i32
    %c0_i32_1 = arith.constant 0 : i32
    return %arg1, %c0_i32, %c0_i32_0 : i32, i32, i32
  }
  func.func @transform_26(%arg0: i32, %arg1: i32) -> (i32, i32, i32) {
    %c0_i32 = arith.constant 0 : i32
    %c0_i32_0 = arith.constant 0 : i32
    %c0_i32_1 = arith.constant 0 : i32
    return %arg1, %c0_i32, %c0_i32_0 : i32, i32, i32
  }
  func.func @transform_27(%arg0: i32, %arg1: i32) -> (i32, i32, i32) {
    %c0_i32 = arith.constant 0 : i32
    %c0_i32_0 = arith.constant 0 : i32
    %c0_i32_1 = arith.constant 0 : i32
    return %arg1, %c0_i32, %c0_i32_0 : i32, i32, i32
  }
  func.func @transform_28(%arg0: i32, %arg1: i32) -> (i32, i32, i32) {
    %c0_i32 = arith.constant 0 : i32
    %c0_i32_0 = arith.constant 0 : i32
    %c0_i32_1 = arith.constant 0 : i32
    return %arg1, %c0_i32, %c0_i32_0 : i32, i32, i32
  }
  func.func @transform_29(%arg0: i32, %arg1: i32) -> (i32, i32, i32) {
    %c0_i32 = arith.constant 0 : i32
    %c0_i32_0 = arith.constant 0 : i32
    return %arg1, %arg0, %c0_i32 : i32, i32, i32
  }
}

module attributes {stable_mosaic.version = 11 : i64} {
  func.func @_encoder_stack_kernel(%arg0: i32, %arg1: i32, %arg2: memref<16x32xf32, #tpu.memory_space<vmem>>, %arg3: memref<8x32xf32, #tpu.memory_space<vmem>>, %arg4: memref<1x32x64xbf16, #tpu.memory_space<vmem>>, %arg5: memref<1x1x64xf32, #tpu.memory_space<vmem>>, %arg6: memref<1x32x32xbf16, #tpu.memory_space<vmem>>, %arg7: memref<1x1x32xf32, #tpu.memory_space<vmem>>, %arg8: memref<1x32x32xbf16, #tpu.memory_space<vmem>>, %arg9: memref<1x1x32xf32, #tpu.memory_space<vmem>>, %arg10: memref<1x32x64xbf16, #tpu.memory_space<vmem>>, %arg11: memref<1x1x64xf32, #tpu.memory_space<vmem>>, %arg12: memref<1x64x32xbf16, #tpu.memory_space<vmem>>, %arg13: memref<1x1x32xf32, #tpu.memory_space<vmem>>, %arg14: memref<1x1x32xf32, #tpu.memory_space<vmem>>, %arg15: memref<1x1x32xf32, #tpu.memory_space<vmem>>, %arg16: memref<1x1x32xf32, #tpu.memory_space<vmem>>, %arg17: memref<1x1x32xf32, #tpu.memory_space<vmem>>, %arg18: memref<16x32xf32, #tpu.memory_space<vmem>>, %arg19: memref<16x32xf32, #tpu.memory_space<vmem>>) attributes {dimension_semantics = [#tpu.dimension_semantics<parallel>, #tpu.dimension_semantics<arbitrary>], iteration_bounds = array<i64: 1, 2>, scalar_prefetch = 0 : i64, scratch_operands = 1 : i64, tpu.core_type = #tpu.core_type<tc>, window_params = [{transform_indices = @transform_0, window_bounds = array<i64: 16, 32>}, {pipeline_mode = #tpu.pipeline_mode<synchronous>, transform_indices = @transform_1, window_bounds = array<i64: 8, 32>}, {transform_indices = @transform_2, window_bounds = array<i64: 1, 32, 64>}, {transform_indices = @transform_3, window_bounds = array<i64: 1, 1, 64>}, {transform_indices = @transform_4, window_bounds = array<i64: 1, 32, 32>}, {transform_indices = @transform_5, window_bounds = array<i64: 1, 1, 32>}, {transform_indices = @transform_6, window_bounds = array<i64: 1, 32, 32>}, {transform_indices = @transform_7, window_bounds = array<i64: 1, 1, 32>}, {transform_indices = @transform_8, window_bounds = array<i64: 1, 32, 64>}, {transform_indices = @transform_9, window_bounds = array<i64: 1, 1, 64>}, {transform_indices = @transform_10, window_bounds = array<i64: 1, 64, 32>}, {transform_indices = @transform_11, window_bounds = array<i64: 1, 1, 32>}, {transform_indices = @transform_12, window_bounds = array<i64: 1, 1, 32>}, {transform_indices = @transform_13, window_bounds = array<i64: 1, 1, 32>}, {transform_indices = @transform_14, window_bounds = array<i64: 1, 1, 32>}, {transform_indices = @transform_15, window_bounds = array<i64: 1, 1, 32>}, {transform_indices = @transform_16, window_bounds = array<i64: 16, 32>}]} {
    %c0_i32 = arith.constant 0 : i32
    %0 = arith.cmpi eq, %arg1, %c0_i32 : i32
    %1 = arith.extui %0 : i1 to i32
    %c0_i32_0 = arith.constant 0 : i32
    %2 = arith.cmpi ne, %1, %c0_i32_0 : i32
    scf.if %2 {
      %c0_81 = arith.constant 0 : index
      %c0_82 = arith.constant 0 : index
      %182 = vector.load %arg2[%c0_81, %c0_82] : memref<16x32xf32, #tpu.memory_space<vmem>>, vector<16x32xf32>
      %c0_83 = arith.constant 0 : index
      %c0_84 = arith.constant 0 : index
      %183 = vector.load %arg19[%c0_83, %c0_84] : memref<16x32xf32, #tpu.memory_space<vmem>>, vector<16x32xf32>
      tpu.vector_store %arg19[%c0_83, %c0_84], %182 {strides = array<i32>} : memref<16x32xf32, #tpu.memory_space<vmem>>, vector<16x32xf32>,
    } else {
    }
    %c0 = arith.constant 0 : index
    %c0_1 = arith.constant 0 : index
    %3 = vector.load %arg19[%c0, %c0_1] : memref<16x32xf32, #tpu.memory_space<vmem>>, vector<16x32xf32>
    %4 = vector.shape_cast %3 : vector<16x32xf32> to vector<2x8x32xf32>
    %c0_2 = arith.constant 0 : index
    %c0_3 = arith.constant 0 : index
    %5 = vector.load %arg3[%c0_2, %c0_3] : memref<8x32xf32, #tpu.memory_space<vmem>>, vector<8x32xf32>
    %6 = vector.shape_cast %5 : vector<8x32xf32> to vector<1x8x32xf32>
    %7 = vector.broadcast %6 : vector<1x8x32xf32> to vector<2x8x32xf32>
    %8 = arith.addf %4, %7 : vector<2x8x32xf32>
    %9 = vector.shape_cast %8 : vector<2x8x32xf32> to vector<16x32xf32>
    %10 = arith.truncf %9 : vector<16x32xf32> to vector<16x32xbf16>
    %11 = arith.truncf %3 : vector<16x32xf32> to vector<16x32xbf16>
    %c0_4 = arith.constant 0 : index
    %c0_5 = arith.constant 0 : index
    %c0_6 = arith.constant 0 : index
    %12 = vector.load %arg4[%c0_4, %c0_5, %c0_6] : memref<1x32x64xbf16, #tpu.memory_space<vmem>>, vector<1x32x64xbf16>
    %13 = vector.shape_cast %12 : vector<1x32x64xbf16> to vector<32x64xbf16>
    %cst = arith.constant dense<0.000000e+00> : vector<16x64xf32>
    %14 = tpu.matmul %10, %13, %cst {dimension_numbers = #tpu.dot_dimension_numbers<[1], [0], [0], [1], [0, 0, 1, 1], [], []>} : vector<16x32xbf16>, vector<32x64xbf16>, vector<16x64xf32> -> vector<16x64xf32>
    %c0_7 = arith.constant 0 : index
    %c0_8 = arith.constant 0 : index
    %c0_9 = arith.constant 0 : index
    %15 = vector.load %arg5[%c0_7, %c0_8, %c0_9] : memref<1x1x64xf32, #tpu.memory_space<vmem>>, vector<1x1x64xf32>
    %16 = vector.shape_cast %15 : vector<1x1x64xf32> to vector<1x64xf32>
    %17 = vector.broadcast %16 : vector<1x64xf32> to vector<16x64xf32>
    %18 = arith.addf %14, %17 : vector<16x64xf32>
    %c0_10 = arith.constant 0 : index
    %c0_11 = arith.constant 0 : index
    %c0_12 = arith.constant 0 : index
    %19 = vector.load %arg6[%c0_10, %c0_11, %c0_12] : memref<1x32x32xbf16, #tpu.memory_space<vmem>>, vector<1x32x32xbf16>
    %20 = vector.shape_cast %19 : vector<1x32x32xbf16> to vector<32x32xbf16>
    %cst_13 = arith.constant dense<0.000000e+00> : vector<16x32xf32>
    %21 = tpu.matmul %11, %20, %cst_13 {dimension_numbers = #tpu.dot_dimension_numbers<[1], [0], [0], [1], [0, 0, 1, 1], [], []>} : vector<16x32xbf16>, vector<32x32xbf16>, vector<16x32xf32> -> vector<16x32xf32>
    %c0_14 = arith.constant 0 : index
    %c0_15 = arith.constant 0 : index
    %c0_16 = arith.constant 0 : index
    %22 = vector.load %arg7[%c0_14, %c0_15, %c0_16] : memref<1x1x32xf32, #tpu.memory_space<vmem>>, vector<1x1x32xf32>
    %23 = vector.shape_cast %22 : vector<1x1x32xf32> to vector<1x32xf32>
    %24 = vector.broadcast %23 : vector<1x32xf32> to vector<16x32xf32>
    %25 = arith.addf %21, %24 : vector<16x32xf32>
    %26 = vector.extract_strided_slice %18 {offsets = [0, 0], sizes = [16, 32], strides = [1, 1]} : vector<16x64xf32> to vector<16x32xf32>
    %27 = vector.extract_strided_slice %18 {offsets = [0, 32], sizes = [16, 32], strides = [1, 1]} : vector<16x64xf32> to vector<16x32xf32>
    %28 = vector.shape_cast %26 : vector<16x32xf32> to vector<2x8x32xf32>
    %29 = arith.truncf %28 : vector<2x8x32xf32> to vector<2x8x32xbf16>
    %30 = vector.shape_cast %27 : vector<16x32xf32> to vector<2x8x32xf32>
    %31 = arith.truncf %30 : vector<2x8x32xf32> to vector<2x8x32xbf16>
    %32 = vector.shape_cast %25 : vector<16x32xf32> to vector<2x8x32xf32>
    %33 = arith.truncf %32 : vector<2x8x32xf32> to vector<2x8x32xbf16>
    %34 = vector.extract_strided_slice %29 {offsets = [0, 0, 0], sizes = [2, 8, 8], strides = [1, 1, 1]} : vector<2x8x32xbf16> to vector<2x8x8xbf16>
    %35 = vector.extract_strided_slice %31 {offsets = [0, 0, 0], sizes = [2, 8, 8], strides = [1, 1, 1]} : vector<2x8x32xbf16> to vector<2x8x8xbf16>
    "tpu.trace_start"() <{level = 10 : i32, message = "bqd,bkd->bqk"}> : () -> ()
    %cst_17 = arith.constant dense<0.000000e+00> : vector<2x8x8xf32>
    %36 = tpu.matmul %34, %35, %cst_17 {dimension_numbers = #tpu.dot_dimension_numbers<[2], [2], [1], [1], [0, 0, 0, 1, 1, 1], [0], [0]>} : vector<2x8x8xbf16>, vector<2x8x8xbf16>, vector<2x8x8xf32> -> vector<2x8x8xf32>
    "tpu.trace_stop"() : () -> ()
    %cst_18 = arith.constant dense<0xFF800000> : vector<2x8xf32>
    %37 = vector.multi_reduction <maximumf>, %36, %cst_18 [2] : vector<2x8x8xf32> to vector<2x8xf32>
    %38 = vector.shape_cast %37 : vector<2x8xf32> to vector<2x8x1xf32>
    %39 = vector.broadcast %38 : vector<2x8x1xf32> to vector<2x8x8xf32>
    %40 = arith.subf %36, %39 : vector<2x8x8xf32>
    %41 = math.exp %40 : vector<2x8x8xf32>
    %cst_19 = arith.constant dense<0.000000e+00> : vector<2x8xf32>
    %42 = vector.multi_reduction <add>, %41, %cst_19 [2] : vector<2x8x8xf32> to vector<2x8xf32>
    %43 = vector.shape_cast %42 : vector<2x8xf32> to vector<2x8x1xf32>
    %44 = tpu.reciprocal %43 {approx = true} : vector<2x8x1xf32> -> vector<2x8x1xf32>
    %45 = vector.broadcast %44 : vector<2x8x1xf32> to vector<2x8x8xf32>
    %46 = arith.mulf %41, %45 : vector<2x8x8xf32>
    %47 = arith.truncf %46 : vector<2x8x8xf32> to vector<2x8x8xbf16>
    %48 = vector.extract_strided_slice %33 {offsets = [0, 0, 0], sizes = [2, 8, 8], strides = [1, 1, 1]} : vector<2x8x32xbf16> to vector<2x8x8xbf16>
    "tpu.trace_start"() <{level = 10 : i32, message = "bqk,bkd->bqd"}> : () -> ()
    %cst_20 = arith.constant dense<0.000000e+00> : vector<2x8x8xf32>
    %49 = tpu.matmul %47, %48, %cst_20 {dimension_numbers = #tpu.dot_dimension_numbers<[2], [1], [1], [2], [0, 0, 0, 1, 1, 2], [0], [0]>} : vector<2x8x8xbf16>, vector<2x8x8xbf16>, vector<2x8x8xf32> -> vector<2x8x8xf32>
    "tpu.trace_stop"() : () -> ()
    %50 = vector.extract_strided_slice %29 {offsets = [0, 0, 8], sizes = [2, 8, 8], strides = [1, 1, 1]} : vector<2x8x32xbf16> to vector<2x8x8xbf16>
    %51 = vector.extract_strided_slice %31 {offsets = [0, 0, 8], sizes = [2, 8, 8], strides = [1, 1, 1]} : vector<2x8x32xbf16> to vector<2x8x8xbf16>
    "tpu.trace_start"() <{level = 10 : i32, message = "bqd,bkd->bqk"}> : () -> ()
    %cst_21 = arith.constant dense<0.000000e+00> : vector<2x8x8xf32>
    %52 = tpu.matmul %50, %51, %cst_21 {dimension_numbers = #tpu.dot_dimension_numbers<[2], [2], [1], [1], [0, 0, 0, 1, 1, 1], [0], [0]>} : vector<2x8x8xbf16>, vector<2x8x8xbf16>, vector<2x8x8xf32> -> vector<2x8x8xf32>
    "tpu.trace_stop"() : () -> ()
    %cst_22 = arith.constant dense<0xFF800000> : vector<2x8xf32>
    %53 = vector.multi_reduction <maximumf>, %52, %cst_22 [2] : vector<2x8x8xf32> to vector<2x8xf32>
    %54 = vector.shape_cast %53 : vector<2x8xf32> to vector<2x8x1xf32>
    %55 = vector.broadcast %54 : vector<2x8x1xf32> to vector<2x8x8xf32>
    %56 = arith.subf %52, %55 : vector<2x8x8xf32>
    %57 = math.exp %56 : vector<2x8x8xf32>
    %cst_23 = arith.constant dense<0.000000e+00> : vector<2x8xf32>
    %58 = vector.multi_reduction <add>, %57, %cst_23 [2] : vector<2x8x8xf32> to vector<2x8xf32>
    %59 = vector.shape_cast %58 : vector<2x8xf32> to vector<2x8x1xf32>
    %60 = tpu.reciprocal %59 {approx = true} : vector<2x8x1xf32> -> vector<2x8x1xf32>
    %61 = vector.broadcast %60 : vector<2x8x1xf32> to vector<2x8x8xf32>
    %62 = arith.mulf %57, %61 : vector<2x8x8xf32>
    %63 = arith.truncf %62 : vector<2x8x8xf32> to vector<2x8x8xbf16>
    %64 = vector.extract_strided_slice %33 {offsets = [0, 0, 8], sizes = [2, 8, 8], strides = [1, 1, 1]} : vector<2x8x32xbf16> to vector<2x8x8xbf16>
    "tpu.trace_start"() <{level = 10 : i32, message = "bqk,bkd->bqd"}> : () -> ()
    %cst_24 = arith.constant dense<0.000000e+00> : vector<2x8x8xf32>
    %65 = tpu.matmul %63, %64, %cst_24 {dimension_numbers = #tpu.dot_dimension_numbers<[2], [1], [1], [2], [0, 0, 0, 1, 1, 2], [0], [0]>} : vector<2x8x8xbf16>, vector<2x8x8xbf16>, vector<2x8x8xf32> -> vector<2x8x8xf32>
    "tpu.trace_stop"() : () -> ()
    %66 = vector.extract_strided_slice %29 {offsets = [0, 0, 16], sizes = [2, 8, 8], strides = [1, 1, 1]} : vector<2x8x32xbf16> to vector<2x8x8xbf16>
    %67 = vector.extract_strided_slice %31 {offsets = [0, 0, 16], sizes = [2, 8, 8], strides = [1, 1, 1]} : vector<2x8x32xbf16> to vector<2x8x8xbf16>
    "tpu.trace_start"() <{level = 10 : i32, message = "bqd,bkd->bqk"}> : () -> ()
    %cst_25 = arith.constant dense<0.000000e+00> : vector<2x8x8xf32>
    %68 = tpu.matmul %66, %67, %cst_25 {dimension_numbers = #tpu.dot_dimension_numbers<[2], [2], [1], [1], [0, 0, 0, 1, 1, 1], [0], [0]>} : vector<2x8x8xbf16>, vector<2x8x8xbf16>, vector<2x8x8xf32> -> vector<2x8x8xf32>
    "tpu.trace_stop"() : () -> ()
    %cst_26 = arith.constant dense<0xFF800000> : vector<2x8xf32>
    %69 = vector.multi_reduction <maximumf>, %68, %cst_26 [2] : vector<2x8x8xf32> to vector<2x8xf32>
    %70 = vector.shape_cast %69 : vector<2x8xf32> to vector<2x8x1xf32>
    %71 = vector.broadcast %70 : vector<2x8x1xf32> to vector<2x8x8xf32>
    %72 = arith.subf %68, %71 : vector<2x8x8xf32>
    %73 = math.exp %72 : vector<2x8x8xf32>
    %cst_27 = arith.constant dense<0.000000e+00> : vector<2x8xf32>
    %74 = vector.multi_reduction <add>, %73, %cst_27 [2] : vector<2x8x8xf32> to vector<2x8xf32>
    %75 = vector.shape_cast %74 : vector<2x8xf32> to vector<2x8x1xf32>
    %76 = tpu.reciprocal %75 {approx = true} : vector<2x8x1xf32> -> vector<2x8x1xf32>
    %77 = vector.broadcast %76 : vector<2x8x1xf32> to vector<2x8x8xf32>
    %78 = arith.mulf %73, %77 : vector<2x8x8xf32>
    %79 = arith.truncf %78 : vector<2x8x8xf32> to vector<2x8x8xbf16>
    %80 = vector.extract_strided_slice %33 {offsets = [0, 0, 16], sizes = [2, 8, 8], strides = [1, 1, 1]} : vector<2x8x32xbf16> to vector<2x8x8xbf16>
    "tpu.trace_start"() <{level = 10 : i32, message = "bqk,bkd->bqd"}> : () -> ()
    %cst_28 = arith.constant dense<0.000000e+00> : vector<2x8x8xf32>
    %81 = tpu.matmul %79, %80, %cst_28 {dimension_numbers = #tpu.dot_dimension_numbers<[2], [1], [1], [2], [0, 0, 0, 1, 1, 2], [0], [0]>} : vector<2x8x8xbf16>, vector<2x8x8xbf16>, vector<2x8x8xf32> -> vector<2x8x8xf32>
    "tpu.trace_stop"() : () -> ()
    %82 = vector.extract_strided_slice %29 {offsets = [0, 0, 24], sizes = [2, 8, 8], strides = [1, 1, 1]} : vector<2x8x32xbf16> to vector<2x8x8xbf16>
    %83 = vector.extract_strided_slice %31 {offsets = [0, 0, 24], sizes = [2, 8, 8], strides = [1, 1, 1]} : vector<2x8x32xbf16> to vector<2x8x8xbf16>
    "tpu.trace_start"() <{level = 10 : i32, message = "bqd,bkd->bqk"}> : () -> ()
    %cst_29 = arith.constant dense<0.000000e+00> : vector<2x8x8xf32>
    %84 = tpu.matmul %82, %83, %cst_29 {dimension_numbers = #tpu.dot_dimension_numbers<[2], [2], [1], [1], [0, 0, 0, 1, 1, 1], [0], [0]>} : vector<2x8x8xbf16>, vector<2x8x8xbf16>, vector<2x8x8xf32> -> vector<2x8x8xf32>
    "tpu.trace_stop"() : () -> ()
    %cst_30 = arith.constant dense<0xFF800000> : vector<2x8xf32>
    %85 = vector.multi_reduction <maximumf>, %84, %cst_30 [2] : vector<2x8x8xf32> to vector<2x8xf32>
    %86 = vector.shape_cast %85 : vector<2x8xf32> to vector<2x8x1xf32>
    %87 = vector.broadcast %86 : vector<2x8x1xf32> to vector<2x8x8xf32>
    %88 = arith.subf %84, %87 : vector<2x8x8xf32>
    %89 = math.exp %88 : vector<2x8x8xf32>
    %cst_31 = arith.constant dense<0.000000e+00> : vector<2x8xf32>
    %90 = vector.multi_reduction <add>, %89, %cst_31 [2] : vector<2x8x8xf32> to vector<2x8xf32>
    %91 = vector.shape_cast %90 : vector<2x8xf32> to vector<2x8x1xf32>
    %92 = tpu.reciprocal %91 {approx = true} : vector<2x8x1xf32> -> vector<2x8x1xf32>
    %93 = vector.broadcast %92 : vector<2x8x1xf32> to vector<2x8x8xf32>
    %94 = arith.mulf %89, %93 : vector<2x8x8xf32>
    %95 = arith.truncf %94 : vector<2x8x8xf32> to vector<2x8x8xbf16>
    %96 = vector.extract_strided_slice %33 {offsets = [0, 0, 24], sizes = [2, 8, 8], strides = [1, 1, 1]} : vector<2x8x32xbf16> to vector<2x8x8xbf16>
    "tpu.trace_start"() <{level = 10 : i32, message = "bqk,bkd->bqd"}> : () -> ()
    %cst_32 = arith.constant dense<0.000000e+00> : vector<2x8x8xf32>
    %97 = tpu.matmul %95, %96, %cst_32 {dimension_numbers = #tpu.dot_dimension_numbers<[2], [1], [1], [2], [0, 0, 0, 1, 1, 2], [0], [0]>} : vector<2x8x8xbf16>, vector<2x8x8xbf16>, vector<2x8x8xf32> -> vector<2x8x8xf32>
    "tpu.trace_stop"() : () -> ()
    %98 = tpu.concatenate %49, %65, %81, %97 in 2 : vector<2x8x8xf32>, vector<2x8x8xf32>, vector<2x8x8xf32>, vector<2x8x8xf32> -> vector<2x8x32xf32>
    %99 = vector.shape_cast %98 : vector<2x8x32xf32> to vector<16x32xf32>
    %100 = arith.truncf %99 : vector<16x32xf32> to vector<16x32xbf16>
    %c0_33 = arith.constant 0 : index
    %c0_34 = arith.constant 0 : index
    %c0_35 = arith.constant 0 : index
    %101 = vector.load %arg8[%c0_33, %c0_34, %c0_35] : memref<1x32x32xbf16, #tpu.memory_space<vmem>>, vector<1x32x32xbf16>
    %102 = vector.shape_cast %101 : vector<1x32x32xbf16> to vector<32x32xbf16>
    %cst_36 = arith.constant dense<0.000000e+00> : vector<16x32xf32>
    %103 = tpu.matmul %100, %102, %cst_36 {dimension_numbers = #tpu.dot_dimension_numbers<[1], [0], [0], [1], [0, 0, 1, 1], [], []>} : vector<16x32xbf16>, vector<32x32xbf16>, vector<16x32xf32> -> vector<16x32xf32>
    %c0_37 = arith.constant 0 : index
    %c0_38 = arith.constant 0 : index
    %c0_39 = arith.constant 0 : index
    %104 = vector.load %arg9[%c0_37, %c0_38, %c0_39] : memref<1x1x32xf32, #tpu.memory_space<vmem>>, vector<1x1x32xf32>
    %105 = vector.shape_cast %104 : vector<1x1x32xf32> to vector<1x32xf32>
    %106 = vector.broadcast %105 : vector<1x32xf32> to vector<16x32xf32>
    %107 = arith.addf %103, %106 : vector<16x32xf32>
    %c0_40 = arith.constant 0 : index
    %c0_41 = arith.constant 0 : index
    %c0_42 = arith.constant 0 : index
    %108 = vector.load %arg14[%c0_40, %c0_41, %c0_42] : memref<1x1x32xf32, #tpu.memory_space<vmem>>, vector<1x1x32xf32>
    %109 = vector.shape_cast %108 : vector<1x1x32xf32> to vector<1x32xf32>
    %c0_43 = arith.constant 0 : index
    %c0_44 = arith.constant 0 : index
    %c0_45 = arith.constant 0 : index
    %110 = vector.load %arg15[%c0_43, %c0_44, %c0_45] : memref<1x1x32xf32, #tpu.memory_space<vmem>>, vector<1x1x32xf32>
    %111 = vector.shape_cast %110 : vector<1x1x32xf32> to vector<1x32xf32>
    %112 = arith.addf %3, %107 : vector<16x32xf32>
    %cst_46 = arith.constant dense<0.000000e+00> : vector<16xf32>
    %113 = vector.multi_reduction <add>, %112, %cst_46 [1] : vector<16x32xf32> to vector<16xf32>
    %114 = vector.shape_cast %113 : vector<16xf32> to vector<16x1xf32>
    %cst_47 = arith.constant 3.200000e+01 : f32
    %115 = vector.broadcast %cst_47 : f32 to vector<16x1xf32>
    %116 = arith.divf %114, %115 : vector<16x1xf32>
    %117 = vector.broadcast %116 : vector<16x1xf32> to vector<16x32xf32>
    %118 = arith.subf %112, %117 : vector<16x32xf32>
    %119 = arith.mulf %118, %118 : vector<16x32xf32>
    %cst_48 = arith.constant dense<0.000000e+00> : vector<16xf32>
    %120 = vector.multi_reduction <add>, %119, %cst_48 [1] : vector<16x32xf32> to vector<16xf32>
    %121 = vector.shape_cast %120 : vector<16xf32> to vector<16x1xf32>
    %cst_49 = arith.constant 3.200000e+01 : f32
    %122 = vector.broadcast %cst_49 : f32 to vector<16x1xf32>
    %123 = arith.divf %121, %122 : vector<16x1xf32>
    %124 = vector.broadcast %116 : vector<16x1xf32> to vector<16x32xf32>
    %125 = arith.subf %112, %124 : vector<16x32xf32>
    %cst_50 = arith.constant 9.99999974E-6 : f32
    %126 = vector.broadcast %cst_50 : f32 to vector<16x1xf32>
    %127 = arith.addf %123, %126 : vector<16x1xf32>
    %128 = math.rsqrt %127 : vector<16x1xf32>
    %129 = vector.broadcast %128 : vector<16x1xf32> to vector<16x32xf32>
    %130 = arith.mulf %125, %129 : vector<16x32xf32>
    %131 = vector.broadcast %109 : vector<1x32xf32> to vector<16x32xf32>
    %132 = arith.mulf %130, %131 : vector<16x32xf32>
    %133 = vector.broadcast %111 : vector<1x32xf32> to vector<16x32xf32>
    %134 = arith.addf %132, %133 : vector<16x32xf32>
    %135 = arith.truncf %134 : vector<16x32xf32> to vector<16x32xbf16>
    %c0_51 = arith.constant 0 : index
    %c0_52 = arith.constant 0 : index
    %c0_53 = arith.constant 0 : index
    %136 = vector.load %arg10[%c0_51, %c0_52, %c0_53] : memref<1x32x64xbf16, #tpu.memory_space<vmem>>, vector<1x32x64xbf16>
    %137 = vector.shape_cast %136 : vector<1x32x64xbf16> to vector<32x64xbf16>
    %cst_54 = arith.constant dense<0.000000e+00> : vector<16x64xf32>
    %138 = tpu.matmul %135, %137, %cst_54 {dimension_numbers = #tpu.dot_dimension_numbers<[1], [0], [0], [1], [0, 0, 1, 1], [], []>} : vector<16x32xbf16>, vector<32x64xbf16>, vector<16x64xf32> -> vector<16x64xf32>
    %c0_55 = arith.constant 0 : index
    %c0_56 = arith.constant 0 : index
    %c0_57 = arith.constant 0 : index
    %139 = vector.load %arg11[%c0_55, %c0_56, %c0_57] : memref<1x1x64xf32, #tpu.memory_space<vmem>>, vector<1x1x64xf32>
    %140 = vector.shape_cast %139 : vector<1x1x64xf32> to vector<1x64xf32>
    %141 = vector.broadcast %140 : vector<1x64xf32> to vector<16x64xf32>
    %142 = arith.addf %138, %141 : vector<16x64xf32>
    %cst_58 = arith.constant 0.000000e+00 : f32
    %143 = vector.broadcast %cst_58 : f32 to vector<16x64xf32>
    %144 = arith.maximumf %142, %143 : vector<16x64xf32>
    %145 = arith.truncf %144 : vector<16x64xf32> to vector<16x64xbf16>
    %c0_59 = arith.constant 0 : index
    %c0_60 = arith.constant 0 : index
    %c0_61 = arith.constant 0 : index
    %146 = vector.load %arg12[%c0_59, %c0_60, %c0_61] : memref<1x64x32xbf16, #tpu.memory_space<vmem>>, vector<1x64x32xbf16>
    %147 = vector.shape_cast %146 : vector<1x64x32xbf16> to vector<64x32xbf16>
    %cst_62 = arith.constant dense<0.000000e+00> : vector<16x32xf32>
    %148 = tpu.matmul %145, %147, %cst_62 {dimension_numbers = #tpu.dot_dimension_numbers<[1], [0], [0], [1], [0, 0, 1, 1], [], []>} : vector<16x64xbf16>, vector<64x32xbf16>, vector<16x32xf32> -> vector<16x32xf32>
    %c0_63 = arith.constant 0 : index
    %c0_64 = arith.constant 0 : index
    %c0_65 = arith.constant 0 : index
    %149 = vector.load %arg13[%c0_63, %c0_64, %c0_65] : memref<1x1x32xf32, #tpu.memory_space<vmem>>, vector<1x1x32xf32>
    %150 = vector.shape_cast %149 : vector<1x1x32xf32> to vector<1x32xf32>
    %151 = vector.broadcast %150 : vector<1x32xf32> to vector<16x32xf32>
    %152 = arith.addf %148, %151 : vector<16x32xf32>
    %c0_66 = arith.constant 0 : index
    %c0_67 = arith.constant 0 : index
    %c0_68 = arith.constant 0 : index
    %153 = vector.load %arg16[%c0_66, %c0_67, %c0_68] : memref<1x1x32xf32, #tpu.memory_space<vmem>>, vector<1x1x32xf32>
    %154 = vector.shape_cast %153 : vector<1x1x32xf32> to vector<1x32xf32>
    %c0_69 = arith.constant 0 : index
    %c0_70 = arith.constant 0 : index
    %c0_71 = arith.constant 0 : index
    %155 = vector.load %arg17[%c0_69, %c0_70, %c0_71] : memref<1x1x32xf32, #tpu.memory_space<vmem>>, vector<1x1x32xf32>
    %156 = vector.shape_cast %155 : vector<1x1x32xf32> to vector<1x32xf32>
    %157 = arith.addf %134, %152 : vector<16x32xf32>
    %cst_72 = arith.constant dense<0.000000e+00> : vector<16xf32>
    %158 = vector.multi_reduction <add>, %157, %cst_72 [1] : vector<16x32xf32> to vector<16xf32>
    %159 = vector.shape_cast %158 : vector<16xf32> to vector<16x1xf32>
    %cst_73 = arith.constant 3.200000e+01 : f32
    %160 = vector.broadcast %cst_73 : f32 to vector<16x1xf32>
    %161 = arith.divf %159, %160 : vector<16x1xf32>
    %162 = vector.broadcast %161 : vector<16x1xf32> to vector<16x32xf32>
    %163 = arith.subf %157, %162 : vector<16x32xf32>
    %164 = arith.mulf %163, %163 : vector<16x32xf32>
    %cst_74 = arith.constant dense<0.000000e+00> : vector<16xf32>
    %165 = vector.multi_reduction <add>, %164, %cst_74 [1] : vector<16x32xf32> to vector<16xf32>
    %166 = vector.shape_cast %165 : vector<16xf32> to vector<16x1xf32>
    %cst_75 = arith.constant 3.200000e+01 : f32
    %167 = vector.broadcast %cst_75 : f32 to vector<16x1xf32>
    %168 = arith.divf %166, %167 : vector<16x1xf32>
    %169 = vector.broadcast %161 : vector<16x1xf32> to vector<16x32xf32>
    %170 = arith.subf %157, %169 : vector<16x32xf32>
    %cst_76 = arith.constant 9.99999974E-6 : f32
    %171 = vector.broadcast %cst_76 : f32 to vector<16x1xf32>
    %172 = arith.addf %168, %171 : vector<16x1xf32>
    %173 = math.rsqrt %172 : vector<16x1xf32>
    %174 = vector.broadcast %173 : vector<16x1xf32> to vector<16x32xf32>
    %175 = arith.mulf %170, %174 : vector<16x32xf32>
    %176 = vector.broadcast %154 : vector<1x32xf32> to vector<16x32xf32>
    %177 = arith.mulf %175, %176 : vector<16x32xf32>
    %178 = vector.broadcast %156 : vector<1x32xf32> to vector<16x32xf32>
    %179 = arith.addf %177, %178 : vector<16x32xf32>
    %c0_77 = arith.constant 0 : index
    %c0_78 = arith.constant 0 : index
    %180 = vector.load %arg19[%c0_77, %c0_78] : memref<16x32xf32, #tpu.memory_space<vmem>>, vector<16x32xf32>
    tpu.vector_store %arg19[%c0_77, %c0_78], %179 {strides = array<i32>} : memref<16x32xf32, #tpu.memory_space<vmem>>, vector<16x32xf32>,
    %c0_79 = arith.constant 0 : index
    %c0_80 = arith.constant 0 : index
    %181 = vector.load %arg18[%c0_79, %c0_80] : memref<16x32xf32, #tpu.memory_space<vmem>>, vector<16x32xf32>
    tpu.vector_store %arg18[%c0_79, %c0_80], %179 {strides = array<i32>} : memref<16x32xf32, #tpu.memory_space<vmem>>, vector<16x32xf32>,
    return
  }
  func.func @transform_0(%arg0: i32, %arg1: i32) -> (i32, i32) {
    %c0_i32 = arith.constant 0 : i32
    %c0_i32_0 = arith.constant 0 : i32
    return %arg0, %c0_i32 : i32, i32
  }
  func.func @transform_1(%arg0: i32, %arg1: i32) -> (i32, i32) {
    %c0_i32 = arith.constant 0 : i32
    %c0_i32_0 = arith.constant 0 : i32
    %c0_i32_1 = arith.constant 0 : i32
    return %c0_i32, %c0_i32_0 : i32, i32
  }
  func.func @transform_2(%arg0: i32, %arg1: i32) -> (i32, i32, i32) {
    %c0_i32 = arith.constant 0 : i32
    %c0_i32_0 = arith.constant 0 : i32
    %c0_i32_1 = arith.constant 0 : i32
    return %arg1, %c0_i32, %c0_i32_0 : i32, i32, i32
  }
  func.func @transform_3(%arg0: i32, %arg1: i32) -> (i32, i32, i32) {
    %c0_i32 = arith.constant 0 : i32
    %c0_i32_0 = arith.constant 0 : i32
    %c0_i32_1 = arith.constant 0 : i32
    return %arg1, %c0_i32, %c0_i32_0 : i32, i32, i32
  }
  func.func @transform_4(%arg0: i32, %arg1: i32) -> (i32, i32, i32) {
    %c0_i32 = arith.constant 0 : i32
    %c0_i32_0 = arith.constant 0 : i32
    %c0_i32_1 = arith.constant 0 : i32
    return %arg1, %c0_i32, %c0_i32_0 : i32, i32, i32
  }
  func.func @transform_5(%arg0: i32, %arg1: i32) -> (i32, i32, i32) {
    %c0_i32 = arith.constant 0 : i32
    %c0_i32_0 = arith.constant 0 : i32
    %c0_i32_1 = arith.constant 0 : i32
    return %arg1, %c0_i32, %c0_i32_0 : i32, i32, i32
  }
  func.func @transform_6(%arg0: i32, %arg1: i32) -> (i32, i32, i32) {
    %c0_i32 = arith.constant 0 : i32
    %c0_i32_0 = arith.constant 0 : i32
    %c0_i32_1 = arith.constant 0 : i32
    return %arg1, %c0_i32, %c0_i32_0 : i32, i32, i32
  }
  func.func @transform_7(%arg0: i32, %arg1: i32) -> (i32, i32, i32) {
    %c0_i32 = arith.constant 0 : i32
    %c0_i32_0 = arith.constant 0 : i32
    %c0_i32_1 = arith.constant 0 : i32
    return %arg1, %c0_i32, %c0_i32_0 : i32, i32, i32
  }
  func.func @transform_8(%arg0: i32, %arg1: i32) -> (i32, i32, i32) {
    %c0_i32 = arith.constant 0 : i32
    %c0_i32_0 = arith.constant 0 : i32
    %c0_i32_1 = arith.constant 0 : i32
    return %arg1, %c0_i32, %c0_i32_0 : i32, i32, i32
  }
  func.func @transform_9(%arg0: i32, %arg1: i32) -> (i32, i32, i32) {
    %c0_i32 = arith.constant 0 : i32
    %c0_i32_0 = arith.constant 0 : i32
    %c0_i32_1 = arith.constant 0 : i32
    return %arg1, %c0_i32, %c0_i32_0 : i32, i32, i32
  }
  func.func @transform_10(%arg0: i32, %arg1: i32) -> (i32, i32, i32) {
    %c0_i32 = arith.constant 0 : i32
    %c0_i32_0 = arith.constant 0 : i32
    %c0_i32_1 = arith.constant 0 : i32
    return %arg1, %c0_i32, %c0_i32_0 : i32, i32, i32
  }
  func.func @transform_11(%arg0: i32, %arg1: i32) -> (i32, i32, i32) {
    %c0_i32 = arith.constant 0 : i32
    %c0_i32_0 = arith.constant 0 : i32
    %c0_i32_1 = arith.constant 0 : i32
    return %arg1, %c0_i32, %c0_i32_0 : i32, i32, i32
  }
  func.func @transform_12(%arg0: i32, %arg1: i32) -> (i32, i32, i32) {
    %c0_i32 = arith.constant 0 : i32
    %c0_i32_0 = arith.constant 0 : i32
    %c0_i32_1 = arith.constant 0 : i32
    return %arg1, %c0_i32, %c0_i32_0 : i32, i32, i32
  }
  func.func @transform_13(%arg0: i32, %arg1: i32) -> (i32, i32, i32) {
    %c0_i32 = arith.constant 0 : i32
    %c0_i32_0 = arith.constant 0 : i32
    %c0_i32_1 = arith.constant 0 : i32
    return %arg1, %c0_i32, %c0_i32_0 : i32, i32, i32
  }
  func.func @transform_14(%arg0: i32, %arg1: i32) -> (i32, i32, i32) {
    %c0_i32 = arith.constant 0 : i32
    %c0_i32_0 = arith.constant 0 : i32
    %c0_i32_1 = arith.constant 0 : i32
    return %arg1, %c0_i32, %c0_i32_0 : i32, i32, i32
  }
  func.func @transform_15(%arg0: i32, %arg1: i32) -> (i32, i32, i32) {
    %c0_i32 = arith.constant 0 : i32
    %c0_i32_0 = arith.constant 0 : i32
    %c0_i32_1 = arith.constant 0 : i32
    return %arg1, %c0_i32, %c0_i32_0 : i32, i32, i32
  }
  func.func @transform_16(%arg0: i32, %arg1: i32) -> (i32, i32) {
    %c0_i32 = arith.constant 0 : i32
    %c0_i32_0 = arith.constant 0 : i32
    return %arg0, %c0_i32 : i32, i32
  }
}

</mosaic_0001>

<llo_original>
// kernel: transformer_forward.2
$region0: #{transformer_forward.2}
  #allocation0 [shape = 'u32[]', space=smem, size = 0x4, offset = 0x4, fixed_abs, tag = 'smem constant byte address 0x4 - core index']
  #allocation1 [shape = 'u32[72,128]{1,0:T(1,128)}', space=vmem, size = 0x9000, scoped, tag = 'internal scratch']
  #allocation2 [shape = 'f32[16,32]{1,0:T(8,128)}', space=vmem, size = 0x2000, scoped, tag = 'scratch operand']
  %s0 = inlined_call_operand.vmem [shape: f32[16,32], index: 0, kind: input, shape index: {}]
  %s1 = inlined_call_operand.vmem [shape: f32[8,32], index: 1, kind: input, shape index: {}]
  %s2 = inlined_call_operand.vmem [shape: bf16[2,32,64], index: 2, kind: input, shape index: {}]
  %s3 = inlined_call_operand.vmem [shape: f32[2,1,64], index: 3, kind: input, shape index: {}]
  %s4 = inlined_call_operand.vmem [shape: bf16[2,32,32], index: 4, kind: input, shape index: {}]
  %s5 = inlined_call_operand.vmem [shape: f32[2,1,32], index: 5, kind: input, shape index: {}]
  %s6 = inlined_call_operand.hbm [shape: bf16[2,32,32], index: 6, kind: input, shape index: {}]
  %s7 = inlined_call_operand.vmem [shape: f32[2,1,32], index: 7, kind: input, shape index: {}]
  %s8 = inlined_call_operand.hbm [shape: bf16[2,32,64], index: 8, kind: input, shape index: {}]
  %s9 = inlined_call_operand.vmem [shape: f32[2,1,64], index: 9, kind: input, shape index: {}]
  %s10 = inlined_call_operand.vmem [shape: bf16[2,64,32], index: 10, kind: input, shape index: {}]
  %s11 = inlined_call_operand.vmem [shape: f32[2,1,32], index: 11, kind: input, shape index: {}]
  %s12 = inlined_call_operand.vmem [shape: f32[2,1,32], index: 12, kind: input, shape index: {}]
  %s13 = inlined_call_operand.vmem [shape: f32[2,1,32], index: 13, kind: input, shape index: {}]
  %s14 = inlined_call_operand.vmem [shape: f32[2,1,32], index: 14, kind: input, shape index: {}]
  %s15 = inlined_call_operand.vmem [shape: f32[2,1,32], index: 15, kind: input, shape index: {}]
  %s16 = inlined_call_operand.vmem [shape: f32[16,32], index: 16, kind: output, shape index: {}]
  %s17 = sld [smem:[#allocation0]]
  $region109: #{transformer_forward.2} parent=0
    _
  %s19 = ssub.s32 1, %s17
  %s20 = scalar_select 0, %s19, %s17
  $region1: #{transformer_forward.2} parent=0
    #allocation3 [shape = 'u8[16384]{0}', space=vmem, size = 0x4000, scoped, tag = 'input window, operand 6']
    #allocation4 [shape = 's32[2]{0}', space=sflag, size = 0x8, scoped, tag = 'scoped memory for transformer_forward.2']
    #allocation5 [shape = 'u8[16384]{0}', space=vmem, size = 0x4000, scoped, tag = 'input window, operand 8']
    #allocation6 [shape = 's32[2]{0}', space=sflag, size = 0x8, scoped, tag = 'scoped memory for transformer_forward.2']
    %21 = vsyncpa [#allocation4], 0
    %s22 = scalar_lea.sflag [#allocation4], 1
    %23 = vsyncpa %s22, 0
    %24 = vsyncpa [#allocation6], 0
    %s25 = scalar_lea.sflag [#allocation6], 1
    %26 = vsyncpa %s25, 0
    loop: start=0, step=1, limit=4
    $region2: #{transformer_forward.2} parent=1 // loop_pre_header
      _
    $region3: #{transformer_forward.2} parent=1 // loop_header
      %s28 = sphi 0, %s32
      %p29 = scmp.ge.s32.totalorder %s28, 4
      %s35 = sphi 0, %s47
      %s36 = sphi 0, %s43
      %s37 = sphi 0, %s35
      %s38 = sphi 0, %s36
      %s39 = sphi 0, %s37
      %s40 = sphi 0, %s38
      %s50 = sphi 0, %s52
      %s53 = sphi 0, %s50
      %s54 = sphi 0, %s53
      %s70 = sphi 0, %s54
      %s74 = sphi 0, %s74
      %s76 = sphi 0, %s74
      %s77 = sphi 0, %s76
      %s91 = sphi 0, %s77
      %s97 = sphi 0, %s99
      %s100 = sphi 0, %s97
      %s101 = sphi 0, %s100
      %s117 = sphi 0, %s101
      %s123 = sphi 0, %s125
      %s126 = sphi 0, %s123
      %s127 = sphi 0, %s126
      %s143 = sphi 0, %s127
      %s149 = sphi 0, %s151
      %s152 = sphi 0, %s149
      %s153 = sphi 0, %s152
      %s169 = sphi 0, %s153
      %s175 = sphi 0, %s177
      %s178 = sphi 0, %s175
      %s179 = sphi 0, %s178
      %s195 = sphi 0, %s179
      %s201 = sphi 0, %s203
      %s204 = sphi 0, %s201
      %s205 = sphi 0, %s204
      %s221 = sphi 0, %s205
      %s227 = sphi 0, %s229
      %s230 = sphi 0, %s227
      %s231 = sphi 0, %s230
      %s247 = sphi 0, %s231
      %s253 = sphi 0, %s255
      %s256 = sphi 0, %s253
      %s257 = sphi 0, %s256
      %s273 = sphi 0, %s257
      %s279 = sphi 0, %s281
      %s282 = sphi 0, %s279
      %s283 = sphi 0, %s282
      %s299 = sphi 0, %s283
      %s305 = sphi 0, %s307
      %s308 = sphi 0, %s305
      %s309 = sphi 0, %s308
      %s325 = sphi 0, %s309
      %s331 = sphi 0, %s333
      %s334 = sphi 0, %s331
      %s335 = sphi 0, %s334
      %s351 = sphi 0, %s335
      %s357 = sphi 0, %s359
      %s360 = sphi 0, %s357
      %s361 = sphi 0, %s360
      %s377 = sphi 0, %s361
      %s383 = sphi 0, %s385
      %s386 = sphi 0, %s383
      %s387 = sphi 0, %s386
      %s403 = sphi 0, %s387
      %s409 = sphi 0, %s411
      %s412 = sphi 0, %s409
      %s413 = sphi 0, %s412
      %s429 = sphi 0, %s413
      %s435 = sphi 0, %s437
      %s438 = sphi 0, %s435
      %s439 = sphi 0, %s438
      %s455 = sphi 0, %s439
      %s461 = sphi 0, %s463
      %s464 = sphi 0, %s461
      %s465 = sphi 0, %s464
      %s481 = sphi 0, %s465
    $region4: #{transformer_forward.2} parent=1 // loop_header_branch
      %31 = sbr.rel (%p29) target = $region8
    $region5: #{transformer_forward.2} parent=1 // loop_body
      %s33 = ssub.s32 %s28, 1
      %s34 = ssub.s32 %s28, 2
      %s41 = sadd.s32 1, %s36
      %p42 = scmp.ge.s32.totalorder %s41, 2
      %s43 = scalar_select %p42, 0, %s41
      %s44 = sadd.s32 1, %s35
      %s45 = scalar_select %p42, %s44, %s35
      %p46 = scmp.ge.s32.totalorder %s45, 1
      %s47 = scalar_select %p46, 0, %s45
      %s48 = ssub.s32 %s35, %s47
      %p49 = scmp.eq.s32.totalorder %s48, 0
      %s51 = sadd.s32 %s50, 1
      %s52 = scalar_select %p49, %s50, %s51
      %p55 = pneg %p49
      %p56 = scmp.eq.s32.totalorder %s28, 1
      %p57 = por %p55, %p56
      %p58 = scmp.ne.s32.totalorder %s50, %s53
      %p59 = scmp.eq.s32.totalorder %s28, 0
      %p60 = por %p58, %p59
      %p61 = scmp.ne.s32.totalorder %s50, %s53
      %p62 = scmp.eq.s32.totalorder %s33, 1
      %p63 = por %p61, %p62
      %p64 = scmp.ne.s32.totalorder %s53, %s54
      %p65 = scmp.eq.s32.totalorder %s33, 0
      %p66 = por %p64, %p65
      %p67 = scmp.ne.s32.totalorder %s53, %s54
      %p68 = scmp.eq.s32.totalorder %s34, 1
      %p69 = por %p67, %p68
      %p71 = scmp.ne.s32.totalorder %s54, %s70
      %p72 = scmp.eq.s32.totalorder %s34, 0
      %p73 = por %p71, %p72
      %s75 = sadd.s32 %s74, 1
      %p78 = scmp.eq.s32.totalorder %s28, 1
      %p79 = scmp.ne.s32.totalorder %s74, %s76
      %p80 = scmp.eq.s32.totalorder %s28, 0
      %p81 = por %p79, %p80
      %p82 = scmp.ne.s32.totalorder %s74, %s76
      %p83 = scmp.eq.s32.totalorder %s33, 1
      %p84 = por %p82, %p83
      %p85 = scmp.ne.s32.totalorder %s76, %s77
      %p86 = scmp.eq.s32.totalorder %s33, 0
      %p87 = por %p85, %p86
      %p88 = scmp.ne.s32.totalorder %s76, %s77
      %p89 = scmp.eq.s32.totalorder %s34, 1
      %p90 = por %p88, %p89
      %p92 = scmp.ne.s32.totalorder %s77, %s91
      %p93 = scmp.eq.s32.totalorder %s34, 0
      %p94 = por %p92, %p93
      %s95 = ssub.s32 %s36, %s43
      %p96 = scmp.eq.s32.totalorder %s95, 0
      %s98 = sadd.s32 %s97, 1
      %s99 = scalar_select %p96, %s97, %s98
      %p102 = pneg %p96
      %p103 = scmp.eq.s32.totalorder %s28, 1
      %p104 = por %p102, %p103
      %p105 = scmp.ne.s32.totalorder %s97, %s100
      %p106 = scmp.eq.s32.totalorder %s28, 0
      %p107 = por %p105, %p106
      %p108 = scmp.ne.s32.totalorder %s97, %s100
      %p109 = scmp.eq.s32.totalorder %s33, 1
      %p110 = por %p108, %p109
      %p111 = scmp.ne.s32.totalorder %s100, %s101
      %p112 = scmp.eq.s32.totalorder %s33, 0
      %p113 = por %p111, %p112
      %p114 = scmp.ne.s32.totalorder %s100, %s101
      %p115 = scmp.eq.s32.totalorder %s34, 1
      %p116 = por %p114, %p115
      %p118 = scmp.ne.s32.totalorder %s101, %s117
      %p119 = scmp.eq.s32.totalorder %s34, 0
      %p120 = por %p118, %p119
      %s121 = ssub.s32 %s36, %s43
      %p122 = scmp.eq.s32.totalorder %s121, 0
      %s124 = sadd.s32 %s123, 1
      %s125 = scalar_select %p122, %s123, %s124
      %p128 = pneg %p122
      %p129 = scmp.eq.s32.totalorder %s28, 1
      %p130 = por %p128, %p129
      %p131 = scmp.ne.s32.totalorder %s123, %s126
      %p132 = scmp.eq.s32.totalorder %s28, 0
      %p133 = por %p131, %p132
      %p134 = scmp.ne.s32.totalorder %s123, %s126
      %p135 = scmp.eq.s32.totalorder %s33, 1
      %p136 = por %p134, %p135
      %p137 = scmp.ne.s32.totalorder %s126, %s127
      %p138 = scmp.eq.s32.totalorder %s33, 0
      %p139 = por %p137, %p138
      %p140 = scmp.ne.s32.totalorder %s126, %s127
      %p141 = scmp.eq.s32.totalorder %s34, 1
      %p142 = por %p140, %p141
      %p144 = scmp.ne.s32.totalorder %s127, %s143
      %p145 = scmp.eq.s32.totalorder %s34, 0
      %p146 = por %p144, %p145
      %s147 = ssub.s32 %s36, %s43
      %p148 = scmp.eq.s32.totalorder %s147, 0
      %s150 = sadd.s32 %s149, 1
      %s151 = scalar_select %p148, %s149, %s150
      %p154 = pneg %p148
      %p155 = scmp.eq.s32.totalorder %s28, 1
      %p156 = por %p154, %p155
      %p157 = scmp.ne.s32.totalorder %s149, %s152
      %p158 = scmp.eq.s32.totalorder %s28, 0
      %p159 = por %p157, %p158
      %p160 = scmp.ne.s32.totalorder %s149, %s152
      %p161 = scmp.eq.s32.totalorder %s33, 1
      %p162 = por %p160, %p161
      %p163 = scmp.ne.s32.totalorder %s152, %s153
      %p164 = scmp.eq.s32.totalorder %s33, 0
      %p165 = por %p163, %p164
      %p166 = scmp.ne.s32.totalorder %s152, %s153
      %p167 = scmp.eq.s32.totalorder %s34, 1
      %p168 = por %p166, %p167
      %p170 = scmp.ne.s32.totalorder %s153, %s169
      %p171 = scmp.eq.s32.totalorder %s34, 0
      %p172 = por %p170, %p171
      %s173 = ssub.s32 %s36, %s43
      %p174 = scmp.eq.s32.totalorder %s173, 0
      %s176 = sadd.s32 %s175, 1
      %s177 = scalar_select %p174, %s175, %s176
      %p180 = pneg %p174
      %p181 = scmp.eq.s32.totalorder %s28, 1
      %p182 = por %p180, %p181
      %p183 = scmp.ne.s32.totalorder %s175, %s178
      %p184 = scmp.eq.s32.totalorder %s28, 0
      %p185 = por %p183, %p184
      %p186 = scmp.ne.s32.totalorder %s175, %s178
      %p187 = scmp.eq.s32.totalorder %s33, 1
      %p188 = por %p186, %p187
      %p189 = scmp.ne.s32.totalorder %s178, %s179
      %p190 = scmp.eq.s32.totalorder %s33, 0
      %p191 = por %p189, %p190
      %p192 = scmp.ne.s32.totalorder %s178, %s179
      %p193 = scmp.eq.s32.totalorder %s34, 1
      %p194 = por %p192, %p193
      %p196 = scmp.ne.s32.totalorder %s179, %s195
      %p197 = scmp.eq.s32.totalorder %s34, 0
      %p198 = por %p196, %p197
      %s199 = ssub.s32 %s36, %s43
      %p200 = scmp.eq.s32.totalorder %s199, 0
      %s202 = sadd.s32 %s201, 1
      %s203 = scalar_select %p200, %s201, %s202
      %p206 = pneg %p200
      %p207 = scmp.eq.s32.totalorder %s28, 1
      %p208 = por %p206, %p207
      %p209 = scmp.ne.s32.totalorder %s201, %s204
      %p210 = scmp.eq.s32.totalorder %s28, 0
      %p211 = por %p209, %p210
      %p212 = scmp.ne.s32.totalorder %s201, %s204
      %p213 = scmp.eq.s32.totalorder %s33, 1
      %p214 = por %p212, %p213
      %p215 = scmp.ne.s32.totalorder %s204, %s205
      %p216 = scmp.eq.s32.totalorder %s33, 0
      %p217 = por %p215, %p216
      %p218 = scmp.ne.s32.totalorder %s204, %s205
      %p219 = scmp.eq.s32.totalorder %s34, 1
      %p220 = por %p218, %p219
      %p222 = scmp.ne.s32.totalorder %s205, %s221
      %p223 = scmp.eq.s32.totalorder %s34, 0
      %p224 = por %p222, %p223
      %s225 = ssub.s32 %s36, %s43
      %p226 = scmp.eq.s32.totalorder %s225, 0
      %s228 = sadd.s32 %s227, 1
      %s229 = scalar_select %p226, %s227, %s228
      %p232 = pneg %p226
      %p233 = scmp.eq.s32.totalorder %s28, 1
      %p234 = por %p232, %p233
      %p235 = scmp.ne.s32.totalorder %s227, %s230
      %p236 = scmp.eq.s32.totalorder %s28, 0
      %p237 = por %p235, %p236
      %p238 = scmp.ne.s32.totalorder %s227, %s230
      %p239 = scmp.eq.s32.totalorder %s33, 1
      %p240 = por %p238, %p239
      %p241 = scmp.ne.s32.totalorder %s230, %s231
      %p242 = scmp.eq.s32.totalorder %s33, 0
      %p243 = por %p241, %p242
      %p244 = scmp.ne.s32.totalorder %s230, %s231
      %p245 = scmp.eq.s32.totalorder %s34, 1
      %p246 = por %p244, %p245
      %p248 = scmp.ne.s32.totalorder %s231, %s247
      %p249 = scmp.eq.s32.totalorder %s34, 0
      %p250 = por %p248, %p249
      %s251 = ssub.s32 %s36, %s43
      %p252 = scmp.eq.s32.totalorder %s251, 0
      %s254 = sadd.s32 %s253, 1
      %s255 = scalar_select %p252, %s253, %s254
      %p258 = pneg %p252
      %p259 = scmp.eq.s32.totalorder %s28, 1
      %p260 = por %p258, %p259
      %p261 = scmp.ne.s32.totalorder %s253, %s256
      %p262 = scmp.eq.s32.totalorder %s28, 0
      %p263 = por %p261, %p262
      %p264 = scmp.ne.s32.totalorder %s253, %s256
      %p265 = scmp.eq.s32.totalorder %s33, 1
      %p266 = por %p264, %p265
      %p267 = scmp.ne.s32.totalorder %s256, %s257
      %p268 = scmp.eq.s32.totalorder %s33, 0
      %p269 = por %p267, %p268
      %p270 = scmp.ne.s32.totalorder %s256, %s257
      %p271 = scmp.eq.s32.totalorder %s34, 1
      %p272 = por %p270, %p271
      %p274 = scmp.ne.s32.totalorder %s257, %s273
      %p275 = scmp.eq.s32.totalorder %s34, 0
      %p276 = por %p274, %p275
      %s277 = ssub.s32 %s36, %s43
      %p278 = scmp.eq.s32.totalorder %s277, 0
      %s280 = sadd.s32 %s279, 1
      %s281 = scalar_select %p278, %s279, %s280
      %p284 = pneg %p278
      %p285 = scmp.eq.s32.totalorder %s28, 1
      %p286 = por %p284, %p285
      %p287 = scmp.ne.s32.totalorder %s279, %s282
      %p288 = scmp.eq.s32.totalorder %s28, 0
      %p289 = por %p287, %p288
      %p290 = scmp.ne.s32.totalorder %s279, %s282
      %p291 = scmp.eq.s32.totalorder %s33, 1
      %p292 = por %p290, %p291
      %p293 = scmp.ne.s32.totalorder %s282, %s283
      %p294 = scmp.eq.s32.totalorder %s33, 0
      %p295 = por %p293, %p294
      %p296 = scmp.ne.s32.totalorder %s282, %s283
      %p297 = scmp.eq.s32.totalorder %s34, 1
      %p298 = por %p296, %p297
      %p300 = scmp.ne.s32.totalorder %s283, %s299
      %p301 = scmp.eq.s32.totalorder %s34, 0
      %p302 = por %p300, %p301
      %s303 = ssub.s32 %s36, %s43
      %p304 = scmp.eq.s32.totalorder %s303, 0
      %s306 = sadd.s32 %s305, 1
      %s307 = scalar_select %p304, %s305, %s306
      %p310 = pneg %p304
      %p311 = scmp.eq.s32.totalorder %s28, 1
      %p312 = por %p310, %p311
      %p313 = scmp.ne.s32.totalorder %s305, %s308
      %p314 = scmp.eq.s32.totalorder %s28, 0
      %p315 = por %p313, %p314
      %p316 = scmp.ne.s32.totalorder %s305, %s308
      %p317 = scmp.eq.s32.totalorder %s33, 1
      %p318 = por %p316, %p317
      %p319 = scmp.ne.s32.totalorder %s308, %s309
      %p320 = scmp.eq.s32.totalorder %s33, 0
      %p321 = por %p319, %p320
      %p322 = scmp.ne.s32.totalorder %s308, %s309
      %p323 = scmp.eq.s32.totalorder %s34, 1
      %p324 = por %p322, %p323
      %p326 = scmp.ne.s32.totalorder %s309, %s325
      %p327 = scmp.eq.s32.totalorder %s34, 0
      %p328 = por %p326, %p327
      %s329 = ssub.s32 %s36, %s43
      %p330 = scmp.eq.s32.totalorder %s329, 0
      %s332 = sadd.s32 %s331, 1
      %s333 = scalar_select %p330, %s331, %s332
      %p336 = pneg %p330
      %p337 = scmp.eq.s32.totalorder %s28, 1
      %p338 = por %p336, %p337
      %p339 = scmp.ne.s32.totalorder %s331, %s334
      %p340 = scmp.eq.s32.totalorder %s28, 0
      %p341 = por %p339, %p340
      %p342 = scmp.ne.s32.totalorder %s331, %s334
      %p343 = scmp.eq.s32.totalorder %s33, 1
      %p344 = por %p342, %p343
      %p345 = scmp.ne.s32.totalorder %s334, %s335
      %p346 = scmp.eq.s32.totalorder %s33, 0
      %p347 = por %p345, %p346
      %p348 = scmp.ne.s32.totalorder %s334, %s335
      %p349 = scmp.eq.s32.totalorder %s34, 1
      %p350 = por %p348, %p349
      %p352 = scmp.ne.s32.totalorder %s335, %s351
      %p353 = scmp.eq.s32.totalorder %s34, 0
      %p354 = por %p352, %p353
      %s355 = ssub.s32 %s36, %s43
      %p356 = scmp.eq.s32.totalorder %s355, 0
      %s358 = sadd.s32 %s357, 1
      %s359 = scalar_select %p356, %s357, %s358
      %p362 = pneg %p356
      %p363 = scmp.eq.s32.totalorder %s28, 1
      %p364 = por %p362, %p363
      %p365 = scmp.ne.s32.totalorder %s357, %s360
      %p366 = scmp.eq.s32.totalorder %s28, 0
      %p367 = por %p365, %p366
      %p368 = scmp.ne.s32.totalorder %s357, %s360
      %p369 = scmp.eq.s32.totalorder %s33, 1
      %p370 = por %p368, %p369
      %p371 = scmp.ne.s32.totalorder %s360, %s361
      %p372 = scmp.eq.s32.totalorder %s33, 0
      %p373 = por %p371, %p372
      %p374 = scmp.ne.s32.totalorder %s360, %s361
      %p375 = scmp.eq.s32.totalorder %s34, 1
      %p376 = por %p374, %p375
      %p378 = scmp.ne.s32.totalorder %s361, %s377
      %p379 = scmp.eq.s32.totalorder %s34, 0
      %p380 = por %p378, %p379
      %s381 = ssub.s32 %s36, %s43
      %p382 = scmp.eq.s32.totalorder %s381, 0
      %s384 = sadd.s32 %s383, 1
      %s385 = scalar_select %p382, %s383, %s384
      %p388 = pneg %p382
      %p389 = scmp.eq.s32.totalorder %s28, 1
      %p390 = por %p388, %p389
      %p391 = scmp.ne.s32.totalorder %s383, %s386
      %p392 = scmp.eq.s32.totalorder %s28, 0
      %p393 = por %p391, %p392
      %p394 = scmp.ne.s32.totalorder %s383, %s386
      %p395 = scmp.eq.s32.totalorder %s33, 1
      %p396 = por %p394, %p395
      %p397 = scmp.ne.s32.totalorder %s386, %s387
      %p398 = scmp.eq.s32.totalorder %s33, 0
      %p399 = por %p397, %p398
      %p400 = scmp.ne.s32.totalorder %s386, %s387
      %p401 = scmp.eq.s32.totalorder %s34, 1
      %p402 = por %p400, %p401
      %p404 = scmp.ne.s32.totalorder %s387, %s403
      %p405 = scmp.eq.s32.totalorder %s34, 0
      %p406 = por %p404, %p405
      %s407 = ssub.s32 %s36, %s43
      %p408 = scmp.eq.s32.totalorder %s407, 0
      %s410 = sadd.s32 %s409, 1
      %s411 = scalar_select %p408, %s409, %s410
      %p414 = pneg %p408
      %p415 = scmp.eq.s32.totalorder %s28, 1
      %p416 = por %p414, %p415
      %p417 = scmp.ne.s32.totalorder %s409, %s412
      %p418 = scmp.eq.s32.totalorder %s28, 0
      %p419 = por %p417, %p418
      %p420 = scmp.ne.s32.totalorder %s409, %s412
      %p421 = scmp.eq.s32.totalorder %s33, 1
      %p422 = por %p420, %p421
      %p423 = scmp.ne.s32.totalorder %s412, %s413
      %p424 = scmp.eq.s32.totalorder %s33, 0
      %p425 = por %p423, %p424
      %p426 = scmp.ne.s32.totalorder %s412, %s413
      %p427 = scmp.eq.s32.totalorder %s34, 1
      %p428 = por %p426, %p427
      %p430 = scmp.ne.s32.totalorder %s413, %s429
      %p431 = scmp.eq.s32.totalorder %s34, 0
      %p432 = por %p430, %p431
      %s433 = ssub.s32 %s36, %s43
      %p434 = scmp.eq.s32.totalorder %s433, 0
      %s436 = sadd.s32 %s435, 1
      %s437 = scalar_select %p434, %s435, %s436
      %p440 = pneg %p434
      %p441 = scmp.eq.s32.totalorder %s28, 1
      %p442 = por %p440, %p441
      %p443 = scmp.ne.s32.totalorder %s435, %s438
      %p444 = scmp.eq.s32.totalorder %s28, 0
      %p445 = por %p443, %p444
      %p446 = scmp.ne.s32.totalorder %s435, %s438
      %p447 = scmp.eq.s32.totalorder %s33, 1
      %p448 = por %p446, %p447
      %p449 = scmp.ne.s32.totalorder %s438, %s439
      %p450 = scmp.eq.s32.totalorder %s33, 0
      %p451 = por %p449, %p450
      %p452 = scmp.ne.s32.totalorder %s438, %s439
      %p453 = scmp.eq.s32.totalorder %s34, 1
      %p454 = por %p452, %p453
      %p456 = scmp.ne.s32.totalorder %s439, %s455
      %p457 = scmp.eq.s32.totalorder %s34, 0
      %p458 = por %p456, %p457
      %s459 = ssub.s32 %s35, %s47
      %p460 = scmp.eq.s32.totalorder %s459, 0
      %s462 = sadd.s32 %s461, 1
      %s463 = scalar_select %p460, %s461, %s462
      %p466 = pneg %p460
      %p467 = scmp.eq.s32.totalorder %s28, 1
      %p468 = por %p466, %p467
      %p469 = scmp.ne.s32.totalorder %s461, %s464
      %p470 = scmp.eq.s32.totalorder %s28, 0
      %p471 = por %p469, %p470
      %p472 = scmp.ne.s32.totalorder %s461, %s464
      %p473 = scmp.eq.s32.totalorder %s33, 1
      %p474 = por %p472, %p473
      %p475 = scmp.ne.s32.totalorder %s464, %s465
      %p476 = scmp.eq.s32.totalorder %s33, 0
      %p477 = por %p475, %p476
      %p478 = scmp.ne.s32.totalorder %s464, %s465
      %p479 = scmp.eq.s32.totalorder %s34, 1
      %p480 = por %p478, %p479
      %p482 = scmp.ne.s32.totalorder %s465, %s481
      %p483 = scmp.eq.s32.totalorder %s34, 0
      %p484 = por %p482, %p483
      %p485 = scmp.le.s32.totalorder 1, %s28
      %p486 = scmp.lt.s32.totalorder %s28, 3
      %p487 = pnand %p485, %p486
      %p488 = pneg %p487
      // Predicated region
      $region9: #{transformer_forward.2} parent=5 // pred_check
        _
      $region10: #{transformer_forward.2} parent=5 // pred_check_branch
        %490 = sbr.rel (%p487) target = $region12
      $region11: #{transformer_forward.2} parent=5 // pred_region
        %s491 = ssub.s32 %s28, 1
        // Predicated region
        $region13: #{transformer_forward.2} parent=11 // pred_check
          %p492 = pneg %p66
        $region14: #{transformer_forward.2} parent=11 // pred_check_branch
          %494 = sbr.rel (%p492) target = $region16
        $region15: #{transformer_forward.2} parent=11 // pred_region
          %s495 = smul.u32 2, %s37
          %p496 = scmp.lt.s32.totalorder %s495, 1
          %s497 = scalar_select %p496, %s495, 1
          %s498 = smul.addr %s497, 8
          %s499 = scalar_lea.vmem %s0, %s498
          %s500 = smul.u32 2, %s37
        $region16: #{transformer_forward.2} parent=11 // pred_fallthru
          _
        // Predicated region
        $region17: #{transformer_forward.2} parent=11 // pred_check
          %p501 = pneg %p87
        $region18: #{transformer_forward.2} parent=11 // pred_check_branch
          %503 = sbr.rel (%p501) target = $region20
        $region19: #{transformer_forward.2} parent=11 // pred_region
          _
        $region20: #{transformer_forward.2} parent=11 // pred_fallthru
          _
      $region12: #{transformer_forward.2} parent=5 // pred_fallthru
        _
      %p504 = scmp.lt.s32.totalorder %s28, 2
      // Predicated region
      $region21: #{transformer_forward.2} parent=5 // pred_check
        %p505 = pneg %p504
      $region22: #{transformer_forward.2} parent=5 // pred_check_branch
        %507 = sbr.rel (%p505) target = $region24
      $region23: #{transformer_forward.2} parent=5 // pred_region
        // Predicated region
        $region25: #{transformer_forward.2} parent=23 // pred_check
          %p508 = pneg %p107
        $region26: #{transformer_forward.2} parent=23 // pred_check_branch
          %510 = sbr.rel (%p508) target = $region28
        $region27: #{transformer_forward.2} parent=23 // pred_region
          %p511 = scmp.lt.s32.totalorder %s36, 1
          %s512 = scalar_select %p511, %s36, 1
          %s513 = smul.addr %s512, 4
          %s514 = smul.addr %s513, 4
          %s515 = scalar_lea.vmem %s2, %s514
        $region28: #{transformer_forward.2} parent=23 // pred_fallthru
          _
        // Predicated region
        $region29: #{transformer_forward.2} parent=23 // pred_check
          %p516 = pneg %p133
        $region30: #{transformer_forward.2} parent=23 // pred_check_branch
          %518 = sbr.rel (%p516) target = $region32
        $region31: #{transformer_forward.2} parent=23 // pred_region
          %p519 = scmp.lt.s32.totalorder %s36, 1
          %s520 = scalar_select %p519, %s36, 1
          %s521 = scalar_lea.vmem %s3, %s520
        $region32: #{transformer_forward.2} parent=23 // pred_fallthru
          _
        // Predicated region
        $region33: #{transformer_forward.2} parent=23 // pred_check
          %p522 = pneg %p159
        $region34: #{transformer_forward.2} parent=23 // pred_check_branch
          %524 = sbr.rel (%p522) target = $region36
        $region35: #{transformer_forward.2} parent=23 // pred_region
          %p525 = scmp.lt.s32.totalorder %s36, 1
          %s526 = scalar_select %p525, %s36, 1
          %s527 = smul.addr %s526, 4
          %s528 = smul.addr %s527, 4
          %s529 = scalar_lea.vmem %s4, %s528
        $region36: #{transformer_forward.2} parent=23 // pred_fallthru
          _
        // Predicated region
        $region37: #{transformer_forward.2} parent=23 // pred_check
          %p530 = pneg %p185
        $region38: #{transformer_forward.2} parent=23 // pred_check_branch
          %532 = sbr.rel (%p530) target = $region40
        $region39: #{transformer_forward.2} parent=23 // pred_region
          %p533 = scmp.lt.s32.totalorder %s36, 1
          %s534 = scalar_select %p533, %s36, 1
          %s535 = scalar_lea.vmem %s5, %s534
        $region40: #{transformer_forward.2} parent=23 // pred_fallthru
          _
        // Predicated region
        $region41: #{transformer_forward.2} parent=23 // pred_check
          %p536 = pneg %p211
        $region42: #{transformer_forward.2} parent=23 // pred_check_branch
          %538 = sbr.rel (%p536) target = $region44
        $region43: #{transformer_forward.2} parent=23 // pred_region
          %s539 = sand.u32 %s201, 1
          %s540 = scalar_lea.sflag [#allocation4], %s539
          %s541 = sand.u32 %s201, 1
          %s542 = smul.addr %s541, 16
          %s543 = scalar_lea.vmem [#allocation3], %s542
          %545 = vsyncadd %s540, 0
          %s546 = smul.addr %s36, 4
          %s547 = smul.addr %s546, 4
          %s548 = scalar_lea.hbm %s6, %s547
          %s549 = sshll.u32 %s548, 4
          %s550 = int_to_ptr.hbm [resolvable:$true] %s549
          %s551 = sshll.u32 %s543, 4
          %s552 = int_to_ptr.vmem [resolvable:$true] %s551
          %557 = dma.hbm_to_vmem [thread:$0]  %s550, 256, %s552, %s540, 64, 64, 4
        $region44: #{transformer_forward.2} parent=23 // pred_fallthru
          _
        // Predicated region
        $region45: #{transformer_forward.2} parent=23 // pred_check
          %p558 = pneg %p237
        $region46: #{transformer_forward.2} parent=23 // pred_check_branch
          %560 = sbr.rel (%p558) target = $region48
        $region47: #{transformer_forward.2} parent=23 // pred_region
          %p561 = scmp.lt.s32.totalorder %s36, 1
          %s562 = scalar_select %p561, %s36, 1
          %s563 = scalar_lea.vmem %s7, %s562
        $region48: #{transformer_forward.2} parent=23 // pred_fallthru
          _
        // Predicated region
        $region49: #{transformer_forward.2} parent=23 // pred_check
          %p564 = pneg %p263
        $region50: #{transformer_forward.2} parent=23 // pred_check_branch
          %566 = sbr.rel (%p564) target = $region52
        $region51: #{transformer_forward.2} parent=23 // pred_region
          %s567 = sand.u32 %s253, 1
          %s568 = scalar_lea.sflag [#allocation6], %s567
          %s569 = sand.u32 %s253, 1
          %s570 = smul.addr %s569, 16
          %s571 = scalar_lea.vmem [#allocation5], %s570
          %573 = vsyncadd %s568, 0
          %s574 = smul.addr %s36, 4
          %s575 = smul.addr %s574, 4
          %s576 = scalar_lea.hbm %s8, %s575
          %s577 = sshll.u32 %s576, 4
          %s578 = int_to_ptr.hbm [resolvable:$true] %s577
          %s579 = sshll.u32 %s571, 4
          %s580 = int_to_ptr.vmem [resolvable:$true] %s579
          %585 = dma.hbm_to_vmem [thread:$0]  %s578, 256, %s580, %s568, 64, 64, 4
        $region52: #{transformer_forward.2} parent=23 // pred_fallthru
          _
        // Predicated region
        $region53: #{transformer_forward.2} parent=23 // pred_check
          %p586 = pneg %p289
        $region54: #{transformer_forward.2} parent=23 // pred_check_branch
          %588 = sbr.rel (%p586) target = $region56
        $region55: #{transformer_forward.2} parent=23 // pred_region
          %p589 = scmp.lt.s32.totalorder %s36, 1
          %s590 = scalar_select %p589, %s36, 1
          %s591 = scalar_lea.vmem %s9, %s590
        $region56: #{transformer_forward.2} parent=23 // pred_fallthru
          _
        // Predicated region
        $region57: #{transformer_forward.2} parent=23 // pred_check
          %p592 = pneg %p315
        $region58: #{transformer_forward.2} parent=23 // pred_check_branch
          %594 = sbr.rel (%p592) target = $region60
        $region59: #{transformer_forward.2} parent=23 // pred_region
          %p595 = scmp.lt.s32.totalorder %s36, 1
          %s596 = scalar_select %p595, %s36, 1
          %s597 = smul.addr %s596, 8
          %s598 = smul.addr %s597, 4
          %s599 = scalar_lea.vmem %s10, %s598
        $region60: #{transformer_forward.2} parent=23 // pred_fallthru
          _
        // Predicated region
        $region61: #{transformer_forward.2} parent=23 // pred_check
          %p600 = pneg %p341
        $region62: #{transformer_forward.2} parent=23 // pred_check_branch
          %602 = sbr.rel (%p600) target = $region64
        $region63: #{transformer_forward.2} parent=23 // pred_region
          %p603 = scmp.lt.s32.totalorder %s36, 1
          %s604 = scalar_select %p603, %s36, 1
          %s605 = scalar_lea.vmem %s11, %s604
        $region64: #{transformer_forward.2} parent=23 // pred_fallthru
          _
        // Predicated region
        $region65: #{transformer_forward.2} parent=23 // pred_check
          %p606 = pneg %p367
        $region66: #{transformer_forward.2} parent=23 // pred_check_branch
          %608 = sbr.rel (%p606) target = $region68
        $region67: #{transformer_forward.2} parent=23 // pred_region
          %p609 = scmp.lt.s32.totalorder %s36, 1
          %s610 = scalar_select %p609, %s36, 1
          %s611 = scalar_lea.vmem %s12, %s610
        $region68: #{transformer_forward.2} parent=23 // pred_fallthru
          _
        // Predicated region
        $region69: #{transformer_forward.2} parent=23 // pred_check
          %p612 = pneg %p393
        $region70: #{transformer_forward.2} parent=23 // pred_check_branch
          %614 = sbr.rel (%p612) target = $region72
        $region71: #{transformer_forward.2} parent=23 // pred_region
          %p615 = scmp.lt.s32.totalorder %s36, 1
          %s616 = scalar_select %p615, %s36, 1
          %s617 = scalar_lea.vmem %s13, %s616
        $region72: #{transformer_forward.2} parent=23 // pred_fallthru
          _
        // Predicated region
        $region73: #{transformer_forward.2} parent=23 // pred_check
          %p618 = pneg %p419
        $region74: #{transformer_forward.2} parent=23 // pred_check_branch
          %620 = sbr.rel (%p618) target = $region76
        $region75: #{transformer_forward.2} parent=23 // pred_region
          %p621 = scmp.lt.s32.totalorder %s36, 1
          %s622 = scalar_select %p621, %s36, 1
          %s623 = scalar_lea.vmem %s14, %s622
        $region76: #{transformer_forward.2} parent=23 // pred_fallthru
          _
        // Predicated region
        $region77: #{transformer_forward.2} parent=23 // pred_check
          %p624 = pneg %p445
        $region78: #{transformer_forward.2} parent=23 // pred_check_branch
          %626 = sbr.rel (%p624) target = $region80
        $region79: #{transformer_forward.2} parent=23 // pred_region
          %p627 = scmp.lt.s32.totalorder %s36, 1
          %s628 = scalar_select %p627, %s36, 1
          %s629 = scalar_lea.vmem %s15, %s628
        $region80: #{transformer_forward.2} parent=23 // pred_fallthru
          _
      $region24: #{transformer_forward.2} parent=5 // pred_fallthru
        _
      %p630 = scmp.le.s32.totalorder 1, %s28
      %p631 = scmp.lt.s32.totalorder %s28, 3
      %p632 = pnand %p630, %p631
      %p633 = pneg %p632
      // Predicated region
      $region81: #{transformer_forward.2} parent=5 // pred_check
        _
      $region82: #{transformer_forward.2} parent=5 // pred_check_branch
        %635 = sbr.rel (%p632) target = $region84
      $region83: #{transformer_forward.2} parent=5 // pred_region
        %s636 = ssub.s32 %s28, 1
        %s637 = sand.u32 %s204, 1
        %s638 = scalar_lea.sflag [#allocation4], %s637
        %s639 = sand.u32 %s204, 1
        %s640 = smul.addr %s639, 16
        %s641 = scalar_lea.vmem [#allocation3], %s640
        // Predicated region
        $region85: #{transformer_forward.2} parent=83 // pred_check
          %p642 = pneg %p217
        $region86: #{transformer_forward.2} parent=83 // pred_check_branch
          %644 = sbr.rel (%p642) target = $region88
        $region87: #{transformer_forward.2} parent=83 // pred_region
          %646 = dma.done %s638, 256
        $region88: #{transformer_forward.2} parent=83 // pred_fallthru
          _
        %s647 = sand.u32 %s256, 1
        %s648 = scalar_lea.sflag [#allocation6], %s647
        %s649 = sand.u32 %s256, 1
        %s650 = smul.addr %s649, 16
        %s651 = scalar_lea.vmem [#allocation5], %s650
        // Predicated region
        $region89: #{transformer_forward.2} parent=83 // pred_check
          %p652 = pneg %p269
        $region90: #{transformer_forward.2} parent=83 // pred_check_branch
          %654 = sbr.rel (%p652) target = $region92
        $region91: #{transformer_forward.2} parent=83 // pred_region
          %656 = dma.done %s648, 256
        $region92: #{transformer_forward.2} parent=83 // pred_fallthru
          _
        %s657 = smul.u32 2, %s37
        %p658 = scmp.lt.s32.totalorder %s657, 1
        %s659 = scalar_select %p658, %s657, 1
        %s660 = smul.addr %s659, 8
        %s661 = scalar_lea.vmem %s0, %s660
        %p662 = pneg %p66
        %p663 = pneg %p63
        %p664 = pneg %p87
        %p665 = pneg %p84
        %p666 = scmp.lt.s32.totalorder %s38, 1
        %s667 = scalar_select %p666, %s38, 1
        %s668 = smul.addr %s667, 4
        %s669 = smul.addr %s668, 4
        %s670 = scalar_lea.vmem %s2, %s669
        %p671 = pneg %p113
        %p672 = pneg %p110
        %p673 = scmp.lt.s32.totalorder %s38, 1
        %s674 = scalar_select %p673, %s38, 1
        %s675 = scalar_lea.vmem %s3, %s674
        %p676 = pneg %p139
        %p677 = pneg %p136
        %p678 = scmp.lt.s32.totalorder %s38, 1
        %s679 = scalar_select %p678, %s38, 1
        %s680 = smul.addr %s679, 4
        %s681 = smul.addr %s680, 4
        %s682 = scalar_lea.vmem %s4, %s681
        %p683 = pneg %p165
        %p684 = pneg %p162
        %p685 = scmp.lt.s32.totalorder %s38, 1
        %s686 = scalar_select %p685, %s38, 1
        %s687 = scalar_lea.vmem %s5, %s686
        %p688 = pneg %p191
        %p689 = pneg %p188
        %s690 = sand.u32 %s204, 1
        %s691 = scalar_lea.sflag [#allocation4], %s690
        %s692 = sand.u32 %s204, 1
        %s693 = smul.addr %s692, 16
        %s694 = scalar_lea.vmem [#allocation3], %s693
        %p695 = pneg %p217
        %p696 = pneg %p214
        %p697 = scmp.lt.s32.totalorder %s38, 1
        %s698 = scalar_select %p697, %s38, 1
        %s699 = scalar_lea.vmem %s7, %s698
        %p700 = pneg %p243
        %p701 = pneg %p240
        %s702 = sand.u32 %s256, 1
        %s703 = scalar_lea.sflag [#allocation6], %s702
        %s704 = sand.u32 %s256, 1
        %s705 = smul.addr %s704, 16
        %s706 = scalar_lea.vmem [#allocation5], %s705
        %p707 = pneg %p269
        %p708 = pneg %p266
        %p709 = scmp.lt.s32.totalorder %s38, 1
        %s710 = scalar_select %p709, %s38, 1
        %s711 = scalar_lea.vmem %s9, %s710
        %p712 = pneg %p295
        %p713 = pneg %p292
        %p714 = scmp.lt.s32.totalorder %s38, 1
        %s715 = scalar_select %p714, %s38, 1
        %s716 = smul.addr %s715, 8
        %s717 = smul.addr %s716, 4
        %s718 = scalar_lea.vmem %s10, %s717
        %p719 = pneg %p321
        %p720 = pneg %p318
        %p721 = scmp.lt.s32.totalorder %s38, 1
        %s722 = scalar_select %p721, %s38, 1
        %s723 = scalar_lea.vmem %s11, %s722
        %p724 = pneg %p347
        %p725 = pneg %p344
        %p726 = scmp.lt.s32.totalorder %s38, 1
        %s727 = scalar_select %p726, %s38, 1
        %s728 = scalar_lea.vmem %s12, %s727
        %p729 = pneg %p373
        %p730 = pneg %p370
        %p731 = scmp.lt.s32.totalorder %s38, 1
        %s732 = scalar_select %p731, %s38, 1
        %s733 = scalar_lea.vmem %s13, %s732
        %p734 = pneg %p399
        %p735 = pneg %p396
        %p736 = scmp.lt.s32.totalorder %s38, 1
        %s737 = scalar_select %p736, %s38, 1
        %s738 = scalar_lea.vmem %s14, %s737
        %p739 = pneg %p425
        %p740 = pneg %p422
        %p741 = scmp.lt.s32.totalorder %s38, 1
        %s742 = scalar_select %p741, %s38, 1
        %s743 = scalar_lea.vmem %s15, %s742
        %p744 = pneg %p451
        %p745 = pneg %p448
        %p746 = pneg %p477
        %p747 = pneg %p474
        %s748 = smul.u32 2, %s37
        %p749 = scmp.lt.s32.totalorder %s748, 1
        %s750 = scalar_select %p749, %s748, 1
        %s751 = smul.addr %s750, 8
        %s752 = scalar_lea.vmem %s16, %s751
        %s753 = smul.u32 2, %s37
        %p754 = scmp.lt.s32.totalorder %s753, 1
        %s755 = scalar_select %p754, %s753, 1
        %s756 = smul.addr %s755, 8
        %s757 = scalar_lea.vmem %s0, %s756
        %s758 = smul.u32 2, %s37
        %p759 = scmp.lt.s32.totalorder %s38, 1
        %s760 = scalar_select %p759, %s38, 1
        %s761 = smul.addr %s760, 4
        %s762 = smul.addr %s761, 4
        %s763 = scalar_lea.vmem %s2, %s762
        %p764 = scmp.lt.s32.totalorder %s38, 1
        %s765 = scalar_select %p764, %s38, 1
        %s766 = scalar_lea.vmem %s3, %s765
        %p767 = scmp.lt.s32.totalorder %s38, 1
        %s768 = scalar_select %p767, %s38, 1
        %s769 = smul.addr %s768, 4
        %s770 = smul.addr %s769, 4
        %s771 = scalar_lea.vmem %s4, %s770
        %p772 = scmp.lt.s32.totalorder %s38, 1
        %s773 = scalar_select %p772, %s38, 1
        %s774 = scalar_lea.vmem %s5, %s773
        %p775 = scmp.lt.s32.totalorder %s38, 1
        %s776 = scalar_select %p775, %s38, 1
        %s777 = scalar_lea.vmem %s7, %s776
        %p778 = scmp.lt.s32.totalorder %s38, 1
        %s779 = scalar_select %p778, %s38, 1
        %s780 = scalar_lea.vmem %s9, %s779
        %p781 = scmp.lt.s32.totalorder %s38, 1
        %s782 = scalar_select %p781, %s38, 1
        %s783 = smul.addr %s782, 8
        %s784 = smul.addr %s783, 4
        %s785 = scalar_lea.vmem %s10, %s784
        %p786 = scmp.lt.s32.totalorder %s38, 1
        %s787 = scalar_select %p786, %s38, 1
        %s788 = scalar_lea.vmem %s11, %s787
        %p789 = scmp.lt.s32.totalorder %s38, 1
        %s790 = scalar_select %p789, %s38, 1
        %s791 = scalar_lea.vmem %s12, %s790
        %p792 = scmp.lt.s32.totalorder %s38, 1
        %s793 = scalar_select %p792, %s38, 1
        %s794 = scalar_lea.vmem %s13, %s793
        %p795 = scmp.lt.s32.totalorder %s38, 1
        %s796 = scalar_select %p795, %s38, 1
        %s797 = scalar_lea.vmem %s14, %s796
        %p798 = scmp.lt.s32.totalorder %s38, 1
        %s799 = scalar_select %p798, %s38, 1
        %s800 = scalar_lea.vmem %s15, %s799
        %s801 = smul.u32 2, %s37
        %p802 = scmp.lt.s32.totalorder %s801, 1
        %s803 = scalar_select %p802, %s801, 1
        %s804 = smul.addr %s803, 8
        %s805 = scalar_lea.vmem %s16, %s804
        %s806 = smul.u32 2, %s37
        %p808 = scmp.eq.s32.totalorder %s38, 0
        // Predicated region
        $region93: #{transformer_forward.2} parent=83 // pred_check
          %p809 = pneg %p808
        $region94: #{transformer_forward.2} parent=83 // pred_check_branch
          %811 = sbr.rel (%p809) target = $region96
        $region95: #{transformer_forward.2} parent=83 // pred_region
          %v812 = vld [vmem:[%s757] sm:$0xff]
          %v813 = vld [vmem:[%s757 + $0x8] sm:$0xff]
          %vm814 = vcmask 261120
          %815 = vst.msk [vmem:[#allocation2] sm:$0xff] %vm814, %v812
          %816 = vst.msk [vmem:[#allocation2 + $0x8] sm:$0xff] %vm814, %v813
        $region96: #{transformer_forward.2} parent=83 // pred_fallthru
          _
        %v817 = vld [vmem:[#allocation2] sm:$0xff]
        %v818 = vld [vmem:[#allocation2 + $0x8] sm:$0xff]
        %v819 = vld [vmem:[%s1] sm:$0xff]
        %v820 = vadd.f32 %v817, %v819
        %v821 = vadd.f32 %v818, %v819
        %v822 = vpack.c.bf16 %v821, %v820
        %v823 = vpack.c.bf16 %v818, %v817
        %v824 = vld [vmem:[%s763] sm:$0xf]
        %v825 = vld [vmem:[%s763 + $0x4] sm:$0xf]
        %v826 = vld [vmem:[%s763 + $0x8] sm:$0xf]
        %v827 = vld [vmem:[%s763 + $0xc] sm:$0xf]
        %v828 = vld [vmem:[%s766] sm:$0x1]
        %v830 = vperm.slane %v828, 0
        %v836 = vunpack.c.l.b16 %v824
        %v837 = vunpack.c.l.b16 %v825
        %v838 = vunpack.c.l.b16 %v826
        %v839 = vunpack.c.l.b16 %v827
        %v840 = vpack.c.b16 %v837, %v836
        %v841 = vpack.c.b16 %v839, %v838
        %vm844 = vcmask 261120
        %v846 = vsel %vm844, %v822, 0
        %848 = vmatpush.bf16.msra.mxu0 0
        %849 = vmatpush.bf16.msra.mxu0 0
        %850 = vmatpush.bf16.msra.mxu0 0
        %851 = vmatpush.bf16.msra.mxu0 0
        %852 = vmatpush.bf16.msra.mxu0 0
        %853 = vmatpush.bf16.msra.mxu0 0
        %854 = vmatpush.bf16.msra.mxu0 %v841
        %855 = vmatpush.bf16.msra.mxu0 %v840
        %856 = vmatmul.bf16.gmra.mxu0 %v846
        %v857 = vpop.f32.mrf.mxu0
        %v858 = vadd.f32 %v830, %v857
        %v859 = vpop.f32.mrf.mxu0
        %v860 = vadd.f32 %v830, %v859
        %861 = vdwg.mxu0
        %v862 = vld [vmem:[%s771] sm:$0xf]
        %v863 = vld [vmem:[%s771 + $0x4] sm:$0xf]
        %v864 = vld [vmem:[%s771 + $0x8] sm:$0xf]
        %v865 = vld [vmem:[%s771 + $0xc] sm:$0xf]
        %v866 = vld [vmem:[%s774] sm:$0x1]
        %v868 = vperm.slane %v866, 0
        %v874 = vunpack.c.l.b16 %v862
        %v875 = vunpack.c.l.b16 %v863
        %v876 = vunpack.c.l.b16 %v864
        %v877 = vunpack.c.l.b16 %v865
        %v878 = vpack.c.b16 %v875, %v874
        %v879 = vpack.c.b16 %v877, %v876
        %v883 = vsel %vm844, %v823, 0
        %885 = vmatpush.bf16.msra.mxu0 0
        %886 = vmatpush.bf16.msra.mxu0 0
        %887 = vmatpush.bf16.msra.mxu0 0
        %888 = vmatpush.bf16.msra.mxu0 0
        %889 = vmatpush.bf16.msra.mxu0 0
        %890 = vmatpush.bf16.msra.mxu0 0
        %891 = vmatpush.bf16.msra.mxu0 %v879
        %892 = vmatpush.bf16.msra.mxu0 %v878
        %893 = vmatmul.bf16.gmra.mxu0 %v883
        %v894 = vpop.f32.mrf.mxu0
        %v895 = vadd.f32 %v868, %v894
        %v896 = vpop.f32.mrf.mxu0
        %v897 = vadd.f32 %v868, %v896
        %898 = vdwg.mxu0
        %v899 = vpack.c.bf16 %v858, %v858
        %v900 = vpack.c.bf16 %v860, %v860
        %v901 = vpack.c.bf16 %v895, %v895
        %v902 = vpack.c.bf16 %v897, %v897
        %v904 = vunpack.c.l.b16 %v899
        %v905 = vpack.c.b16 %v904, %v904
        %906 = vrot.lane.b32.xlu0 %v905, 96
        %v907 = vpop.permute.xlu0 %906
        %vm908 = vcmask 64512
        %v910 = vsel %vm908, %v899, 0
        %v913 = vsel %vm908, %v907, 0
        %915 = vmatpush.bf16.xpose.msra.mxu0 0
        %916 = vmatpush.bf16.xpose.msra.mxu0 0
        %917 = vmatpush.bf16.xpose.msra.mxu0 0
        %918 = vmatpush.bf16.xpose.msra.mxu0 0
        %919 = vmatpush.bf16.xpose.msra.mxu0 0
        %920 = vmatpush.bf16.xpose.msra.mxu0 0
        %921 = vmatpush.bf16.xpose.msra.mxu0 0
        %922 = vmatpush.bf16.xpose.msra.mxu0 %v913
        %923 = vmatmul.bf16.gmra.mxu0 %v910
        %v924 = vpop.f32.mrf.mxu0
        %v925 = vadd.f32 0.0, %v924
        %v926 = vpop.f32.mrf.mxu0
        %927 = vdwg.mxu0
        %v929 = vunpack.c.l.b16 %v900
        %v930 = vpack.c.b16 %v929, %v929
        %931 = vrot.lane.b32.xlu0 %v930, 96
        %v932 = vpop.permute.xlu0 %931
        %v934 = vsel %vm908, %v900, 0
        %v937 = vsel %vm908, %v932, 0
        %939 = vmatpush.bf16.xpose.msra.mxu0 0
        %940 = vmatpush.bf16.xpose.msra.mxu0 0
        %941 = vmatpush.bf16.xpose.msra.mxu0 0
        %942 = vmatpush.bf16.xpose.msra.mxu0 0
        %943 = vmatpush.bf16.xpose.msra.mxu0 0
        %944 = vmatpush.bf16.xpose.msra.mxu0 0
        %945 = vmatpush.bf16.xpose.msra.mxu0 0
        %946 = vmatpush.bf16.xpose.msra.mxu0 %v937
        %947 = vmatmul.bf16.gmra.mxu0 %v934
        %v948 = vpop.f32.mrf.mxu0
        %v949 = vadd.f32 0.0, %v948
        %v950 = vpop.f32.mrf.mxu0
        %951 = vdwg.mxu0
        %v952 = vsel %vm908, %v925, -inf
        %953 = vmax.xlane.f32.xlu0 %v952
        %v954 = vpop.xlane.xlu0 %953
        %v955 = vsel %vm908, %v949, -inf
        %956 = vmax.xlane.f32.xlu0 %v955
        %v957 = vpop.xlane.xlu0 %956
        %v958 = vsub.f32 %v925, %v954
        %v959 = vsub.f32 %v949, %v957
        %v960 = vmul.f32 %v958, 1.442695
        %v961 = vpow.pop %v960
        %v962 = vmul.f32 %v959, 1.442695
        %v963 = vpow.pop %v962
        %v964 = vsel %vm908, %v961, 0.0
        %965 = vadd.xlane.f32.xlu0 %v964
        %v966 = vpop.xlane.xlu0 %965
        %v967 = vsel %vm908, %v963, 0.0
        %968 = vadd.xlane.f32.xlu0 %v967
        %v969 = vpop.xlane.xlu0 %968
        %v970 = vrcp.pop %v966
        %v971 = vrcp.pop %v969
        %v972 = vmul.f32 %v961, %v970
        %v973 = vmul.f32 %v963, %v971
        %v974 = vpack.c.bf16 %v972, %v972
        %v975 = vpack.c.bf16 %v973, %v973
        %v977 = vsel %vm908, %v974, 0
        %vm979 = vcmask 1043456
        %v981 = vsel %vm979, %v901, 0
        %983 = vmatpush.bf16.msra.mxu0 0
        %984 = vmatpush.bf16.msra.mxu0 0
        %985 = vmatpush.bf16.msra.mxu0 0
        %986 = vmatpush.bf16.msra.mxu0 0
        %987 = vmatpush.bf16.msra.mxu0 0
        %988 = vmatpush.bf16.msra.mxu0 0
        %989 = vmatpush.bf16.msra.mxu0 0
        %990 = vmatpush.bf16.msra.mxu0 %v981
        %991 = vmatmul.bf16.gmra.mxu0 %v977
        %v992 = vpop.f32.mrf.mxu0
        %v993 = vadd.f32 0.0, %v992
        %v994 = vpop.f32.mrf.mxu0
        %995 = vdwg.mxu0
        %v997 = vsel %vm908, %v975, 0
        %v1000 = vsel %vm979, %v902, 0
        %1002 = vmatpush.bf16.msra.mxu0 0
        %1003 = vmatpush.bf16.msra.mxu0 0
        %1004 = vmatpush.bf16.msra.mxu0 0
        %1005 = vmatpush.bf16.msra.mxu0 0
        %1006 = vmatpush.bf16.msra.mxu0 0
        %1007 = vmatpush.bf16.msra.mxu0 0
        %1008 = vmatpush.bf16.msra.mxu0 0
        %1009 = vmatpush.bf16.msra.mxu0 %v1000
        %1010 = vmatmul.bf16.gmra.mxu0 %v997
        %v1011 = vpop.f32.mrf.mxu0
        %v1012 = vadd.f32 0.0, %v1011
        %v1013 = vpop.f32.mrf.mxu0
        %1014 = vdwg.mxu0
        %1015 = vrot.lane.b32.xlu0 %v905, 120
        %v1016 = vpop.permute.xlu0 %1015
        %1017 = vrot.lane.b32.xlu0 %v905, 88
        %v1018 = vpop.permute.xlu0 %1017
        %v1020 = vsel %vm908, %v1016, 0
        %v1023 = vsel %vm908, %v1018, 0
        %1025 = vmatpush.bf16.xpose.msra.mxu0 0
        %1026 = vmatpush.bf16.xpose.msra.mxu0 0
        %1027 = vmatpush.bf16.xpose.msra.mxu0 0
        %1028 = vmatpush.bf16.xpose.msra.mxu0 0
        %1029 = vmatpush.bf16.xpose.msra.mxu0 0
        %1030 = vmatpush.bf16.xpose.msra.mxu0 0
        %1031 = vmatpush.bf16.xpose.msra.mxu0 0
        %1032 = vmatpush.bf16.xpose.msra.mxu0 %v1023
        %1033 = vmatmul.bf16.gmra.mxu0 %v1020
        %v1034 = vpop.f32.mrf.mxu0
        %v1035 = vadd.f32 0.0, %v1034
        %v1036 = vpop.f32.mrf.mxu0
        %1037 = vdwg.mxu0
        %1038 = vrot.lane.b32.xlu0 %v930, 120
        %v1039 = vpop.permute.xlu0 %1038
        %1040 = vrot.lane.b32.xlu0 %v930, 88
        %v1041 = vpop.permute.xlu0 %1040
        %v1043 = vsel %vm908, %v1039, 0
        %v1046 = vsel %vm908, %v1041, 0
        %1048 = vmatpush.bf16.xpose.msra.mxu0 0
        %1049 = vmatpush.bf16.xpose.msra.mxu0 0
        %1050 = vmatpush.bf16.xpose.msra.mxu0 0
        %1051 = vmatpush.bf16.xpose.msra.mxu0 0
        %1052 = vmatpush.bf16.xpose.msra.mxu0 0
        %1053 = vmatpush.bf16.xpose.msra.mxu0 0
        %1054 = vmatpush.bf16.xpose.msra.mxu0 0
        %1055 = vmatpush.bf16.xpose.msra.mxu0 %v1046
        %1056 = vmatmul.bf16.gmra.mxu0 %v1043
        %v1057 = vpop.f32.mrf.mxu0
        %v1058 = vadd.f32 0.0, %v1057
        %v1059 = vpop.f32.mrf.mxu0
        %1060 = vdwg.mxu0
        %v1061 = vsel %vm908, %v1035, -inf
        %1062 = vmax.xlane.f32.xlu0 %v1061
        %v1063 = vpop.xlane.xlu0 %1062
        %v1064 = vsel %vm908, %v1058, -inf
        %1065 = vmax.xlane.f32.xlu0 %v1064
        %v1066 = vpop.xlane.xlu0 %1065
        %v1067 = vsub.f32 %v1035, %v1063
        %v1068 = vsub.f32 %v1058, %v1066
        %v1069 = vmul.f32 %v1067, 1.442695
        %v1070 = vpow.pop %v1069
        %v1071 = vmul.f32 %v1068, 1.442695
        %v1072 = vpow.pop %v1071
        %v1073 = vsel %vm908, %v1070, 0.0
        %1074 = vadd.xlane.f32.xlu0 %v1073
        %v1075 = vpop.xlane.xlu0 %1074
        %v1076 = vsel %vm908, %v1072, 0.0
        %1077 = vadd.xlane.f32.xlu0 %v1076
        %v1078 = vpop.xlane.xlu0 %1077
        %v1079 = vrcp.pop %v1075
        %v1080 = vrcp.pop %v1078
        %v1081 = vmul.f32 %v1070, %v1079
        %v1082 = vmul.f32 %v1072, %v1080
        %v1083 = vpack.c.bf16 %v1081, %v1081
        %v1084 = vpack.c.bf16 %v1082, %v1082
        %v1086 = vunpack.c.l.b16 %v901
        %v1087 = vpack.c.b16 %v1086, %v1086
        %1088 = vrot.lane.b32.xlu0 %v1087, 120
        %v1089 = vpop.permute.xlu0 %1088
        %v1091 = vsel %vm908, %v1083, 0
        %v1094 = vsel %vm979, %v1089, 0
        %1096 = vmatpush.bf16.msra.mxu0 0
        %1097 = vmatpush.bf16.msra.mxu0 0
        %1098 = vmatpush.bf16.msra.mxu0 0
        %1099 = vmatpush.bf16.msra.mxu0 0
        %1100 = vmatpush.bf16.msra.mxu0 0
        %1101 = vmatpush.bf16.msra.mxu0 0
        %1102 = vmatpush.bf16.msra.mxu0 0
        %1103 = vmatpush.bf16.msra.mxu0 %v1094
        %1104 = vmatmul.bf16.gmra.mxu0 %v1091
        %v1105 = vpop.f32.mrf.mxu0
        %v1106 = vadd.f32 0.0, %v1105
        %v1107 = vpop.f32.mrf.mxu0
        %1108 = vdwg.mxu0
        %v1110 = vunpack.c.l.b16 %v902
        %v1111 = vpack.c.b16 %v1110, %v1110
        %1112 = vrot.lane.b32.xlu0 %v1111, 120
        %v1113 = vpop.permute.xlu0 %1112
        %v1115 = vsel %vm908, %v1084, 0
        %v1118 = vsel %vm979, %v1113, 0
        %1120 = vmatpush.bf16.msra.mxu0 0
        %1121 = vmatpush.bf16.msra.mxu0 0
        %1122 = vmatpush.bf16.msra.mxu0 0
        %1123 = vmatpush.bf16.msra.mxu0 0
        %1124 = vmatpush.bf16.msra.mxu0 0
        %1125 = vmatpush.bf16.msra.mxu0 0
        %1126 = vmatpush.bf16.msra.mxu0 0
        %1127 = vmatpush.bf16.msra.mxu0 %v1118
        %1128 = vmatmul.bf16.gmra.mxu0 %v1115
        %v1129 = vpop.f32.mrf.mxu0
        %v1130 = vadd.f32 0.0, %v1129
        %v1131 = vpop.f32.mrf.mxu0
        %1132 = vdwg.mxu0
        %1133 = vrot.lane.b32.xlu0 %v905, 112
        %v1134 = vpop.permute.xlu0 %1133
        %1135 = vrot.lane.b32.xlu0 %v905, 80
        %v1136 = vpop.permute.xlu0 %1135
        %v1138 = vsel %vm908, %v1134, 0
        %v1141 = vsel %vm908, %v1136, 0
        %1143 = vmatpush.bf16.xpose.msra.mxu0 0
        %1144 = vmatpush.bf16.xpose.msra.mxu0 0
        %1145 = vmatpush.bf16.xpose.msra.mxu0 0
        %1146 = vmatpush.bf16.xpose.msra.mxu0 0
        %1147 = vmatpush.bf16.xpose.msra.mxu0 0
        %1148 = vmatpush.bf16.xpose.msra.mxu0 0
        %1149 = vmatpush.bf16.xpose.msra.mxu0 0
        %1150 = vmatpush.bf16.xpose.msra.mxu0 %v1141
        %1151 = vmatmul.bf16.gmra.mxu0 %v1138
        %v1152 = vpop.f32.mrf.mxu0
        %v1153 = vadd.f32 0.0, %v1152
        %v1154 = vpop.f32.mrf.mxu0
        %1155 = vdwg.mxu0
        %1156 = vrot.lane.b32.xlu0 %v930, 112
        %v1157 = vpop.permute.xlu0 %1156
        %1158 = vrot.lane.b32.xlu0 %v930, 80
        %v1159 = vpop.permute.xlu0 %1158
        %v1161 = vsel %vm908, %v1157, 0
        %v1164 = vsel %vm908, %v1159, 0
        %1166 = vmatpush.bf16.xpose.msra.mxu0 0
        %1167 = vmatpush.bf16.xpose.msra.mxu0 0
        %1168 = vmatpush.bf16.xpose.msra.mxu0 0
        %1169 = vmatpush.bf16.xpose.msra.mxu0 0
        %1170 = vmatpush.bf16.xpose.msra.mxu0 0
        %1171 = vmatpush.bf16.xpose.msra.mxu0 0
        %1172 = vmatpush.bf16.xpose.msra.mxu0 0
        %1173 = vmatpush.bf16.xpose.msra.mxu0 %v1164
        %1174 = vmatmul.bf16.gmra.mxu0 %v1161
        %v1175 = vpop.f32.mrf.mxu0
        %v1176 = vadd.f32 0.0, %v1175
        %v1177 = vpop.f32.mrf.mxu0
        %1178 = vdwg.mxu0
        %v1179 = vsel %vm908, %v1153, -inf
        %1180 = vmax.xlane.f32.xlu0 %v1179
        %v1181 = vpop.xlane.xlu0 %1180
        %v1182 = vsel %vm908, %v1176, -inf
        %1183 = vmax.xlane.f32.xlu0 %v1182
        %v1184 = vpop.xlane.xlu0 %1183
        %v1185 = vsub.f32 %v1153, %v1181
        %v1186 = vsub.f32 %v1176, %v1184
        %v1187 = vmul.f32 %v1185, 1.442695
        %v1188 = vpow.pop %v1187
        %v1189 = vmul.f32 %v1186, 1.442695
        %v1190 = vpow.pop %v1189
        %v1191 = vsel %vm908, %v1188, 0.0
        %1192 = vadd.xlane.f32.xlu0 %v1191
        %v1193 = vpop.xlane.xlu0 %1192
        %v1194 = vsel %vm908, %v1190, 0.0
        %1195 = vadd.xlane.f32.xlu0 %v1194
        %v1196 = vpop.xlane.xlu0 %1195
        %v1197 = vrcp.pop %v1193
        %v1198 = vrcp.pop %v1196
        %v1199 = vmul.f32 %v1188, %v1197
        %v1200 = vmul.f32 %v1190, %v1198
        %v1201 = vpack.c.bf16 %v1199, %v1199
        %v1202 = vpack.c.bf16 %v1200, %v1200
        %1203 = vrot.lane.b32.xlu0 %v1087, 112
        %v1204 = vpop.permute.xlu0 %1203
        %v1206 = vsel %vm908, %v1201, 0
        %v1209 = vsel %vm979, %v1204, 0
        %1211 = vmatpush.bf16.msra.mxu0 0
        %1212 = vmatpush.bf16.msra.mxu0 0
        %1213 = vmatpush.bf16.msra.mxu0 0
        %1214 = vmatpush.bf16.msra.mxu0 0
        %1215 = vmatpush.bf16.msra.mxu0 0
        %1216 = vmatpush.bf16.msra.mxu0 0
        %1217 = vmatpush.bf16.msra.mxu0 0
        %1218 = vmatpush.bf16.msra.mxu0 %v1209
        %1219 = vmatmul.bf16.gmra.mxu0 %v1206
        %v1220 = vpop.f32.mrf.mxu0
        %v1221 = vadd.f32 0.0, %v1220
        %v1222 = vpop.f32.mrf.mxu0
        %1223 = vdwg.mxu0
        %1224 = vrot.lane.b32.xlu0 %v1111, 112
        %v1225 = vpop.permute.xlu0 %1224
        %v1227 = vsel %vm908, %v1202, 0
        %v1230 = vsel %vm979, %v1225, 0
        %1232 = vmatpush.bf16.msra.mxu0 0
        %1233 = vmatpush.bf16.msra.mxu0 0
        %1234 = vmatpush.bf16.msra.mxu0 0
        %1235 = vmatpush.bf16.msra.mxu0 0
        %1236 = vmatpush.bf16.msra.mxu0 0
        %1237 = vmatpush.bf16.msra.mxu0 0
        %1238 = vmatpush.bf16.msra.mxu0 0
        %1239 = vmatpush.bf16.msra.mxu0 %v1230
        %1240 = vmatmul.bf16.gmra.mxu0 %v1227
        %v1241 = vpop.f32.mrf.mxu0
        %v1242 = vadd.f32 0.0, %v1241
        %v1243 = vpop.f32.mrf.mxu0
        %1244 = vdwg.mxu0
        %1245 = vrot.lane.b32.xlu0 %v905, 104
        %v1246 = vpop.permute.xlu0 %1245
        %1247 = vrot.lane.b32.xlu0 %v905, 72
        %v1248 = vpop.permute.xlu0 %1247
        %v1250 = vsel %vm908, %v1246, 0
        %v1253 = vsel %vm908, %v1248, 0
        %1255 = vmatpush.bf16.xpose.msra.mxu0 0
        %1256 = vmatpush.bf16.xpose.msra.mxu0 0
        %1257 = vmatpush.bf16.xpose.msra.mxu0 0
        %1258 = vmatpush.bf16.xpose.msra.mxu0 0
        %1259 = vmatpush.bf16.xpose.msra.mxu0 0
        %1260 = vmatpush.bf16.xpose.msra.mxu0 0
        %1261 = vmatpush.bf16.xpose.msra.mxu0 0
        %1262 = vmatpush.bf16.xpose.msra.mxu0 %v1253
        %1263 = vmatmul.bf16.gmra.mxu0 %v1250
        %v1264 = vpop.f32.mrf.mxu0
        %v1265 = vadd.f32 0.0, %v1264
        %v1266 = vpop.f32.mrf.mxu0
        %1267 = vdwg.mxu0
        %1268 = vrot.lane.b32.xlu0 %v930, 104
        %v1269 = vpop.permute.xlu0 %1268
        %1270 = vrot.lane.b32.xlu0 %v930, 72
        %v1271 = vpop.permute.xlu0 %1270
        %v1273 = vsel %vm908, %v1269, 0
        %v1276 = vsel %vm908, %v1271, 0
        %1278 = vmatpush.bf16.xpose.msra.mxu0 0
        %1279 = vmatpush.bf16.xpose.msra.mxu0 0
        %1280 = vmatpush.bf16.xpose.msra.mxu0 0
        %1281 = vmatpush.bf16.xpose.msra.mxu0 0
        %1282 = vmatpush.bf16.xpose.msra.mxu0 0
        %1283 = vmatpush.bf16.xpose.msra.mxu0 0
        %1284 = vmatpush.bf16.xpose.msra.mxu0 0
        %1285 = vmatpush.bf16.xpose.msra.mxu0 %v1276
        %1286 = vmatmul.bf16.gmra.mxu0 %v1273
        %v1287 = vpop.f32.mrf.mxu0
        %v1288 = vadd.f32 0.0, %v1287
        %v1289 = vpop.f32.mrf.mxu0
        %1290 = vdwg.mxu0
        %v1291 = vsel %vm908, %v1265, -inf
        %1292 = vmax.xlane.f32.xlu0 %v1291
        %v1293 = vpop.xlane.xlu0 %1292
        %v1294 = vsel %vm908, %v1288, -inf
        %1295 = vmax.xlane.f32.xlu0 %v1294
        %v1296 = vpop.xlane.xlu0 %1295
        %v1297 = vsub.f32 %v1265, %v1293
        %v1298 = vsub.f32 %v1288, %v1296
        %v1299 = vmul.f32 %v1297, 1.442695
        %v1300 = vpow.pop %v1299
        %v1301 = vmul.f32 %v1298, 1.442695
        %v1302 = vpow.pop %v1301
        %v1303 = vsel %vm908, %v1300, 0.0
        %1304 = vadd.xlane.f32.xlu0 %v1303
        %v1305 = vpop.xlane.xlu0 %1304
        %v1306 = vsel %vm908, %v1302, 0.0
        %1307 = vadd.xlane.f32.xlu0 %v1306
        %v1308 = vpop.xlane.xlu0 %1307
        %v1309 = vrcp.pop %v1305
        %v1310 = vrcp.pop %v1308
        %v1311 = vmul.f32 %v1300, %v1309
        %v1312 = vmul.f32 %v1302, %v1310
        %v1313 = vpack.c.bf16 %v1311, %v1311
        %v1314 = vpack.c.bf16 %v1312, %v1312
        %1315 = vrot.lane.b32.xlu0 %v1087, 104
        %v1316 = vpop.permute.xlu0 %1315
        %v1318 = vsel %vm908, %v1313, 0
        %v1321 = vsel %vm979, %v1316, 0
        %1323 = vmatpush.bf16.msra.mxu0 0
        %1324 = vmatpush.bf16.msra.mxu0 0
        %1325 = vmatpush.bf16.msra.mxu0 0
        %1326 = vmatpush.bf16.msra.mxu0 0
        %1327 = vmatpush.bf16.msra.mxu0 0
        %1328 = vmatpush.bf16.msra.mxu0 0
        %1329 = vmatpush.bf16.msra.mxu0 0
        %1330 = vmatpush.bf16.msra.mxu0 %v1321
        %1331 = vmatmul.bf16.gmra.mxu0 %v1318
        %v1332 = vpop.f32.mrf.mxu0
        %v1333 = vadd.f32 0.0, %v1332
        %v1334 = vpop.f32.mrf.mxu0
        %1335 = vdwg.mxu0
        %1336 = vrot.lane.b32.xlu0 %v1111, 104
        %v1337 = vpop.permute.xlu0 %1336
        %v1339 = vsel %vm908, %v1314, 0
        %v1342 = vsel %vm979, %v1337, 0
        %1344 = vmatpush.bf16.msra.mxu0 0
        %1345 = vmatpush.bf16.msra.mxu0 0
        %1346 = vmatpush.bf16.msra.mxu0 0
        %1347 = vmatpush.bf16.msra.mxu0 0
        %1348 = vmatpush.bf16.msra.mxu0 0
        %1349 = vmatpush.bf16.msra.mxu0 0
        %1350 = vmatpush.bf16.msra.mxu0 0
        %1351 = vmatpush.bf16.msra.mxu0 %v1342
        %1352 = vmatmul.bf16.gmra.mxu0 %v1339
        %v1353 = vpop.f32.mrf.mxu0
        %v1354 = vadd.f32 0.0, %v1353
        %v1355 = vpop.f32.mrf.mxu0
        %1356 = vdwg.mxu0
        %1359 = vrot.lane.b32.xlu0 %v1106, 8
        %v1360 = vpop.permute.xlu0 %1359
        %1361 = vrot.lane.b32.xlu0 %v1130, 8
        %v1362 = vpop.permute.xlu0 %1361
        %1367 = vrot.lane.b32.xlu0 %v1221, 16
        %v1368 = vpop.permute.xlu0 %1367
        %1369 = vrot.lane.b32.xlu0 %v1242, 16
        %v1370 = vpop.permute.xlu0 %1369
        %1375 = vrot.lane.b32.xlu0 %v1333, 24
        %v1376 = vpop.permute.xlu0 %1375
        %1377 = vrot.lane.b32.xlu0 %v1354, 24
        %v1378 = vpop.permute.xlu0 %1377
        %v1381 = vsel %vm908, %v993, %v1360
        %v1382 = vsel %vm908, %v1012, %v1362
        %vm1383 = vcmask 130048
        %v1384 = vsel %vm1383, %v1381, %v1368
        %v1385 = vsel %vm1383, %v1382, %v1370
        %vm1386 = vcmask 195584
        %v1387 = vsel %vm1386, %v1384, %v1376
        %v1388 = vsel %vm1386, %v1385, %v1378
        %v1389 = vpack.c.bf16 %v1388, %v1387
        %v1390 = vld [vmem:[%s641] sm:$0xf]
        %v1391 = vld [vmem:[%s641 + $0x4] sm:$0xf]
        %v1392 = vld [vmem:[%s641 + $0x8] sm:$0xf]
        %v1393 = vld [vmem:[%s641 + $0xc] sm:$0xf]
        %v1394 = vld [vmem:[%s777] sm:$0x1]
        %v1396 = vperm.slane %v1394, 0
        %v1402 = vunpack.c.l.b16 %v1390
        %v1403 = vunpack.c.l.b16 %v1391
        %v1404 = vunpack.c.l.b16 %v1392
        %v1405 = vunpack.c.l.b16 %v1393
        %v1406 = vpack.c.b16 %v1403, %v1402
        %v1407 = vpack.c.b16 %v1405, %v1404
        %v1411 = vsel %vm844, %v1389, 0
        %1413 = vmatpush.bf16.msra.mxu0 0
        %1414 = vmatpush.bf16.msra.mxu0 0
        %1415 = vmatpush.bf16.msra.mxu0 0
        %1416 = vmatpush.bf16.msra.mxu0 0
        %1417 = vmatpush.bf16.msra.mxu0 0
        %1418 = vmatpush.bf16.msra.mxu0 0
        %1419 = vmatpush.bf16.msra.mxu0 %v1407
        %1420 = vmatpush.bf16.msra.mxu0 %v1406
        %1421 = vmatmul.bf16.gmra.mxu0 %v1411
        %v1422 = vpop.f32.mrf.mxu0
        %v1423 = vadd.f32 %v1396, %v1422
        %v1424 = vpop.f32.mrf.mxu0
        %v1425 = vadd.f32 %v1396, %v1424
        %1426 = vdwg.mxu0
        %v1427 = vld [vmem:[%s791] sm:$0x1]
        %v1428 = vld [vmem:[%s794] sm:$0x1]
        %v1429 = vadd.f32 %v817, %v1423
        %v1430 = vadd.f32 %v818, %v1425
        %v1431 = vsel %vm844, %v1429, 0.0
        %1432 = vadd.xlane.f32.xlu0 %v1431
        %v1433 = vpop.xlane.xlu0 %1432
        %v1434 = vsel %vm844, %v1430, 0.0
        %1435 = vadd.xlane.f32.xlu0 %v1434
        %v1436 = vpop.xlane.xlu0 %1435
        %v1437 = vrcp.pop 32.0
        %v1438 = vmul.f32 32.0, %v1437
        %v1439 = vsub.f32 1.0, %v1438
        %v1440 = vmul.f32 %v1437, %v1439
        %v1441 = vadd.f32 %v1437, %v1440
        %vm1442 = vweird.f32 %v1437
        %v1443 = vsel %vm1442, %v1437, %v1441
        %v1444 = vmul.f32 %v1433, %v1443
        %v1445 = vmul.f32 %v1436, %v1443
        %v1446 = vsub.f32 %v1429, %v1444
        %v1447 = vsub.f32 %v1430, %v1445
        %v1448 = vmul.f32 %v1446, %v1446
        %v1449 = vmul.f32 %v1447, %v1447
        %v1450 = vsel %vm844, %v1448, 0.0
        %1451 = vadd.xlane.f32.xlu0 %v1450
        %v1452 = vpop.xlane.xlu0 %1451
        %v1453 = vsel %vm844, %v1449, 0.0
        %1454 = vadd.xlane.f32.xlu0 %v1453
        %v1455 = vpop.xlane.xlu0 %1454
        %v1456 = vmul.f32 %v1452, %v1443
        %v1457 = vmul.f32 %v1455, %v1443
        %v1458 = vadd.f32 %v1456, 1e-05
        %v1459 = vadd.f32 %v1457, 1e-05
        %v1460 = vrsqrt.pop %v1458
        %v1461 = vmul.f32 %v1460, %v1458
        %v1462 = vmul.f32 %v1461, %v1460
        %v1463 = vmul.f32 0.5, %v1462
        %v1464 = vsub.f32 1.5, %v1463
        %v1465 = vmul.f32 %v1460, %v1464
        %vm1466 = vweird.f32 %v1458
        %vm1467 = vweird.f32 %v1460
        %vm1468 = vmor %vm1466, %vm1467
        %v1469 = vsel %vm1468, %v1460, %v1465
        %v1470 = vrsqrt.pop %v1459
        %v1471 = vmul.f32 %v1470, %v1459
        %v1472 = vmul.f32 %v1471, %v1470
        %v1473 = vmul.f32 0.5, %v1472
        %v1474 = vsub.f32 1.5, %v1473
        %v1475 = vmul.f32 %v1470, %v1474
        %vm1476 = vweird.f32 %v1459
        %vm1477 = vweird.f32 %v1470
        %vm1478 = vmor %vm1476, %vm1477
        %v1479 = vsel %vm1478, %v1470, %v1475
        %v1480 = vmul.f32 %v1446, %v1469
        %v1481 = vmul.f32 %v1447, %v1479
        %v1483 = vperm.slane %v1427, 0
        %v1485 = vmul.f32 %v1480, %v1483
        %v1486 = vmul.f32 %v1481, %v1483
        %v1488 = vperm.slane %v1428, 0
        %v1490 = vadd.f32 %v1485, %v1488
        %v1491 = vadd.f32 %v1486, %v1488
        %v1492 = vpack.c.bf16 %v1491, %v1490
        %v1493 = vld [vmem:[%s651] sm:$0xf]
        %v1494 = vld [vmem:[%s651 + $0x4] sm:$0xf]
        %v1495 = vld [vmem:[%s651 + $0x8] sm:$0xf]
        %v1496 = vld [vmem:[%s651 + $0xc] sm:$0xf]
        %v1497 = vld [vmem:[%s780] sm:$0x1]
        %v1499 = vperm.slane %v1497, 0
        %v1505 = vunpack.c.l.b16 %v1493
        %v1506 = vunpack.c.l.b16 %v1494
        %v1507 = vunpack.c.l.b16 %v1495
        %v1508 = vunpack.c.l.b16 %v1496
        %v1509 = vpack.c.b16 %v1506, %v1505
        %v1510 = vpack.c.b16 %v1508, %v1507
        %v1514 = vsel %vm844, %v1492, 0
        %1516 = vmatpush.bf16.msra.mxu0 0
        %1517 = vmatpush.bf16.msra.mxu0 0
        %1518 = vmatpush.bf16.msra.mxu0 0
        %1519 = vmatpush.bf16.msra.mxu0 0
        %1520 = vmatpush.bf16.msra.mxu0 0
        %1521 = vmatpush.bf16.msra.mxu0 0
        %1522 = vmatpush.bf16.msra.mxu0 %v1510
        %1523 = vmatpush.bf16.msra.mxu0 %v1509
        %1524 = vmatmul.bf16.gmra.mxu0 %v1514
        %v1525 = vpop.f32.mrf.mxu0
        %v1526 = vadd.f32 %v1499, %v1525
        %v1527 = vpop.f32.mrf.mxu0
        %v1528 = vadd.f32 %v1499, %v1527
        %1529 = vdwg.mxu0
        %v1530 = vmax.f32 %v1526, 0.0
        %v1531 = vmax.f32 %v1528, 0.0
        %v1532 = vpack.c.bf16 %v1531, %v1530
        %v1533 = vld [vmem:[%s785] sm:$0xf]
        %v1534 = vld [vmem:[%s785 + $0x4] sm:$0xf]
        %v1535 = vld [vmem:[%s785 + $0x8] sm:$0xf]
        %v1536 = vld [vmem:[%s785 + $0xc] sm:$0xf]
        %v1537 = vld [vmem:[%s785 + $0x10] sm:$0xf]
        %v1538 = vld [vmem:[%s785 + $0x14] sm:$0xf]
        %v1539 = vld [vmem:[%s785 + $0x18] sm:$0xf]
        %v1540 = vld [vmem:[%s785 + $0x1c] sm:$0xf]
        %v1541 = vld [vmem:[%s788] sm:$0x1]
        %v1543 = vperm.slane %v1541, 0
        %v1553 = vunpack.c.l.b16 %v1533
        %v1554 = vunpack.c.l.b16 %v1534
        %v1555 = vunpack.c.l.b16 %v1535
        %v1556 = vunpack.c.l.b16 %v1536
        %v1557 = vunpack.c.l.b16 %v1537
        %v1558 = vunpack.c.l.b16 %v1538
        %v1559 = vunpack.c.l.b16 %v1539
        %v1560 = vunpack.c.l.b16 %v1540
        %v1561 = vpack.c.b16 %v1554, %v1553
        %v1562 = vpack.c.b16 %v1556, %v1555
        %v1563 = vpack.c.b16 %v1558, %v1557
        %v1564 = vpack.c.b16 %v1560, %v1559
        %vm1569 = vcmask 523264
        %v1571 = vsel %vm1569, %v1532, 0
        %1573 = vmatpush.bf16.msra.mxu0 0
        %1574 = vmatpush.bf16.msra.mxu0 0
        %1575 = vmatpush.bf16.msra.mxu0 0
        %1576 = vmatpush.bf16.msra.mxu0 0
        %1577 = vmatpush.bf16.msra.mxu0 %v1564
        %1578 = vmatpush.bf16.msra.mxu0 %v1563
        %1579 = vmatpush.bf16.msra.mxu0 %v1562
        %1580 = vmatpush.bf16.msra.mxu0 %v1561
        %1581 = vmatmul.bf16.gmra.mxu0 %v1571
        %v1582 = vpop.f32.mrf.mxu0
        %v1583 = vadd.f32 %v1543, %v1582
        %v1584 = vpop.f32.mrf.mxu0
        %v1585 = vadd.f32 %v1543, %v1584
        %1586 = vdwg.mxu0
        %v1587 = vld [vmem:[%s797] sm:$0x1]
        %v1588 = vld [vmem:[%s800] sm:$0x1]
        %v1589 = vadd.f32 %v1490, %v1583
        %v1590 = vadd.f32 %v1491, %v1585
        %v1591 = vsel %vm844, %v1589, 0.0
        %1592 = vadd.xlane.f32.xlu0 %v1591
        %v1593 = vpop.xlane.xlu0 %1592
        %v1594 = vsel %vm844, %v1590, 0.0
        %1595 = vadd.xlane.f32.xlu0 %v1594
        %v1596 = vpop.xlane.xlu0 %1595
        %v1597 = vmul.f32 %v1593, %v1443
        %v1598 = vmul.f32 %v1596, %v1443
        %v1599 = vsub.f32 %v1589, %v1597
        %v1600 = vsub.f32 %v1590, %v1598
        %v1601 = vmul.f32 %v1599, %v1599
        %v1602 = vmul.f32 %v1600, %v1600
        %v1603 = vsel %vm844, %v1601, 0.0
        %1604 = vadd.xlane.f32.xlu0 %v1603
        %v1605 = vpop.xlane.xlu0 %1604
        %v1606 = vsel %vm844, %v1602, 0.0
        %1607 = vadd.xlane.f32.xlu0 %v1606
        %v1608 = vpop.xlane.xlu0 %1607
        %v1609 = vmul.f32 %v1605, %v1443
        %v1610 = vmul.f32 %v1608, %v1443
        %v1611 = vadd.f32 %v1609, 1e-05
        %v1612 = vadd.f32 %v1610, 1e-05
        %v1613 = vrsqrt.pop %v1611
        %v1614 = vmul.f32 %v1613, %v1611
        %v1615 = vmul.f32 %v1614, %v1613
        %v1616 = vmul.f32 0.5, %v1615
        %v1617 = vsub.f32 1.5, %v1616
        %v1618 = vmul.f32 %v1613, %v1617
        %vm1619 = vweird.f32 %v1611
        %vm1620 = vweird.f32 %v1613
        %vm1621 = vmor %vm1619, %vm1620
        %v1622 = vsel %vm1621, %v1613, %v1618
        %v1623 = vrsqrt.pop %v1612
        %v1624 = vmul.f32 %v1623, %v1612
        %v1625 = vmul.f32 %v1624, %v1623
        %v1626 = vmul.f32 0.5, %v1625
        %v1627 = vsub.f32 1.5, %v1626
        %v1628 = vmul.f32 %v1623, %v1627
        %vm1629 = vweird.f32 %v1612
        %vm1630 = vweird.f32 %v1623
        %vm1631 = vmor %vm1629, %vm1630
        %v1632 = vsel %vm1631, %v1623, %v1628
        %v1633 = vmul.f32 %v1599, %v1622
        %v1634 = vmul.f32 %v1600, %v1632
        %v1636 = vperm.slane %v1587, 0
        %v1638 = vmul.f32 %v1633, %v1636
        %v1639 = vmul.f32 %v1634, %v1636
        %v1641 = vperm.slane %v1588, 0
        %v1643 = vadd.f32 %v1638, %v1641
        %v1644 = vadd.f32 %v1639, %v1641
        %1645 = vst.msk [vmem:[#allocation2] sm:$0xff] %vm844, %v1643
        %1646 = vst.msk [vmem:[#allocation2 + $0x8] sm:$0xff] %vm844, %v1644
        %1647 = vst.msk [vmem:[%s805] sm:$0xff] %vm844, %v1643
        %1648 = vst.msk [vmem:[%s805 + $0x8] sm:$0xff] %vm844, %v1644
        %s1649 = smul.u32 2, %s37
        %p1650 = scmp.lt.s32.totalorder %s1649, 1
        %s1651 = scalar_select %p1650, %s1649, 1
        %s1652 = smul.addr %s1651, 8
        %s1653 = scalar_lea.vmem %s16, %s1652
        // Predicated region
        $region97: #{transformer_forward.2} parent=83 // pred_check
          %p1654 = pneg %p474
        $region98: #{transformer_forward.2} parent=83 // pred_check_branch
          %1656 = sbr.rel (%p1654) target = $region100
        $region99: #{transformer_forward.2} parent=83 // pred_region
          %s1657 = smul.u32 2, %s37
        $region100: #{transformer_forward.2} parent=83 // pred_fallthru
          _
        // Predicated region
        $region101: #{transformer_forward.2} parent=83 // pred_check
          %p1658 = pneg %p474
        $region102: #{transformer_forward.2} parent=83 // pred_check_branch
          %1660 = sbr.rel (%p1658) target = $region104
        $region103: #{transformer_forward.2} parent=83 // pred_region
          %s1661 = smul.u32 2, %s37
          %p1662 = scmp.lt.s32.totalorder %s1661, 1
          %s1663 = scalar_select %p1662, %s1661, 1
          %s1664 = smul.addr %s1663, 8
          %s1665 = scalar_lea.vmem %s16, %s1664
        $region104: #{transformer_forward.2} parent=83 // pred_fallthru
          _
      $region84: #{transformer_forward.2} parent=5 // pred_fallthru
        _
      %p1666 = scmp.le.s32.totalorder 2, %s28
      // Predicated region
      $region105: #{transformer_forward.2} parent=5 // pred_check
        %p1667 = pneg %p1666
      $region106: #{transformer_forward.2} parent=5 // pred_check_branch
        %1669 = sbr.rel (%p1667) target = $region108
      $region107: #{transformer_forward.2} parent=5 // pred_region
        %s1670 = ssub.s32 %s28, 2
      $region108: #{transformer_forward.2} parent=5 // pred_fallthru
        _
    $region6: #{transformer_forward.2} parent=1 // loop_footer
      %s32 = sadd.s32 1, %s28
    $region7: #{transformer_forward.2} parent=1 // loop_footer_branch
      %27 = sbr.rel target = $region3
    $region8: #{transformer_forward.2} parent=1 // loop_exit
      _
    %1671 = vsyncpa [#allocation4], 1
    %s1672 = scalar_lea.sflag [#allocation4], 1
    %1673 = vsyncpa %s1672, 1
    %1674 = vsyncpa [#allocation6], 1
    %s1675 = scalar_lea.sflag [#allocation6], 1
    %1676 = vsyncpa %s1675, 1

// kernel: transformer_forward.3
$region0: #{transformer_forward.3}
  #allocation0 [shape = 'u32[]', space=smem, size = 0x4, offset = 0x4, fixed_abs, tag = 'smem constant byte address 0x4 - core index']
  #allocation1 [shape = 'u32[72,128]{1,0:T(1,128)}', space=vmem, size = 0x9000, scoped, tag = 'internal scratch']
  #allocation2 [shape = 'f32[16,32]{1,0:T(8,128)}', space=vmem, size = 0x2000, scoped, tag = 'scratch operand']
  #allocation3 [shape = 'bf16[16,32]{1,0:T(8,128)(2,1)}', space=vmem, size = 0x1000, scoped, tag = 'scratch operand']
  #allocation4 [shape = 'bf16[16,32]{1,0:T(8,128)(2,1)}', space=vmem, size = 0x1000, scoped, tag = 'scratch operand']
  %s0 = inlined_call_operand.smem [shape: u32[30], index: -1, kind: input, shape index: {}]
  %s1 = sld [smem:[%s0]]
  %s2 = scalar_lea.smem %s0, 1
  %s3 = sld [smem:[%s2]]
  %s4 = scalar_lea.smem %s0, 2
  %s5 = sld [smem:[%s4]]
  %s6 = scalar_lea.smem %s0, 3
  %s7 = sld [smem:[%s6]]
  %s8 = scalar_lea.smem %s0, 4
  %s9 = sld [smem:[%s8]]
  %s10 = scalar_lea.smem %s0, 5
  %s11 = sld [smem:[%s10]]
  %s12 = scalar_lea.smem %s0, 6
  %s13 = sld [smem:[%s12]]
  %s14 = scalar_lea.smem %s0, 7
  %s15 = sld [smem:[%s14]]
  %s16 = scalar_lea.smem %s0, 8
  %s17 = sld [smem:[%s16]]
  %s18 = scalar_lea.smem %s0, 9
  %s19 = sld [smem:[%s18]]
  %s20 = scalar_lea.smem %s0, 10
  %s21 = sld [smem:[%s20]]
  %s22 = scalar_lea.smem %s0, 11
  %s23 = sld [smem:[%s22]]
  %s24 = scalar_lea.smem %s0, 12
  %s25 = sld [smem:[%s24]]
  %s26 = scalar_lea.smem %s0, 13
  %s27 = sld [smem:[%s26]]
  %s28 = scalar_lea.smem %s0, 14
  %s29 = sld [smem:[%s28]]
  %s30 = scalar_lea.smem %s0, 15
  %s31 = sld [smem:[%s30]]
  %s32 = scalar_lea.smem %s0, 16
  %s33 = sld [smem:[%s32]]
  %s34 = scalar_lea.smem %s0, 17
  %s35 = sld [smem:[%s34]]
  %s36 = scalar_lea.smem %s0, 18
  %s37 = sld [smem:[%s36]]
  %s38 = scalar_lea.smem %s0, 19
  %s39 = sld [smem:[%s38]]
  %s40 = scalar_lea.smem %s0, 20
  %s41 = sld [smem:[%s40]]
  %s42 = scalar_lea.smem %s0, 21
  %s43 = sld [smem:[%s42]]
  %s44 = scalar_lea.smem %s0, 22
  %s45 = sld [smem:[%s44]]
  %s46 = scalar_lea.smem %s0, 23
  %s47 = sld [smem:[%s46]]
  %s48 = scalar_lea.smem %s0, 24
  %s49 = sld [smem:[%s48]]
  %s50 = scalar_lea.smem %s0, 25
  %s51 = sld [smem:[%s50]]
  %s52 = scalar_lea.smem %s0, 26
  %s53 = sld [smem:[%s52]]
  %s54 = scalar_lea.smem %s0, 27
  %s55 = sld [smem:[%s54]]
  %s56 = scalar_lea.smem %s0, 28
  %s57 = sld [smem:[%s56]]
  %s58 = scalar_lea.smem %s0, 29
  %s59 = sld [smem:[%s58]]
  %s60 = sld [smem:[#allocation0]]
  $region197: #{transformer_forward.3} parent=0
    _
  %s62 = ssub.s32 1, %s60
  %s63 = scalar_select 0, %s62, %s60
  $region1: #{transformer_forward.3} parent=0
    #allocation5 [shape = 'u8[16384]{0}', space=vmem, size = 0x4000, scoped, tag = 'input window, operand 11']
    #allocation6 [shape = 's32[2]{0}', space=sflag, size = 0x8, scoped, tag = 'scoped memory for transformer_forward.3']
    #allocation7 [shape = 'u8[16384]{0}', space=vmem, size = 0x4000, scoped, tag = 'input window, operand 13']
    #allocation8 [shape = 's32[2]{0}', space=sflag, size = 0x8, scoped, tag = 'scoped memory for transformer_forward.3']
    #allocation9 [shape = 'u8[16384]{0}', space=vmem, size = 0x4000, scoped, tag = 'input window, operand 15']
    #allocation10 [shape = 'u8[16384]{0}', space=vmem, size = 0x4000, scoped, tag = 'input window, operand 17']
    #allocation11 [shape = 's32[2]{0}', space=sflag, size = 0x8, scoped, tag = 'scoped memory for transformer_forward.3']
    #allocation12 [shape = 'u8[16384]{0}', space=vmem, size = 0x4000, scoped, tag = 'input window, operand 19']
    #allocation13 [shape = 'u8[1024]{0}', space=vmem, size = 0x400, scoped, tag = 'input window, operand 23']
    #allocation14 [shape = 's32[2]{0}', space=sflag, size = 0x8, scoped, tag = 'scoped memory for transformer_forward.3']
    #allocation15 [shape = 'u8[1024]{0}', space=vmem, size = 0x400, scoped, tag = 'input window, operand 24']
    #allocation16 [shape = 'u8[1024]{0}', space=vmem, size = 0x400, scoped, tag = 'input window, operand 25']
    #allocation17 [shape = 's32[2]{0}', space=sflag, size = 0x8, scoped, tag = 'scoped memory for transformer_forward.3']
    #allocation18 [shape = 'u8[1024]{0}', space=vmem, size = 0x400, scoped, tag = 'input window, operand 26']
    #allocation19 [shape = 'u8[1024]{0}', space=vmem, size = 0x400, scoped, tag = 'input window, operand 27']
    #allocation20 [shape = 's32[2]{0}', space=sflag, size = 0x8, scoped, tag = 'scoped memory for transformer_forward.3']
    #allocation21 [shape = 'u8[1024]{0}', space=vmem, size = 0x400, scoped, tag = 'input window, operand 28']
    %64 = vsyncpa [#allocation6], 0
    %s65 = scalar_lea.sflag [#allocation6], 1
    %66 = vsyncpa %s65, 0
    %67 = vsyncpa [#allocation8], 0
    %s68 = scalar_lea.sflag [#allocation8], 1
    %69 = vsyncpa %s68, 0
    %70 = vsyncpa [#allocation11], 0
    %s71 = scalar_lea.sflag [#allocation11], 1
    %72 = vsyncpa %s71, 0
    %73 = vsyncpa [#allocation14], 0
    %s74 = scalar_lea.sflag [#allocation14], 1
    %75 = vsyncpa %s74, 0
    %76 = vsyncpa [#allocation17], 0
    %s77 = scalar_lea.sflag [#allocation17], 1
    %78 = vsyncpa %s77, 0
    %79 = vsyncpa [#allocation20], 0
    %s80 = scalar_lea.sflag [#allocation20], 1
    %81 = vsyncpa %s80, 0
    loop: start=0, step=1, limit=4
    $region2: #{transformer_forward.3} parent=1 // loop_pre_header
      _
    $region3: #{transformer_forward.3} parent=1 // loop_header
      %s83 = sphi 0, %s87
      %p84 = scmp.ge.s32.totalorder %s83, 4
      %s90 = sphi 0, %s102
      %s91 = sphi 0, %s98
      %s92 = sphi 0, %s90
      %s93 = sphi 0, %s91
      %s94 = sphi 0, %s92
      %s95 = sphi 0, %s93
      %s105 = sphi 0, %s107
      %s108 = sphi 0, %s105
      %s109 = sphi 0, %s108
      %s125 = sphi 0, %s109
      %s129 = sphi 0, %s129
      %s131 = sphi 0, %s129
      %s132 = sphi 0, %s131
      %s146 = sphi 0, %s132
      %s152 = sphi 0, %s154
      %s155 = sphi 0, %s152
      %s156 = sphi 0, %s155
      %s172 = sphi 0, %s156
      %s176 = sphi 0, %s176
      %s178 = sphi 0, %s176
      %s179 = sphi 0, %s178
      %s193 = sphi 0, %s179
      %s197 = sphi 0, %s197
      %s199 = sphi 0, %s197
      %s200 = sphi 0, %s199
      %s214 = sphi 0, %s200
      %s220 = sphi 0, %s222
      %s223 = sphi 0, %s220
      %s224 = sphi 0, %s223
      %s240 = sphi 0, %s224
      %s246 = sphi 0, %s248
      %s249 = sphi 0, %s246
      %s250 = sphi 0, %s249
      %s266 = sphi 0, %s250
      %s272 = sphi 0, %s274
      %s275 = sphi 0, %s272
      %s276 = sphi 0, %s275
      %s292 = sphi 0, %s276
      %s298 = sphi 0, %s300
      %s301 = sphi 0, %s298
      %s302 = sphi 0, %s301
      %s318 = sphi 0, %s302
      %s324 = sphi 0, %s326
      %s327 = sphi 0, %s324
      %s328 = sphi 0, %s327
      %s344 = sphi 0, %s328
      %s350 = sphi 0, %s352
      %s353 = sphi 0, %s350
      %s354 = sphi 0, %s353
      %s370 = sphi 0, %s354
      %s376 = sphi 0, %s378
      %s379 = sphi 0, %s376
      %s380 = sphi 0, %s379
      %s396 = sphi 0, %s380
      %s402 = sphi 0, %s404
      %s405 = sphi 0, %s402
      %s406 = sphi 0, %s405
      %s422 = sphi 0, %s406
      %s428 = sphi 0, %s430
      %s431 = sphi 0, %s428
      %s432 = sphi 0, %s431
      %s448 = sphi 0, %s432
      %s454 = sphi 0, %s456
      %s457 = sphi 0, %s454
      %s458 = sphi 0, %s457
      %s474 = sphi 0, %s458
      %s480 = sphi 0, %s482
      %s483 = sphi 0, %s480
      %s484 = sphi 0, %s483
      %s500 = sphi 0, %s484
      %s506 = sphi 0, %s508
      %s509 = sphi 0, %s506
      %s510 = sphi 0, %s509
      %s526 = sphi 0, %s510
      %s532 = sphi 0, %s534
      %s535 = sphi 0, %s532
      %s536 = sphi 0, %s535
      %s552 = sphi 0, %s536
      %s558 = sphi 0, %s560
      %s561 = sphi 0, %s558
      %s562 = sphi 0, %s561
      %s578 = sphi 0, %s562
      %s584 = sphi 0, %s586
      %s587 = sphi 0, %s584
      %s588 = sphi 0, %s587
      %s604 = sphi 0, %s588
      %s610 = sphi 0, %s612
      %s613 = sphi 0, %s610
      %s614 = sphi 0, %s613
      %s630 = sphi 0, %s614
      %s636 = sphi 0, %s638
      %s639 = sphi 0, %s636
      %s640 = sphi 0, %s639
      %s656 = sphi 0, %s640
      %s662 = sphi 0, %s664
      %s665 = sphi 0, %s662
      %s666 = sphi 0, %s665
      %s682 = sphi 0, %s666
      %s688 = sphi 0, %s690
      %s691 = sphi 0, %s688
      %s692 = sphi 0, %s691
      %s708 = sphi 0, %s692
      %s714 = sphi 0, %s716
      %s717 = sphi 0, %s714
      %s718 = sphi 0, %s717
      %s734 = sphi 0, %s718
      %s740 = sphi 0, %s742
      %s743 = sphi 0, %s740
      %s744 = sphi 0, %s743
      %s760 = sphi 0, %s744
      %s766 = sphi 0, %s768
      %s769 = sphi 0, %s766
      %s770 = sphi 0, %s769
      %s786 = sphi 0, %s770
      %s792 = sphi 0, %s794
      %s795 = sphi 0, %s792
      %s796 = sphi 0, %s795
      %s812 = sphi 0, %s796
      %s818 = sphi 0, %s820
      %s821 = sphi 0, %s818
      %s822 = sphi 0, %s821
      %s838 = sphi 0, %s822
      %s846 = sphi 0, %s848
      %s849 = sphi 0, %s846
      %s850 = sphi 0, %s849
      %s866 = sphi 0, %s850
    $region4: #{transformer_forward.3} parent=1 // loop_header_branch
      %86 = sbr.rel (%p84) target = $region8
    $region5: #{transformer_forward.3} parent=1 // loop_body
      %s88 = ssub.s32 %s83, 1
      %s89 = ssub.s32 %s83, 2
      %s96 = sadd.s32 1, %s91
      %p97 = scmp.ge.s32.totalorder %s96, 2
      %s98 = scalar_select %p97, 0, %s96
      %s99 = sadd.s32 1, %s90
      %s100 = scalar_select %p97, %s99, %s90
      %p101 = scmp.ge.s32.totalorder %s100, 1
      %s102 = scalar_select %p101, 0, %s100
      %s103 = ssub.s32 %s90, %s102
      %p104 = scmp.eq.s32.totalorder %s103, 0
      %s106 = sadd.s32 %s105, 1
      %s107 = scalar_select %p104, %s105, %s106
      %p110 = pneg %p104
      %p111 = scmp.eq.s32.totalorder %s83, 1
      %p112 = por %p110, %p111
      %p113 = scmp.ne.s32.totalorder %s105, %s108
      %p114 = scmp.eq.s32.totalorder %s83, 0
      %p115 = por %p113, %p114
      %p116 = scmp.ne.s32.totalorder %s105, %s108
      %p117 = scmp.eq.s32.totalorder %s88, 1
      %p118 = por %p116, %p117
      %p119 = scmp.ne.s32.totalorder %s108, %s109
      %p120 = scmp.eq.s32.totalorder %s88, 0
      %p121 = por %p119, %p120
      %p122 = scmp.ne.s32.totalorder %s108, %s109
      %p123 = scmp.eq.s32.totalorder %s89, 1
      %p124 = por %p122, %p123
      %p126 = scmp.ne.s32.totalorder %s109, %s125
      %p127 = scmp.eq.s32.totalorder %s89, 0
      %p128 = por %p126, %p127
      %s130 = sadd.s32 %s129, 1
      %p133 = scmp.eq.s32.totalorder %s83, 1
      %p134 = scmp.ne.s32.totalorder %s129, %s131
      %p135 = scmp.eq.s32.totalorder %s83, 0
      %p136 = por %p134, %p135
      %p137 = scmp.ne.s32.totalorder %s129, %s131
      %p138 = scmp.eq.s32.totalorder %s88, 1
      %p139 = por %p137, %p138
      %p140 = scmp.ne.s32.totalorder %s131, %s132
      %p141 = scmp.eq.s32.totalorder %s88, 0
      %p142 = por %p140, %p141
      %p143 = scmp.ne.s32.totalorder %s131, %s132
      %p144 = scmp.eq.s32.totalorder %s89, 1
      %p145 = por %p143, %p144
      %p147 = scmp.ne.s32.totalorder %s132, %s146
      %p148 = scmp.eq.s32.totalorder %s89, 0
      %p149 = por %p147, %p148
      %s150 = ssub.s32 %s90, %s102
      %p151 = scmp.eq.s32.totalorder %s150, 0
      %s153 = sadd.s32 %s152, 1
      %s154 = scalar_select %p151, %s152, %s153
      %p157 = pneg %p151
      %p158 = scmp.eq.s32.totalorder %s83, 1
      %p159 = por %p157, %p158
      %p160 = scmp.ne.s32.totalorder %s152, %s155
      %p161 = scmp.eq.s32.totalorder %s83, 0
      %p162 = por %p160, %p161
      %p163 = scmp.ne.s32.totalorder %s152, %s155
      %p164 = scmp.eq.s32.totalorder %s88, 1
      %p165 = por %p163, %p164
      %p166 = scmp.ne.s32.totalorder %s155, %s156
      %p167 = scmp.eq.s32.totalorder %s88, 0
      %p168 = por %p166, %p167
      %p169 = scmp.ne.s32.totalorder %s155, %s156
      %p170 = scmp.eq.s32.totalorder %s89, 1
      %p171 = por %p169, %p170
      %p173 = scmp.ne.s32.totalorder %s156, %s172
      %p174 = scmp.eq.s32.totalorder %s89, 0
      %p175 = por %p173, %p174
      %s177 = sadd.s32 %s176, 1
      %p180 = scmp.eq.s32.totalorder %s83, 1
      %p181 = scmp.ne.s32.totalorder %s176, %s178
      %p182 = scmp.eq.s32.totalorder %s83, 0
      %p183 = por %p181, %p182
      %p184 = scmp.ne.s32.totalorder %s176, %s178
      %p185 = scmp.eq.s32.totalorder %s88, 1
      %p186 = por %p184, %p185
      %p187 = scmp.ne.s32.totalorder %s178, %s179
      %p188 = scmp.eq.s32.totalorder %s88, 0
      %p189 = por %p187, %p188
      %p190 = scmp.ne.s32.totalorder %s178, %s179
      %p191 = scmp.eq.s32.totalorder %s89, 1
      %p192 = por %p190, %p191
      %p194 = scmp.ne.s32.totalorder %s179, %s193
      %p195 = scmp.eq.s32.totalorder %s89, 0
      %p196 = por %p194, %p195
      %s198 = sadd.s32 %s197, 1
      %p201 = scmp.eq.s32.totalorder %s83, 1
      %p202 = scmp.ne.s32.totalorder %s197, %s199
      %p203 = scmp.eq.s32.totalorder %s83, 0
      %p204 = por %p202, %p203
      %p205 = scmp.ne.s32.totalorder %s197, %s199
      %p206 = scmp.eq.s32.totalorder %s88, 1
      %p207 = por %p205, %p206
      %p208 = scmp.ne.s32.totalorder %s199, %s200
      %p209 = scmp.eq.s32.totalorder %s88, 0
      %p210 = por %p208, %p209
      %p211 = scmp.ne.s32.totalorder %s199, %s200
      %p212 = scmp.eq.s32.totalorder %s89, 1
      %p213 = por %p211, %p212
      %p215 = scmp.ne.s32.totalorder %s200, %s214
      %p216 = scmp.eq.s32.totalorder %s89, 0
      %p217 = por %p215, %p216
      %s218 = ssub.s32 %s91, %s98
      %p219 = scmp.eq.s32.totalorder %s218, 0
      %s221 = sadd.s32 %s220, 1
      %s222 = scalar_select %p219, %s220, %s221
      %p225 = pneg %p219
      %p226 = scmp.eq.s32.totalorder %s83, 1
      %p227 = por %p225, %p226
      %p228 = scmp.ne.s32.totalorder %s220, %s223
      %p229 = scmp.eq.s32.totalorder %s83, 0
      %p230 = por %p228, %p229
      %p231 = scmp.ne.s32.totalorder %s220, %s223
      %p232 = scmp.eq.s32.totalorder %s88, 1
      %p233 = por %p231, %p232
      %p234 = scmp.ne.s32.totalorder %s223, %s224
      %p235 = scmp.eq.s32.totalorder %s88, 0
      %p236 = por %p234, %p235
      %p237 = scmp.ne.s32.totalorder %s223, %s224
      %p238 = scmp.eq.s32.totalorder %s89, 1
      %p239 = por %p237, %p238
      %p241 = scmp.ne.s32.totalorder %s224, %s240
      %p242 = scmp.eq.s32.totalorder %s89, 0
      %p243 = por %p241, %p242
      %s244 = ssub.s32 %s91, %s98
      %p245 = scmp.eq.s32.totalorder %s244, 0
      %s247 = sadd.s32 %s246, 1
      %s248 = scalar_select %p245, %s246, %s247
      %p251 = pneg %p245
      %p252 = scmp.eq.s32.totalorder %s83, 1
      %p253 = por %p251, %p252
      %p254 = scmp.ne.s32.totalorder %s246, %s249
      %p255 = scmp.eq.s32.totalorder %s83, 0
      %p256 = por %p254, %p255
      %p257 = scmp.ne.s32.totalorder %s246, %s249
      %p258 = scmp.eq.s32.totalorder %s88, 1
      %p259 = por %p257, %p258
      %p260 = scmp.ne.s32.totalorder %s249, %s250
      %p261 = scmp.eq.s32.totalorder %s88, 0
      %p262 = por %p260, %p261
      %p263 = scmp.ne.s32.totalorder %s249, %s250
      %p264 = scmp.eq.s32.totalorder %s89, 1
      %p265 = por %p263, %p264
      %p267 = scmp.ne.s32.totalorder %s250, %s266
      %p268 = scmp.eq.s32.totalorder %s89, 0
      %p269 = por %p267, %p268
      %s270 = ssub.s32 %s91, %s98
      %p271 = scmp.eq.s32.totalorder %s270, 0
      %s273 = sadd.s32 %s272, 1
      %s274 = scalar_select %p271, %s272, %s273
      %p277 = pneg %p271
      %p278 = scmp.eq.s32.totalorder %s83, 1
      %p279 = por %p277, %p278
      %p280 = scmp.ne.s32.totalorder %s272, %s275
      %p281 = scmp.eq.s32.totalorder %s83, 0
      %p282 = por %p280, %p281
      %p283 = scmp.ne.s32.totalorder %s272, %s275
      %p284 = scmp.eq.s32.totalorder %s88, 1
      %p285 = por %p283, %p284
      %p286 = scmp.ne.s32.totalorder %s275, %s276
      %p287 = scmp.eq.s32.totalorder %s88, 0
      %p288 = por %p286, %p287
      %p289 = scmp.ne.s32.totalorder %s275, %s276
      %p290 = scmp.eq.s32.totalorder %s89, 1
      %p291 = por %p289, %p290
      %p293 = scmp.ne.s32.totalorder %s276, %s292
      %p294 = scmp.eq.s32.totalorder %s89, 0
      %p295 = por %p293, %p294
      %s296 = ssub.s32 %s91, %s98
      %p297 = scmp.eq.s32.totalorder %s296, 0
      %s299 = sadd.s32 %s298, 1
      %s300 = scalar_select %p297, %s298, %s299
      %p303 = pneg %p297
      %p304 = scmp.eq.s32.totalorder %s83, 1
      %p305 = por %p303, %p304
      %p306 = scmp.ne.s32.totalorder %s298, %s301
      %p307 = scmp.eq.s32.totalorder %s83, 0
      %p308 = por %p306, %p307
      %p309 = scmp.ne.s32.totalorder %s298, %s301
      %p310 = scmp.eq.s32.totalorder %s88, 1
      %p311 = por %p309, %p310
      %p312 = scmp.ne.s32.totalorder %s301, %s302
      %p313 = scmp.eq.s32.totalorder %s88, 0
      %p314 = por %p312, %p313
      %p315 = scmp.ne.s32.totalorder %s301, %s302
      %p316 = scmp.eq.s32.totalorder %s89, 1
      %p317 = por %p315, %p316
      %p319 = scmp.ne.s32.totalorder %s302, %s318
      %p320 = scmp.eq.s32.totalorder %s89, 0
      %p321 = por %p319, %p320
      %s322 = ssub.s32 %s91, %s98
      %p323 = scmp.eq.s32.totalorder %s322, 0
      %s325 = sadd.s32 %s324, 1
      %s326 = scalar_select %p323, %s324, %s325
      %p329 = pneg %p323
      %p330 = scmp.eq.s32.totalorder %s83, 1
      %p331 = por %p329, %p330
      %p332 = scmp.ne.s32.totalorder %s324, %s327
      %p333 = scmp.eq.s32.totalorder %s83, 0
      %p334 = por %p332, %p333
      %p335 = scmp.ne.s32.totalorder %s324, %s327
      %p336 = scmp.eq.s32.totalorder %s88, 1
      %p337 = por %p335, %p336
      %p338 = scmp.ne.s32.totalorder %s327, %s328
      %p339 = scmp.eq.s32.totalorder %s88, 0
      %p340 = por %p338, %p339
      %p341 = scmp.ne.s32.totalorder %s327, %s328
      %p342 = scmp.eq.s32.totalorder %s89, 1
      %p343 = por %p341, %p342
      %p345 = scmp.ne.s32.totalorder %s328, %s344
      %p346 = scmp.eq.s32.totalorder %s89, 0
      %p347 = por %p345, %p346
      %s348 = ssub.s32 %s91, %s98
      %p349 = scmp.eq.s32.totalorder %s348, 0
      %s351 = sadd.s32 %s350, 1
      %s352 = scalar_select %p349, %s350, %s351
      %p355 = pneg %p349
      %p356 = scmp.eq.s32.totalorder %s83, 1
      %p357 = por %p355, %p356
      %p358 = scmp.ne.s32.totalorder %s350, %s353
      %p359 = scmp.eq.s32.totalorder %s83, 0
      %p360 = por %p358, %p359
      %p361 = scmp.ne.s32.totalorder %s350, %s353
      %p362 = scmp.eq.s32.totalorder %s88, 1
      %p363 = por %p361, %p362
      %p364 = scmp.ne.s32.totalorder %s353, %s354
      %p365 = scmp.eq.s32.totalorder %s88, 0
      %p366 = por %p364, %p365
      %p367 = scmp.ne.s32.totalorder %s353, %s354
      %p368 = scmp.eq.s32.totalorder %s89, 1
      %p369 = por %p367, %p368
      %p371 = scmp.ne.s32.totalorder %s354, %s370
      %p372 = scmp.eq.s32.totalorder %s89, 0
      %p373 = por %p371, %p372
      %s374 = ssub.s32 %s91, %s98
      %p375 = scmp.eq.s32.totalorder %s374, 0
      %s377 = sadd.s32 %s376, 1
      %s378 = scalar_select %p375, %s376, %s377
      %p381 = pneg %p375
      %p382 = scmp.eq.s32.totalorder %s83, 1
      %p383 = por %p381, %p382
      %p384 = scmp.ne.s32.totalorder %s376, %s379
      %p385 = scmp.eq.s32.totalorder %s83, 0
      %p386 = por %p384, %p385
      %p387 = scmp.ne.s32.totalorder %s376, %s379
      %p388 = scmp.eq.s32.totalorder %s88, 1
      %p389 = por %p387, %p388
      %p390 = scmp.ne.s32.totalorder %s379, %s380
      %p391 = scmp.eq.s32.totalorder %s88, 0
      %p392 = por %p390, %p391
      %p393 = scmp.ne.s32.totalorder %s379, %s380
      %p394 = scmp.eq.s32.totalorder %s89, 1
      %p395 = por %p393, %p394
      %p397 = scmp.ne.s32.totalorder %s380, %s396
      %p398 = scmp.eq.s32.totalorder %s89, 0
      %p399 = por %p397, %p398
      %s400 = ssub.s32 %s91, %s98
      %p401 = scmp.eq.s32.totalorder %s400, 0
      %s403 = sadd.s32 %s402, 1
      %s404 = scalar_select %p401, %s402, %s403
      %p407 = pneg %p401
      %p408 = scmp.eq.s32.totalorder %s83, 1
      %p409 = por %p407, %p408
      %p410 = scmp.ne.s32.totalorder %s402, %s405
      %p411 = scmp.eq.s32.totalorder %s83, 0
      %p412 = por %p410, %p411
      %p413 = scmp.ne.s32.totalorder %s402, %s405
      %p414 = scmp.eq.s32.totalorder %s88, 1
      %p415 = por %p413, %p414
      %p416 = scmp.ne.s32.totalorder %s405, %s406
      %p417 = scmp.eq.s32.totalorder %s88, 0
      %p418 = por %p416, %p417
      %p419 = scmp.ne.s32.totalorder %s405, %s406
      %p420 = scmp.eq.s32.totalorder %s89, 1
      %p421 = por %p419, %p420
      %p423 = scmp.ne.s32.totalorder %s406, %s422
      %p424 = scmp.eq.s32.totalorder %s89, 0
      %p425 = por %p423, %p424
      %s426 = ssub.s32 %s91, %s98
      %p427 = scmp.eq.s32.totalorder %s426, 0
      %s429 = sadd.s32 %s428, 1
      %s430 = scalar_select %p427, %s428, %s429
      %p433 = pneg %p427
      %p434 = scmp.eq.s32.totalorder %s83, 1
      %p435 = por %p433, %p434
      %p436 = scmp.ne.s32.totalorder %s428, %s431
      %p437 = scmp.eq.s32.totalorder %s83, 0
      %p438 = por %p436, %p437
      %p439 = scmp.ne.s32.totalorder %s428, %s431
      %p440 = scmp.eq.s32.totalorder %s88, 1
      %p441 = por %p439, %p440
      %p442 = scmp.ne.s32.totalorder %s431, %s432
      %p443 = scmp.eq.s32.totalorder %s88, 0
      %p444 = por %p442, %p443
      %p445 = scmp.ne.s32.totalorder %s431, %s432
      %p446 = scmp.eq.s32.totalorder %s89, 1
      %p447 = por %p445, %p446
      %p449 = scmp.ne.s32.totalorder %s432, %s448
      %p450 = scmp.eq.s32.totalorder %s89, 0
      %p451 = por %p449, %p450
      %s452 = ssub.s32 %s91, %s98
      %p453 = scmp.eq.s32.totalorder %s452, 0
      %s455 = sadd.s32 %s454, 1
      %s456 = scalar_select %p453, %s454, %s455
      %p459 = pneg %p453
      %p460 = scmp.eq.s32.totalorder %s83, 1
      %p461 = por %p459, %p460
      %p462 = scmp.ne.s32.totalorder %s454, %s457
      %p463 = scmp.eq.s32.totalorder %s83, 0
      %p464 = por %p462, %p463
      %p465 = scmp.ne.s32.totalorder %s454, %s457
      %p466 = scmp.eq.s32.totalorder %s88, 1
      %p467 = por %p465, %p466
      %p468 = scmp.ne.s32.totalorder %s457, %s458
      %p469 = scmp.eq.s32.totalorder %s88, 0
      %p470 = por %p468, %p469
      %p471 = scmp.ne.s32.totalorder %s457, %s458
      %p472 = scmp.eq.s32.totalorder %s89, 1
      %p473 = por %p471, %p472
      %p475 = scmp.ne.s32.totalorder %s458, %s474
      %p476 = scmp.eq.s32.totalorder %s89, 0
      %p477 = por %p475, %p476
      %s478 = ssub.s32 %s91, %s98
      %p479 = scmp.eq.s32.totalorder %s478, 0
      %s481 = sadd.s32 %s480, 1
      %s482 = scalar_select %p479, %s480, %s481
      %p485 = pneg %p479
      %p486 = scmp.eq.s32.totalorder %s83, 1
      %p487 = por %p485, %p486
      %p488 = scmp.ne.s32.totalorder %s480, %s483
      %p489 = scmp.eq.s32.totalorder %s83, 0
      %p490 = por %p488, %p489
      %p491 = scmp.ne.s32.totalorder %s480, %s483
      %p492 = scmp.eq.s32.totalorder %s88, 1
      %p493 = por %p491, %p492
      %p494 = scmp.ne.s32.totalorder %s483, %s484
      %p495 = scmp.eq.s32.totalorder %s88, 0
      %p496 = por %p494, %p495
      %p497 = scmp.ne.s32.totalorder %s483, %s484
      %p498 = scmp.eq.s32.totalorder %s89, 1
      %p499 = por %p497, %p498
      %p501 = scmp.ne.s32.totalorder %s484, %s500
      %p502 = scmp.eq.s32.totalorder %s89, 0
      %p503 = por %p501, %p502
      %s504 = ssub.s32 %s91, %s98
      %p505 = scmp.eq.s32.totalorder %s504, 0
      %s507 = sadd.s32 %s506, 1
      %s508 = scalar_select %p505, %s506, %s507
      %p511 = pneg %p505
      %p512 = scmp.eq.s32.totalorder %s83, 1
      %p513 = por %p511, %p512
      %p514 = scmp.ne.s32.totalorder %s506, %s509
      %p515 = scmp.eq.s32.totalorder %s83, 0
      %p516 = por %p514, %p515
      %p517 = scmp.ne.s32.totalorder %s506, %s509
      %p518 = scmp.eq.s32.totalorder %s88, 1
      %p519 = por %p517, %p518
      %p520 = scmp.ne.s32.totalorder %s509, %s510
      %p521 = scmp.eq.s32.totalorder %s88, 0
      %p522 = por %p520, %p521
      %p523 = scmp.ne.s32.totalorder %s509, %s510
      %p524 = scmp.eq.s32.totalorder %s89, 1
      %p525 = por %p523, %p524
      %p527 = scmp.ne.s32.totalorder %s510, %s526
      %p528 = scmp.eq.s32.totalorder %s89, 0
      %p529 = por %p527, %p528
      %s530 = ssub.s32 %s91, %s98
      %p531 = scmp.eq.s32.totalorder %s530, 0
      %s533 = sadd.s32 %s532, 1
      %s534 = scalar_select %p531, %s532, %s533
      %p537 = pneg %p531
      %p538 = scmp.eq.s32.totalorder %s83, 1
      %p539 = por %p537, %p538
      %p540 = scmp.ne.s32.totalorder %s532, %s535
      %p541 = scmp.eq.s32.totalorder %s83, 0
      %p542 = por %p540, %p541
      %p543 = scmp.ne.s32.totalorder %s532, %s535
      %p544 = scmp.eq.s32.totalorder %s88, 1
      %p545 = por %p543, %p544
      %p546 = scmp.ne.s32.totalorder %s535, %s536
      %p547 = scmp.eq.s32.totalorder %s88, 0
      %p548 = por %p546, %p547
      %p549 = scmp.ne.s32.totalorder %s535, %s536
      %p550 = scmp.eq.s32.totalorder %s89, 1
      %p551 = por %p549, %p550
      %p553 = scmp.ne.s32.totalorder %s536, %s552
      %p554 = scmp.eq.s32.totalorder %s89, 0
      %p555 = por %p553, %p554
      %s556 = ssub.s32 %s91, %s98
      %p557 = scmp.eq.s32.totalorder %s556, 0
      %s559 = sadd.s32 %s558, 1
      %s560 = scalar_select %p557, %s558, %s559
      %p563 = pneg %p557
      %p564 = scmp.eq.s32.totalorder %s83, 1
      %p565 = por %p563, %p564
      %p566 = scmp.ne.s32.totalorder %s558, %s561
      %p567 = scmp.eq.s32.totalorder %s83, 0
      %p568 = por %p566, %p567
      %p569 = scmp.ne.s32.totalorder %s558, %s561
      %p570 = scmp.eq.s32.totalorder %s88, 1
      %p571 = por %p569, %p570
      %p572 = scmp.ne.s32.totalorder %s561, %s562
      %p573 = scmp.eq.s32.totalorder %s88, 0
      %p574 = por %p572, %p573
      %p575 = scmp.ne.s32.totalorder %s561, %s562
      %p576 = scmp.eq.s32.totalorder %s89, 1
      %p577 = por %p575, %p576
      %p579 = scmp.ne.s32.totalorder %s562, %s578
      %p580 = scmp.eq.s32.totalorder %s89, 0
      %p581 = por %p579, %p580
      %s582 = ssub.s32 %s91, %s98
      %p583 = scmp.eq.s32.totalorder %s582, 0
      %s585 = sadd.s32 %s584, 1
      %s586 = scalar_select %p583, %s584, %s585
      %p589 = pneg %p583
      %p590 = scmp.eq.s32.totalorder %s83, 1
      %p591 = por %p589, %p590
      %p592 = scmp.ne.s32.totalorder %s584, %s587
      %p593 = scmp.eq.s32.totalorder %s83, 0
      %p594 = por %p592, %p593
      %p595 = scmp.ne.s32.totalorder %s584, %s587
      %p596 = scmp.eq.s32.totalorder %s88, 1
      %p597 = por %p595, %p596
      %p598 = scmp.ne.s32.totalorder %s587, %s588
      %p599 = scmp.eq.s32.totalorder %s88, 0
      %p600 = por %p598, %p599
      %p601 = scmp.ne.s32.totalorder %s587, %s588
      %p602 = scmp.eq.s32.totalorder %s89, 1
      %p603 = por %p601, %p602
      %p605 = scmp.ne.s32.totalorder %s588, %s604
      %p606 = scmp.eq.s32.totalorder %s89, 0
      %p607 = por %p605, %p606
      %s608 = ssub.s32 %s91, %s98
      %p609 = scmp.eq.s32.totalorder %s608, 0
      %s611 = sadd.s32 %s610, 1
      %s612 = scalar_select %p609, %s610, %s611
      %p615 = pneg %p609
      %p616 = scmp.eq.s32.totalorder %s83, 1
      %p617 = por %p615, %p616
      %p618 = scmp.ne.s32.totalorder %s610, %s613
      %p619 = scmp.eq.s32.totalorder %s83, 0
      %p620 = por %p618, %p619
      %p621 = scmp.ne.s32.totalorder %s610, %s613
      %p622 = scmp.eq.s32.totalorder %s88, 1
      %p623 = por %p621, %p622
      %p624 = scmp.ne.s32.totalorder %s613, %s614
      %p625 = scmp.eq.s32.totalorder %s88, 0
      %p626 = por %p624, %p625
      %p627 = scmp.ne.s32.totalorder %s613, %s614
      %p628 = scmp.eq.s32.totalorder %s89, 1
      %p629 = por %p627, %p628
      %p631 = scmp.ne.s32.totalorder %s614, %s630
      %p632 = scmp.eq.s32.totalorder %s89, 0
      %p633 = por %p631, %p632
      %s634 = ssub.s32 %s91, %s98
      %p635 = scmp.eq.s32.totalorder %s634, 0
      %s637 = sadd.s32 %s636, 1
      %s638 = scalar_select %p635, %s636, %s637
      %p641 = pneg %p635
      %p642 = scmp.eq.s32.totalorder %s83, 1
      %p643 = por %p641, %p642
      %p644 = scmp.ne.s32.totalorder %s636, %s639
      %p645 = scmp.eq.s32.totalorder %s83, 0
      %p646 = por %p644, %p645
      %p647 = scmp.ne.s32.totalorder %s636, %s639
      %p648 = scmp.eq.s32.totalorder %s88, 1
      %p649 = por %p647, %p648
      %p650 = scmp.ne.s32.totalorder %s639, %s640
      %p651 = scmp.eq.s32.totalorder %s88, 0
      %p652 = por %p650, %p651
      %p653 = scmp.ne.s32.totalorder %s639, %s640
      %p654 = scmp.eq.s32.totalorder %s89, 1
      %p655 = por %p653, %p654
      %p657 = scmp.ne.s32.totalorder %s640, %s656
      %p658 = scmp.eq.s32.totalorder %s89, 0
      %p659 = por %p657, %p658
      %s660 = ssub.s32 %s91, %s98
      %p661 = scmp.eq.s32.totalorder %s660, 0
      %s663 = sadd.s32 %s662, 1
      %s664 = scalar_select %p661, %s662, %s663
      %p667 = pneg %p661
      %p668 = scmp.eq.s32.totalorder %s83, 1
      %p669 = por %p667, %p668
      %p670 = scmp.ne.s32.totalorder %s662, %s665
      %p671 = scmp.eq.s32.totalorder %s83, 0
      %p672 = por %p670, %p671
      %p673 = scmp.ne.s32.totalorder %s662, %s665
      %p674 = scmp.eq.s32.totalorder %s88, 1
      %p675 = por %p673, %p674
      %p676 = scmp.ne.s32.totalorder %s665, %s666
      %p677 = scmp.eq.s32.totalorder %s88, 0
      %p678 = por %p676, %p677
      %p679 = scmp.ne.s32.totalorder %s665, %s666
      %p680 = scmp.eq.s32.totalorder %s89, 1
      %p681 = por %p679, %p680
      %p683 = scmp.ne.s32.totalorder %s666, %s682
      %p684 = scmp.eq.s32.totalorder %s89, 0
      %p685 = por %p683, %p684
      %s686 = ssub.s32 %s91, %s98
      %p687 = scmp.eq.s32.totalorder %s686, 0
      %s689 = sadd.s32 %s688, 1
      %s690 = scalar_select %p687, %s688, %s689
      %p693 = pneg %p687
      %p694 = scmp.eq.s32.totalorder %s83, 1
      %p695 = por %p693, %p694
      %p696 = scmp.ne.s32.totalorder %s688, %s691
      %p697 = scmp.eq.s32.totalorder %s83, 0
      %p698 = por %p696, %p697
      %p699 = scmp.ne.s32.totalorder %s688, %s691
      %p700 = scmp.eq.s32.totalorder %s88, 1
      %p701 = por %p699, %p700
      %p702 = scmp.ne.s32.totalorder %s691, %s692
      %p703 = scmp.eq.s32.totalorder %s88, 0
      %p704 = por %p702, %p703
      %p705 = scmp.ne.s32.totalorder %s691, %s692
      %p706 = scmp.eq.s32.totalorder %s89, 1
      %p707 = por %p705, %p706
      %p709 = scmp.ne.s32.totalorder %s692, %s708
      %p710 = scmp.eq.s32.totalorder %s89, 0
      %p711 = por %p709, %p710
      %s712 = ssub.s32 %s91, %s98
      %p713 = scmp.eq.s32.totalorder %s712, 0
      %s715 = sadd.s32 %s714, 1
      %s716 = scalar_select %p713, %s714, %s715
      %p719 = pneg %p713
      %p720 = scmp.eq.s32.totalorder %s83, 1
      %p721 = por %p719, %p720
      %p722 = scmp.ne.s32.totalorder %s714, %s717
      %p723 = scmp.eq.s32.totalorder %s83, 0
      %p724 = por %p722, %p723
      %p725 = scmp.ne.s32.totalorder %s714, %s717
      %p726 = scmp.eq.s32.totalorder %s88, 1
      %p727 = por %p725, %p726
      %p728 = scmp.ne.s32.totalorder %s717, %s718
      %p729 = scmp.eq.s32.totalorder %s88, 0
      %p730 = por %p728, %p729
      %p731 = scmp.ne.s32.totalorder %s717, %s718
      %p732 = scmp.eq.s32.totalorder %s89, 1
      %p733 = por %p731, %p732
      %p735 = scmp.ne.s32.totalorder %s718, %s734
      %p736 = scmp.eq.s32.totalorder %s89, 0
      %p737 = por %p735, %p736
      %s738 = ssub.s32 %s91, %s98
      %p739 = scmp.eq.s32.totalorder %s738, 0
      %s741 = sadd.s32 %s740, 1
      %s742 = scalar_select %p739, %s740, %s741
      %p745 = pneg %p739
      %p746 = scmp.eq.s32.totalorder %s83, 1
      %p747 = por %p745, %p746
      %p748 = scmp.ne.s32.totalorder %s740, %s743
      %p749 = scmp.eq.s32.totalorder %s83, 0
      %p750 = por %p748, %p749
      %p751 = scmp.ne.s32.totalorder %s740, %s743
      %p752 = scmp.eq.s32.totalorder %s88, 1
      %p753 = por %p751, %p752
      %p754 = scmp.ne.s32.totalorder %s743, %s744
      %p755 = scmp.eq.s32.totalorder %s88, 0
      %p756 = por %p754, %p755
      %p757 = scmp.ne.s32.totalorder %s743, %s744
      %p758 = scmp.eq.s32.totalorder %s89, 1
      %p759 = por %p757, %p758
      %p761 = scmp.ne.s32.totalorder %s744, %s760
      %p762 = scmp.eq.s32.totalorder %s89, 0
      %p763 = por %p761, %p762
      %s764 = ssub.s32 %s91, %s98
      %p765 = scmp.eq.s32.totalorder %s764, 0
      %s767 = sadd.s32 %s766, 1
      %s768 = scalar_select %p765, %s766, %s767
      %p771 = pneg %p765
      %p772 = scmp.eq.s32.totalorder %s83, 1
      %p773 = por %p771, %p772
      %p774 = scmp.ne.s32.totalorder %s766, %s769
      %p775 = scmp.eq.s32.totalorder %s83, 0
      %p776 = por %p774, %p775
      %p777 = scmp.ne.s32.totalorder %s766, %s769
      %p778 = scmp.eq.s32.totalorder %s88, 1
      %p779 = por %p777, %p778
      %p780 = scmp.ne.s32.totalorder %s769, %s770
      %p781 = scmp.eq.s32.totalorder %s88, 0
      %p782 = por %p780, %p781
      %p783 = scmp.ne.s32.totalorder %s769, %s770
      %p784 = scmp.eq.s32.totalorder %s89, 1
      %p785 = por %p783, %p784
      %p787 = scmp.ne.s32.totalorder %s770, %s786
      %p788 = scmp.eq.s32.totalorder %s89, 0
      %p789 = por %p787, %p788
      %s790 = ssub.s32 %s91, %s98
      %p791 = scmp.eq.s32.totalorder %s790, 0
      %s793 = sadd.s32 %s792, 1
      %s794 = scalar_select %p791, %s792, %s793
      %p797 = pneg %p791
      %p798 = scmp.eq.s32.totalorder %s83, 1
      %p799 = por %p797, %p798
      %p800 = scmp.ne.s32.totalorder %s792, %s795
      %p801 = scmp.eq.s32.totalorder %s83, 0
      %p802 = por %p800, %p801
      %p803 = scmp.ne.s32.totalorder %s792, %s795
      %p804 = scmp.eq.s32.totalorder %s88, 1
      %p805 = por %p803, %p804
      %p806 = scmp.ne.s32.totalorder %s795, %s796
      %p807 = scmp.eq.s32.totalorder %s88, 0
      %p808 = por %p806, %p807
      %p809 = scmp.ne.s32.totalorder %s795, %s796
      %p810 = scmp.eq.s32.totalorder %s89, 1
      %p811 = por %p809, %p810
      %p813 = scmp.ne.s32.totalorder %s796, %s812
      %p814 = scmp.eq.s32.totalorder %s89, 0
      %p815 = por %p813, %p814
      %s816 = ssub.s32 %s91, %s98
      %p817 = scmp.eq.s32.totalorder %s816, 0
      %s819 = sadd.s32 %s818, 1
      %s820 = scalar_select %p817, %s818, %s819
      %p823 = pneg %p817
      %p824 = scmp.eq.s32.totalorder %s83, 1
      %p825 = por %p823, %p824
      %p826 = scmp.ne.s32.totalorder %s818, %s821
      %p827 = scmp.eq.s32.totalorder %s83, 0
      %p828 = por %p826, %p827
      %p829 = scmp.ne.s32.totalorder %s818, %s821
      %p830 = scmp.eq.s32.totalorder %s88, 1
      %p831 = por %p829, %p830
      %p832 = scmp.ne.s32.totalorder %s821, %s822
      %p833 = scmp.eq.s32.totalorder %s88, 0
      %p834 = por %p832, %p833
      %p835 = scmp.ne.s32.totalorder %s821, %s822
      %p836 = scmp.eq.s32.totalorder %s89, 1
      %p837 = por %p835, %p836
      %p839 = scmp.ne.s32.totalorder %s822, %s838
      %p840 = scmp.eq.s32.totalorder %s89, 0
      %p841 = por %p839, %p840
      %s842 = ssub.s32 %s91, %s98
      %s843 = ssub.s32 %s90, %s102
      %s844 = sor.u32 %s842, %s843
      %p845 = scmp.eq.s32.totalorder %s844, 0
      %s847 = sadd.s32 %s846, 1
      %s848 = scalar_select %p845, %s846, %s847
      %p851 = pneg %p845
      %p852 = scmp.eq.s32.totalorder %s83, 1
      %p853 = por %p851, %p852
      %p854 = scmp.ne.s32.totalorder %s846, %s849
      %p855 = scmp.eq.s32.totalorder %s83, 0
      %p856 = por %p854, %p855
      %p857 = scmp.ne.s32.totalorder %s846, %s849
      %p858 = scmp.eq.s32.totalorder %s88, 1
      %p859 = por %p857, %p858
      %p860 = scmp.ne.s32.totalorder %s849, %s850
      %p861 = scmp.eq.s32.totalorder %s88, 0
      %p862 = por %p860, %p861
      %p863 = scmp.ne.s32.totalorder %s849, %s850
      %p864 = scmp.eq.s32.totalorder %s89, 1
      %p865 = por %p863, %p864
      %p867 = scmp.ne.s32.totalorder %s850, %s866
      %p868 = scmp.eq.s32.totalorder %s89, 0
      %p869 = por %p867, %p868
      %p870 = scmp.le.s32.totalorder 1, %s83
      %p871 = scmp.lt.s32.totalorder %s83, 3
      %p872 = pnand %p870, %p871
      %p873 = pneg %p872
      // Predicated region
      $region9: #{transformer_forward.3} parent=5 // pred_check
        _
      $region10: #{transformer_forward.3} parent=5 // pred_check_branch
        %875 = sbr.rel (%p872) target = $region12
      $region11: #{transformer_forward.3} parent=5 // pred_region
        %s876 = ssub.s32 %s83, 1
        // Predicated region
        $region13: #{transformer_forward.3} parent=11 // pred_check
          %p877 = pneg %p121
        $region14: #{transformer_forward.3} parent=11 // pred_check_branch
          %879 = sbr.rel (%p877) target = $region16
        $region15: #{transformer_forward.3} parent=11 // pred_region
          %s880 = smul.u32 2, %s92
          %p881 = scmp.lt.s32.totalorder %s880, 1
          %s882 = scalar_select %p881, %s880, 1
          %s883 = smul.addr %s882, 8
          %s884 = scalar_lea.vmem %s1, %s883
          %s885 = smul.u32 2, %s92
        $region16: #{transformer_forward.3} parent=11 // pred_fallthru
          _
        // Predicated region
        $region17: #{transformer_forward.3} parent=11 // pred_check
          %p886 = pneg %p142
        $region18: #{transformer_forward.3} parent=11 // pred_check_branch
          %888 = sbr.rel (%p886) target = $region20
        $region19: #{transformer_forward.3} parent=11 // pred_region
          _
        $region20: #{transformer_forward.3} parent=11 // pred_fallthru
          _
        // Predicated region
        $region21: #{transformer_forward.3} parent=11 // pred_check
          %p889 = pneg %p168
        $region22: #{transformer_forward.3} parent=11 // pred_check_branch
          %891 = sbr.rel (%p889) target = $region24
        $region23: #{transformer_forward.3} parent=11 // pred_region
          %s892 = smul.u32 2, %s92
          %p893 = scmp.lt.s32.totalorder %s892, 1
          %s894 = scalar_select %p893, %s892, 1
          %s895 = smul.addr %s894, 8
          %s896 = scalar_lea.vmem %s5, %s895
          %s897 = smul.u32 2, %s92
        $region24: #{transformer_forward.3} parent=11 // pred_fallthru
          _
        // Predicated region
        $region25: #{transformer_forward.3} parent=11 // pred_check
          %p898 = pneg %p189
        $region26: #{transformer_forward.3} parent=11 // pred_check_branch
          %900 = sbr.rel (%p898) target = $region28
        $region27: #{transformer_forward.3} parent=11 // pred_region
          _
        $region28: #{transformer_forward.3} parent=11 // pred_fallthru
          _
        // Predicated region
        $region29: #{transformer_forward.3} parent=11 // pred_check
          %p901 = pneg %p210
        $region30: #{transformer_forward.3} parent=11 // pred_check_branch
          %903 = sbr.rel (%p901) target = $region32
        $region31: #{transformer_forward.3} parent=11 // pred_region
          _
        $region32: #{transformer_forward.3} parent=11 // pred_fallthru
          _
      $region12: #{transformer_forward.3} parent=5 // pred_fallthru
        _
      %p904 = scmp.lt.s32.totalorder %s83, 2
      // Predicated region
      $region33: #{transformer_forward.3} parent=5 // pred_check
        %p905 = pneg %p904
      $region34: #{transformer_forward.3} parent=5 // pred_check_branch
        %907 = sbr.rel (%p905) target = $region36
      $region35: #{transformer_forward.3} parent=5 // pred_region
        // Predicated region
        $region37: #{transformer_forward.3} parent=35 // pred_check
          %p908 = pneg %p230
        $region38: #{transformer_forward.3} parent=35 // pred_check_branch
          %910 = sbr.rel (%p908) target = $region40
        $region39: #{transformer_forward.3} parent=35 // pred_region
          %p911 = scmp.lt.s32.totalorder %s91, 1
          %s912 = scalar_select %p911, %s91, 1
          %s913 = smul.addr %s912, 4
          %s914 = smul.addr %s913, 4
          %s915 = scalar_lea.vmem %s11, %s914
        $region40: #{transformer_forward.3} parent=35 // pred_fallthru
          _
        // Predicated region
        $region41: #{transformer_forward.3} parent=35 // pred_check
          %p916 = pneg %p256
        $region42: #{transformer_forward.3} parent=35 // pred_check_branch
          %918 = sbr.rel (%p916) target = $region44
        $region43: #{transformer_forward.3} parent=35 // pred_region
          %p919 = scmp.lt.s32.totalorder %s91, 1
          %s920 = scalar_select %p919, %s91, 1
          %s921 = scalar_lea.vmem %s13, %s920
        $region44: #{transformer_forward.3} parent=35 // pred_fallthru
          _
        // Predicated region
        $region45: #{transformer_forward.3} parent=35 // pred_check
          %p922 = pneg %p282
        $region46: #{transformer_forward.3} parent=35 // pred_check_branch
          %924 = sbr.rel (%p922) target = $region48
        $region47: #{transformer_forward.3} parent=35 // pred_region
          %p925 = scmp.lt.s32.totalorder %s91, 1
          %s926 = scalar_select %p925, %s91, 1
          %s927 = smul.addr %s926, 4
          %s928 = smul.addr %s927, 4
          %s929 = scalar_lea.vmem %s15, %s928
        $region48: #{transformer_forward.3} parent=35 // pred_fallthru
          _
        // Predicated region
        $region49: #{transformer_forward.3} parent=35 // pred_check
          %p930 = pneg %p308
        $region50: #{transformer_forward.3} parent=35 // pred_check_branch
          %932 = sbr.rel (%p930) target = $region52
        $region51: #{transformer_forward.3} parent=35 // pred_region
          %p933 = scmp.lt.s32.totalorder %s91, 1
          %s934 = scalar_select %p933, %s91, 1
          %s935 = scalar_lea.vmem %s17, %s934
        $region52: #{transformer_forward.3} parent=35 // pred_fallthru
          _
        // Predicated region
        $region53: #{transformer_forward.3} parent=35 // pred_check
          %p936 = pneg %p334
        $region54: #{transformer_forward.3} parent=35 // pred_check_branch
          %938 = sbr.rel (%p936) target = $region56
        $region55: #{transformer_forward.3} parent=35 // pred_region
          %p939 = scmp.lt.s32.totalorder %s91, 1
          %s940 = scalar_select %p939, %s91, 1
          %s941 = smul.addr %s940, 4
          %s942 = smul.addr %s941, 4
          %s943 = scalar_lea.vmem %s19, %s942
        $region56: #{transformer_forward.3} parent=35 // pred_fallthru
          _
        // Predicated region
        $region57: #{transformer_forward.3} parent=35 // pred_check
          %p944 = pneg %p360
        $region58: #{transformer_forward.3} parent=35 // pred_check_branch
          %946 = sbr.rel (%p944) target = $region60
        $region59: #{transformer_forward.3} parent=35 // pred_region
          %p947 = scmp.lt.s32.totalorder %s91, 1
          %s948 = scalar_select %p947, %s91, 1
          %s949 = scalar_lea.vmem %s21, %s948
        $region60: #{transformer_forward.3} parent=35 // pred_fallthru
          _
        // Predicated region
        $region61: #{transformer_forward.3} parent=35 // pred_check
          %p950 = pneg %p386
        $region62: #{transformer_forward.3} parent=35 // pred_check_branch
          %952 = sbr.rel (%p950) target = $region64
        $region63: #{transformer_forward.3} parent=35 // pred_region
          %s953 = sand.u32 %s376, 1
          %s954 = scalar_lea.sflag [#allocation6], %s953
          %s955 = sand.u32 %s376, 1
          %s956 = smul.addr %s955, 16
          %s957 = scalar_lea.vmem [#allocation5], %s956
          %959 = vsyncadd %s954, 0
          %s960 = smul.addr %s91, 4
          %s961 = smul.addr %s960, 4
          %s962 = scalar_lea.hbm %s23, %s961
          %s963 = sshll.u32 %s962, 4
          %s964 = int_to_ptr.hbm [resolvable:$true] %s963
          %s965 = sshll.u32 %s957, 4
          %s966 = int_to_ptr.vmem [resolvable:$true] %s965
          %971 = dma.hbm_to_vmem [thread:$0]  %s964, 256, %s966, %s954, 64, 64, 4
        $region64: #{transformer_forward.3} parent=35 // pred_fallthru
          _
        // Predicated region
        $region65: #{transformer_forward.3} parent=35 // pred_check
          %p972 = pneg %p412
        $region66: #{transformer_forward.3} parent=35 // pred_check_branch
          %974 = sbr.rel (%p972) target = $region68
        $region67: #{transformer_forward.3} parent=35 // pred_region
          %p975 = scmp.lt.s32.totalorder %s91, 1
          %s976 = scalar_select %p975, %s91, 1
          %s977 = scalar_lea.vmem %s25, %s976
        $region68: #{transformer_forward.3} parent=35 // pred_fallthru
          _
        // Predicated region
        $region69: #{transformer_forward.3} parent=35 // pred_check
          %p978 = pneg %p438
        $region70: #{transformer_forward.3} parent=35 // pred_check_branch
          %980 = sbr.rel (%p978) target = $region72
        $region71: #{transformer_forward.3} parent=35 // pred_region
          %s981 = sand.u32 %s83, 1
          %s982 = scalar_lea.sflag [#allocation8], %s981
          %s983 = sand.u32 %s428, 1
          %s984 = smul.addr %s983, 16
          %s985 = scalar_lea.vmem [#allocation7], %s984
          %987 = vsyncadd %s982, 0
          %s988 = smul.addr %s91, 4
          %s989 = smul.addr %s988, 4
          %s990 = scalar_lea.hbm %s27, %s989
          %s991 = sshll.u32 %s990, 4
          %s992 = int_to_ptr.hbm [resolvable:$true] %s991
          %s993 = sshll.u32 %s985, 4
          %s994 = int_to_ptr.vmem [resolvable:$true] %s993
          %999 = dma.hbm_to_vmem [thread:$0]  %s992, 256, %s994, %s982, 64, 64, 4
        $region72: #{transformer_forward.3} parent=35 // pred_fallthru
          _
        // Predicated region
        $region73: #{transformer_forward.3} parent=35 // pred_check
          %p1000 = pneg %p464
        $region74: #{transformer_forward.3} parent=35 // pred_check_branch
          %1002 = sbr.rel (%p1000) target = $region76
        $region75: #{transformer_forward.3} parent=35 // pred_region
          %p1003 = scmp.lt.s32.totalorder %s91, 1
          %s1004 = scalar_select %p1003, %s91, 1
          %s1005 = scalar_lea.vmem %s29, %s1004
        $region76: #{transformer_forward.3} parent=35 // pred_fallthru
          _
        // Predicated region
        $region77: #{transformer_forward.3} parent=35 // pred_check
          %p1006 = pneg %p490
        $region78: #{transformer_forward.3} parent=35 // pred_check_branch
          %1008 = sbr.rel (%p1006) target = $region80
        $region79: #{transformer_forward.3} parent=35 // pred_region
          %s1009 = sand.u32 %s83, 1
          %s1010 = scalar_lea.sflag [#allocation8], %s1009
          %s1011 = sand.u32 %s480, 1
          %s1012 = smul.addr %s1011, 16
          %s1013 = scalar_lea.vmem [#allocation9], %s1012
          %1015 = vsyncadd %s1010, 0
          %s1016 = smul.addr %s91, 4
          %s1017 = smul.addr %s1016, 4
          %s1018 = scalar_lea.hbm %s31, %s1017
          %s1019 = sshll.u32 %s1018, 4
          %s1020 = int_to_ptr.hbm [resolvable:$true] %s1019
          %s1021 = sshll.u32 %s1013, 4
          %s1022 = int_to_ptr.vmem [resolvable:$true] %s1021
          %1027 = dma.hbm_to_vmem [thread:$0]  %s1020, 256, %s1022, %s1010, 64, 64, 4
        $region80: #{transformer_forward.3} parent=35 // pred_fallthru
          _
        // Predicated region
        $region81: #{transformer_forward.3} parent=35 // pred_check
          %p1028 = pneg %p516
        $region82: #{transformer_forward.3} parent=35 // pred_check_branch
          %1030 = sbr.rel (%p1028) target = $region84
        $region83: #{transformer_forward.3} parent=35 // pred_region
          %p1031 = scmp.lt.s32.totalorder %s91, 1
          %s1032 = scalar_select %p1031, %s91, 1
          %s1033 = scalar_lea.vmem %s33, %s1032
        $region84: #{transformer_forward.3} parent=35 // pred_fallthru
          _
        // Predicated region
        $region85: #{transformer_forward.3} parent=35 // pred_check
          %p1034 = pneg %p542
        $region86: #{transformer_forward.3} parent=35 // pred_check_branch
          %1036 = sbr.rel (%p1034) target = $region88
        $region87: #{transformer_forward.3} parent=35 // pred_region
          %s1037 = sand.u32 %s83, 1
          %s1038 = scalar_lea.sflag [#allocation11], %s1037
          %s1039 = sand.u32 %s532, 1
          %s1040 = smul.addr %s1039, 16
          %s1041 = scalar_lea.vmem [#allocation10], %s1040
          %1043 = vsyncadd %s1038, 0
          %s1044 = smul.addr %s91, 4
          %s1045 = smul.addr %s1044, 4
          %s1046 = scalar_lea.hbm %s35, %s1045
          %s1047 = sshll.u32 %s1046, 4
          %s1048 = int_to_ptr.hbm [resolvable:$true] %s1047
          %s1049 = sshll.u32 %s1041, 4
          %s1050 = int_to_ptr.vmem [resolvable:$true] %s1049
          %1055 = dma.hbm_to_vmem [thread:$0]  %s1048, 256, %s1050, %s1038, 64, 64, 4
        $region88: #{transformer_forward.3} parent=35 // pred_fallthru
          _
        // Predicated region
        $region89: #{transformer_forward.3} parent=35 // pred_check
          %p1056 = pneg %p568
        $region90: #{transformer_forward.3} parent=35 // pred_check_branch
          %1058 = sbr.rel (%p1056) target = $region92
        $region91: #{transformer_forward.3} parent=35 // pred_region
          %p1059 = scmp.lt.s32.totalorder %s91, 1
          %s1060 = scalar_select %p1059, %s91, 1
          %s1061 = scalar_lea.vmem %s37, %s1060
        $region92: #{transformer_forward.3} parent=35 // pred_fallthru
          _
        // Predicated region
        $region93: #{transformer_forward.3} parent=35 // pred_check
          %p1062 = pneg %p594
        $region94: #{transformer_forward.3} parent=35 // pred_check_branch
          %1064 = sbr.rel (%p1062) target = $region96
        $region95: #{transformer_forward.3} parent=35 // pred_region
          %s1065 = sand.u32 %s83, 1
          %s1066 = scalar_lea.sflag [#allocation11], %s1065
          %s1067 = sand.u32 %s584, 1
          %s1068 = smul.addr %s1067, 16
          %s1069 = scalar_lea.vmem [#allocation12], %s1068
          %1071 = vsyncadd %s1066, 0
          %s1072 = smul.addr %s91, 4
          %s1073 = smul.addr %s1072, 4
          %s1074 = scalar_lea.hbm %s39, %s1073
          %s1075 = sshll.u32 %s1074, 4
          %s1076 = int_to_ptr.hbm [resolvable:$true] %s1075
          %s1077 = sshll.u32 %s1069, 4
          %s1078 = int_to_ptr.vmem [resolvable:$true] %s1077
          %1083 = dma.hbm_to_vmem [thread:$0]  %s1076, 256, %s1078, %s1066, 64, 64, 4
        $region96: #{transformer_forward.3} parent=35 // pred_fallthru
          _
        // Predicated region
        $region97: #{transformer_forward.3} parent=35 // pred_check
          %p1084 = pneg %p620
        $region98: #{transformer_forward.3} parent=35 // pred_check_branch
          %1086 = sbr.rel (%p1084) target = $region100
        $region99: #{transformer_forward.3} parent=35 // pred_region
          %p1087 = scmp.lt.s32.totalorder %s91, 1
          %s1088 = scalar_select %p1087, %s91, 1
          %s1089 = scalar_lea.vmem %s41, %s1088
        $region100: #{transformer_forward.3} parent=35 // pred_fallthru
          _
        // Predicated region
        $region101: #{transformer_forward.3} parent=35 // pred_check
          %p1090 = pneg %p646
        $region102: #{transformer_forward.3} parent=35 // pred_check_branch
          %1092 = sbr.rel (%p1090) target = $region104
        $region103: #{transformer_forward.3} parent=35 // pred_region
          %p1093 = scmp.lt.s32.totalorder %s91, 1
          %s1094 = scalar_select %p1093, %s91, 1
          %s1095 = smul.addr %s1094, 8
          %s1096 = smul.addr %s1095, 4
          %s1097 = scalar_lea.vmem %s43, %s1096
        $region104: #{transformer_forward.3} parent=35 // pred_fallthru
          _
        // Predicated region
        $region105: #{transformer_forward.3} parent=35 // pred_check
          %p1098 = pneg %p672
        $region106: #{transformer_forward.3} parent=35 // pred_check_branch
          %1100 = sbr.rel (%p1098) target = $region108
        $region107: #{transformer_forward.3} parent=35 // pred_region
          %p1101 = scmp.lt.s32.totalorder %s91, 1
          %s1102 = scalar_select %p1101, %s91, 1
          %s1103 = scalar_lea.vmem %s45, %s1102
        $region108: #{transformer_forward.3} parent=35 // pred_fallthru
          _
        // Predicated region
        $region109: #{transformer_forward.3} parent=35 // pred_check
          %p1104 = pneg %p698
        $region110: #{transformer_forward.3} parent=35 // pred_check_branch
          %1106 = sbr.rel (%p1104) target = $region112
        $region111: #{transformer_forward.3} parent=35 // pred_region
          %s1107 = sand.u32 %s83, 1
          %s1108 = scalar_lea.sflag [#allocation14], %s1107
          %s1109 = sand.u32 %s688, 1
          %s1110 = scalar_lea.vmem [#allocation13], %s1109
          %1112 = vsyncadd %s1108, 0
          %s1113 = scalar_lea.hbm %s47, %s91
          %s1115 = sshll.u32 %s1113, 4
          %s1116 = int_to_ptr.hbm [resolvable:$true] %s1115
          %s1117 = sshll.u32 %s1110, 4
          %s1118 = int_to_ptr.vmem [resolvable:$true] %s1117
          %1120 = dma.hbm_to_vmem [thread:$0]  %s1116, 16, %s1118, %s1108
        $region112: #{transformer_forward.3} parent=35 // pred_fallthru
          _
        // Predicated region
        $region113: #{transformer_forward.3} parent=35 // pred_check
          %p1121 = pneg %p724
        $region114: #{transformer_forward.3} parent=35 // pred_check_branch
          %1123 = sbr.rel (%p1121) target = $region116
        $region115: #{transformer_forward.3} parent=35 // pred_region
          %s1124 = sand.u32 %s83, 1
          %s1125 = scalar_lea.sflag [#allocation14], %s1124
          %s1126 = sand.u32 %s714, 1
          %s1127 = scalar_lea.vmem [#allocation15], %s1126
          %1129 = vsyncadd %s1125, 0
          %s1130 = scalar_lea.hbm %s49, %s91
          %s1132 = sshll.u32 %s1130, 4
          %s1133 = int_to_ptr.hbm [resolvable:$true] %s1132
          %s1134 = sshll.u32 %s1127, 4
          %s1135 = int_to_ptr.vmem [resolvable:$true] %s1134
          %1137 = dma.hbm_to_vmem [thread:$0]  %s1133, 16, %s1135, %s1125
        $region116: #{transformer_forward.3} parent=35 // pred_fallthru
          _
        // Predicated region
        $region117: #{transformer_forward.3} parent=35 // pred_check
          %p1138 = pneg %p750
        $region118: #{transformer_forward.3} parent=35 // pred_check_branch
          %1140 = sbr.rel (%p1138) target = $region120
        $region119: #{transformer_forward.3} parent=35 // pred_region
          %s1141 = sand.u32 %s83, 1
          %s1142 = scalar_lea.sflag [#allocation17], %s1141
          %s1143 = sand.u32 %s740, 1
          %s1144 = scalar_lea.vmem [#allocation16], %s1143
          %1146 = vsyncadd %s1142, 0
          %s1147 = scalar_lea.hbm %s51, %s91
          %s1149 = sshll.u32 %s1147, 4
          %s1150 = int_to_ptr.hbm [resolvable:$true] %s1149
          %s1151 = sshll.u32 %s1144, 4
          %s1152 = int_to_ptr.vmem [resolvable:$true] %s1151
          %1154 = dma.hbm_to_vmem [thread:$0]  %s1150, 16, %s1152, %s1142
        $region120: #{transformer_forward.3} parent=35 // pred_fallthru
          _
        // Predicated region
        $region121: #{transformer_forward.3} parent=35 // pred_check
          %p1155 = pneg %p776
        $region122: #{transformer_forward.3} parent=35 // pred_check_branch
          %1157 = sbr.rel (%p1155) target = $region124
        $region123: #{transformer_forward.3} parent=35 // pred_region
          %s1158 = sand.u32 %s83, 1
          %s1159 = scalar_lea.sflag [#allocation17], %s1158
          %s1160 = sand.u32 %s766, 1
          %s1161 = scalar_lea.vmem [#allocation18], %s1160
          %1163 = vsyncadd %s1159, 0
          %s1164 = scalar_lea.hbm %s53, %s91
          %s1166 = sshll.u32 %s1164, 4
          %s1167 = int_to_ptr.hbm [resolvable:$true] %s1166
          %s1168 = sshll.u32 %s1161, 4
          %s1169 = int_to_ptr.vmem [resolvable:$true] %s1168
          %1171 = dma.hbm_to_vmem [thread:$0]  %s1167, 16, %s1169, %s1159
        $region124: #{transformer_forward.3} parent=35 // pred_fallthru
          _
        // Predicated region
        $region125: #{transformer_forward.3} parent=35 // pred_check
          %p1172 = pneg %p802
        $region126: #{transformer_forward.3} parent=35 // pred_check_branch
          %1174 = sbr.rel (%p1172) target = $region128
        $region127: #{transformer_forward.3} parent=35 // pred_region
          %s1175 = sand.u32 %s83, 1
          %s1176 = scalar_lea.sflag [#allocation20], %s1175
          %s1177 = sand.u32 %s792, 1
          %s1178 = scalar_lea.vmem [#allocation19], %s1177
          %1180 = vsyncadd %s1176, 0
          %s1181 = scalar_lea.hbm %s55, %s91
          %s1183 = sshll.u32 %s1181, 4
          %s1184 = int_to_ptr.hbm [resolvable:$true] %s1183
          %s1185 = sshll.u32 %s1178, 4
          %s1186 = int_to_ptr.vmem [resolvable:$true] %s1185
          %1188 = dma.hbm_to_vmem [thread:$0]  %s1184, 16, %s1186, %s1176
        $region128: #{transformer_forward.3} parent=35 // pred_fallthru
          _
        // Predicated region
        $region129: #{transformer_forward.3} parent=35 // pred_check
          %p1189 = pneg %p828
        $region130: #{transformer_forward.3} parent=35 // pred_check_branch
          %1191 = sbr.rel (%p1189) target = $region132
        $region131: #{transformer_forward.3} parent=35 // pred_region
          %s1192 = sand.u32 %s83, 1
          %s1193 = scalar_lea.sflag [#allocation20], %s1192
          %s1194 = sand.u32 %s818, 1
          %s1195 = scalar_lea.vmem [#allocation21], %s1194
          %1197 = vsyncadd %s1193, 0
          %s1198 = scalar_lea.hbm %s57, %s91
          %s1200 = sshll.u32 %s1198, 4
          %s1201 = int_to_ptr.hbm [resolvable:$true] %s1200
          %s1202 = sshll.u32 %s1195, 4
          %s1203 = int_to_ptr.vmem [resolvable:$true] %s1202
          %1205 = dma.hbm_to_vmem [thread:$0]  %s1201, 16, %s1203, %s1193
        $region132: #{transformer_forward.3} parent=35 // pred_fallthru
          _
      $region36: #{transformer_forward.3} parent=5 // pred_fallthru
        _
      %p1206 = scmp.le.s32.totalorder 1, %s83
      %p1207 = scmp.lt.s32.totalorder %s83, 3
      %p1208 = pnand %p1206, %p1207
      %p1209 = pneg %p1208
      // Predicated region
      $region133: #{transformer_forward.3} parent=5 // pred_check
        _
      $region134: #{transformer_forward.3} parent=5 // pred_check_branch
        %1211 = sbr.rel (%p1208) target = $region136
      $region135: #{transformer_forward.3} parent=5 // pred_region
        %s1212 = ssub.s32 %s83, 1
        %s1213 = sand.u32 %s379, 1
        %s1214 = scalar_lea.sflag [#allocation6], %s1213
        %s1215 = sand.u32 %s379, 1
        %s1216 = smul.addr %s1215, 16
        %s1217 = scalar_lea.vmem [#allocation5], %s1216
        // Predicated region
        $region137: #{transformer_forward.3} parent=135 // pred_check
          %p1218 = pneg %p392
        $region138: #{transformer_forward.3} parent=135 // pred_check_branch
          %1220 = sbr.rel (%p1218) target = $region140
        $region139: #{transformer_forward.3} parent=135 // pred_region
          %1222 = dma.done %s1214, 256
        $region140: #{transformer_forward.3} parent=135 // pred_fallthru
          _
        %s1223 = sand.u32 %s88, 1
        %s1224 = scalar_lea.sflag [#allocation8], %s1223
        %s1225 = sand.u32 %s431, 1
        %s1226 = smul.addr %s1225, 16
        %s1227 = scalar_lea.vmem [#allocation7], %s1226
        // Predicated region
        $region141: #{transformer_forward.3} parent=135 // pred_check
          %p1228 = pneg %p444
        $region142: #{transformer_forward.3} parent=135 // pred_check_branch
          %1230 = sbr.rel (%p1228) target = $region144
        $region143: #{transformer_forward.3} parent=135 // pred_region
          %1232 = dma.done %s1224, 256
        $region144: #{transformer_forward.3} parent=135 // pred_fallthru
          _
        %s1233 = sand.u32 %s88, 1
        %s1234 = scalar_lea.sflag [#allocation8], %s1233
        %s1235 = sand.u32 %s483, 1
        %s1236 = smul.addr %s1235, 16
        %s1237 = scalar_lea.vmem [#allocation9], %s1236
        // Predicated region
        $region145: #{transformer_forward.3} parent=135 // pred_check
          %p1238 = pneg %p496
        $region146: #{transformer_forward.3} parent=135 // pred_check_branch
          %1240 = sbr.rel (%p1238) target = $region148
        $region147: #{transformer_forward.3} parent=135 // pred_region
          %1242 = dma.done %s1234, 256
        $region148: #{transformer_forward.3} parent=135 // pred_fallthru
          _
        %s1243 = sand.u32 %s88, 1
        %s1244 = scalar_lea.sflag [#allocation11], %s1243
        %s1245 = sand.u32 %s535, 1
        %s1246 = smul.addr %s1245, 16
        %s1247 = scalar_lea.vmem [#allocation10], %s1246
        // Predicated region
        $region149: #{transformer_forward.3} parent=135 // pred_check
          %p1248 = pneg %p548
        $region150: #{transformer_forward.3} parent=135 // pred_check_branch
          %1250 = sbr.rel (%p1248) target = $region152
        $region151: #{transformer_forward.3} parent=135 // pred_region
          %1252 = dma.done %s1244, 256
        $region152: #{transformer_forward.3} parent=135 // pred_fallthru
          _
        %s1253 = sand.u32 %s88, 1
        %s1254 = scalar_lea.sflag [#allocation11], %s1253
        %s1255 = sand.u32 %s587, 1
        %s1256 = smul.addr %s1255, 16
        %s1257 = scalar_lea.vmem [#allocation12], %s1256
        // Predicated region
        $region153: #{transformer_forward.3} parent=135 // pred_check
          %p1258 = pneg %p600
        $region154: #{transformer_forward.3} parent=135 // pred_check_branch
          %1260 = sbr.rel (%p1258) target = $region156
        $region155: #{transformer_forward.3} parent=135 // pred_region
          %1262 = dma.done %s1254, 256
        $region156: #{transformer_forward.3} parent=135 // pred_fallthru
          _
        %s1263 = sand.u32 %s88, 1
        %s1264 = scalar_lea.sflag [#allocation14], %s1263
        %s1265 = sand.u32 %s691, 1
        %s1266 = scalar_lea.vmem [#allocation13], %s1265
        // Predicated region
        $region157: #{transformer_forward.3} parent=135 // pred_check
          %p1267 = pneg %p704
        $region158: #{transformer_forward.3} parent=135 // pred_check_branch
          %1269 = sbr.rel (%p1267) target = $region160
        $region159: #{transformer_forward.3} parent=135 // pred_region
          %1271 = dma.done %s1264, 16
        $region160: #{transformer_forward.3} parent=135 // pred_fallthru
          _
        %s1272 = sand.u32 %s88, 1
        %s1273 = scalar_lea.sflag [#allocation14], %s1272
        %s1274 = sand.u32 %s717, 1
        %s1275 = scalar_lea.vmem [#allocation15], %s1274
        // Predicated region
        $region161: #{transformer_forward.3} parent=135 // pred_check
          %p1276 = pneg %p730
        $region162: #{transformer_forward.3} parent=135 // pred_check_branch
          %1278 = sbr.rel (%p1276) target = $region164
        $region163: #{transformer_forward.3} parent=135 // pred_region
          %1280 = dma.done %s1273, 16
        $region164: #{transformer_forward.3} parent=135 // pred_fallthru
          _
        %s1281 = sand.u32 %s88, 1
        %s1282 = scalar_lea.sflag [#allocation17], %s1281
        %s1283 = sand.u32 %s743, 1
        %s1284 = scalar_lea.vmem [#allocation16], %s1283
        // Predicated region
        $region165: #{transformer_forward.3} parent=135 // pred_check
          %p1285 = pneg %p756
        $region166: #{transformer_forward.3} parent=135 // pred_check_branch
          %1287 = sbr.rel (%p1285) target = $region168
        $region167: #{transformer_forward.3} parent=135 // pred_region
          %1289 = dma.done %s1282, 16
        $region168: #{transformer_forward.3} parent=135 // pred_fallthru
          _
        %s1290 = sand.u32 %s88, 1
        %s1291 = scalar_lea.sflag [#allocation17], %s1290
        %s1292 = sand.u32 %s769, 1
        %s1293 = scalar_lea.vmem [#allocation18], %s1292
        // Predicated region
        $region169: #{transformer_forward.3} parent=135 // pred_check
          %p1294 = pneg %p782
        $region170: #{transformer_forward.3} parent=135 // pred_check_branch
          %1296 = sbr.rel (%p1294) target = $region172
        $region171: #{transformer_forward.3} parent=135 // pred_region
          %1298 = dma.done %s1291, 16
        $region172: #{transformer_forward.3} parent=135 // pred_fallthru
          _
        %s1299 = sand.u32 %s88, 1
        %s1300 = scalar_lea.sflag [#allocation20], %s1299
        %s1301 = sand.u32 %s795, 1
        %s1302 = scalar_lea.vmem [#allocation19], %s1301
        // Predicated region
        $region173: #{transformer_forward.3} parent=135 // pred_check
          %p1303 = pneg %p808
        $region174: #{transformer_forward.3} parent=135 // pred_check_branch
          %1305 = sbr.rel (%p1303) target = $region176
        $region175: #{transformer_forward.3} parent=135 // pred_region
          %1307 = dma.done %s1300, 16
        $region176: #{transformer_forward.3} parent=135 // pred_fallthru
          _
        %s1308 = sand.u32 %s88, 1
        %s1309 = scalar_lea.sflag [#allocation20], %s1308
        %s1310 = sand.u32 %s821, 1
        %s1311 = scalar_lea.vmem [#allocation21], %s1310
        // Predicated region
        $region177: #{transformer_forward.3} parent=135 // pred_check
          %p1312 = pneg %p834
        $region178: #{transformer_forward.3} parent=135 // pred_check_branch
          %1314 = sbr.rel (%p1312) target = $region180
        $region179: #{transformer_forward.3} parent=135 // pred_region
          %1316 = dma.done %s1309, 16
        $region180: #{transformer_forward.3} parent=135 // pred_fallthru
          _
        %s1317 = smul.u32 2, %s92
        %p1318 = scmp.lt.s32.totalorder %s1317, 1
        %s1319 = scalar_select %p1318, %s1317, 1
        %s1320 = smul.addr %s1319, 8
        %s1321 = scalar_lea.vmem %s1, %s1320
        %p1322 = pneg %p121
        %p1323 = pneg %p118
        %p1324 = pneg %p142
        %p1325 = pneg %p139
        %s1326 = smul.u32 2, %s92
        %p1327 = scmp.lt.s32.totalorder %s1326, 1
        %s1328 = scalar_select %p1327, %s1326, 1
        %s1329 = smul.addr %s1328, 8
        %s1330 = scalar_lea.vmem %s5, %s1329
        %p1331 = pneg %p168
        %p1332 = pneg %p165
        %p1333 = pneg %p189
        %p1334 = pneg %p186
        %p1335 = pneg %p210
        %p1336 = pneg %p207
        %p1337 = scmp.lt.s32.totalorder %s93, 1
        %s1338 = scalar_select %p1337, %s93, 1
        %s1339 = smul.addr %s1338, 4
        %s1340 = smul.addr %s1339, 4
        %s1341 = scalar_lea.vmem %s11, %s1340
        %p1342 = pneg %p236
        %p1343 = pneg %p233
        %p1344 = scmp.lt.s32.totalorder %s93, 1
        %s1345 = scalar_select %p1344, %s93, 1
        %s1346 = scalar_lea.vmem %s13, %s1345
        %p1347 = pneg %p262
        %p1348 = pneg %p259
        %p1349 = scmp.lt.s32.totalorder %s93, 1
        %s1350 = scalar_select %p1349, %s93, 1
        %s1351 = smul.addr %s1350, 4
        %s1352 = smul.addr %s1351, 4
        %s1353 = scalar_lea.vmem %s15, %s1352
        %p1354 = pneg %p288
        %p1355 = pneg %p285
        %p1356 = scmp.lt.s32.totalorder %s93, 1
        %s1357 = scalar_select %p1356, %s93, 1
        %s1358 = scalar_lea.vmem %s17, %s1357
        %p1359 = pneg %p314
        %p1360 = pneg %p311
        %p1361 = scmp.lt.s32.totalorder %s93, 1
        %s1362 = scalar_select %p1361, %s93, 1
        %s1363 = smul.addr %s1362, 4
        %s1364 = smul.addr %s1363, 4
        %s1365 = scalar_lea.vmem %s19, %s1364
        %p1366 = pneg %p340
        %p1367 = pneg %p337
        %p1368 = scmp.lt.s32.totalorder %s93, 1
        %s1369 = scalar_select %p1368, %s93, 1
        %s1370 = scalar_lea.vmem %s21, %s1369
        %p1371 = pneg %p366
        %p1372 = pneg %p363
        %s1373 = sand.u32 %s379, 1
        %s1374 = scalar_lea.sflag [#allocation6], %s1373
        %s1375 = sand.u32 %s379, 1
        %s1376 = smul.addr %s1375, 16
        %s1377 = scalar_lea.vmem [#allocation5], %s1376
        %p1378 = pneg %p392
        %p1379 = pneg %p389
        %p1380 = scmp.lt.s32.totalorder %s93, 1
        %s1381 = scalar_select %p1380, %s93, 1
        %s1382 = scalar_lea.vmem %s25, %s1381
        %p1383 = pneg %p418
        %p1384 = pneg %p415
        %s1385 = sand.u32 %s88, 1
        %s1386 = scalar_lea.sflag [#allocation8], %s1385
        %s1387 = sand.u32 %s431, 1
        %s1388 = smul.addr %s1387, 16
        %s1389 = scalar_lea.vmem [#allocation7], %s1388
        %p1390 = pneg %p444
        %p1391 = pneg %p441
        %p1392 = scmp.lt.s32.totalorder %s93, 1
        %s1393 = scalar_select %p1392, %s93, 1
        %s1394 = scalar_lea.vmem %s29, %s1393
        %p1395 = pneg %p470
        %p1396 = pneg %p467
        %s1397 = sand.u32 %s88, 1
        %s1398 = scalar_lea.sflag [#allocation8], %s1397
        %s1399 = sand.u32 %s483, 1
        %s1400 = smul.addr %s1399, 16
        %s1401 = scalar_lea.vmem [#allocation9], %s1400
        %p1402 = pneg %p496
        %p1403 = pneg %p493
        %p1404 = scmp.lt.s32.totalorder %s93, 1
        %s1405 = scalar_select %p1404, %s93, 1
        %s1406 = scalar_lea.vmem %s33, %s1405
        %p1407 = pneg %p522
        %p1408 = pneg %p519
        %s1409 = sand.u32 %s88, 1
        %s1410 = scalar_lea.sflag [#allocation11], %s1409
        %s1411 = sand.u32 %s535, 1
        %s1412 = smul.addr %s1411, 16
        %s1413 = scalar_lea.vmem [#allocation10], %s1412
        %p1414 = pneg %p548
        %p1415 = pneg %p545
        %p1416 = scmp.lt.s32.totalorder %s93, 1
        %s1417 = scalar_select %p1416, %s93, 1
        %s1418 = scalar_lea.vmem %s37, %s1417
        %p1419 = pneg %p574
        %p1420 = pneg %p571
        %s1421 = sand.u32 %s88, 1
        %s1422 = scalar_lea.sflag [#allocation11], %s1421
        %s1423 = sand.u32 %s587, 1
        %s1424 = smul.addr %s1423, 16
        %s1425 = scalar_lea.vmem [#allocation12], %s1424
        %p1426 = pneg %p600
        %p1427 = pneg %p597
        %p1428 = scmp.lt.s32.totalorder %s93, 1
        %s1429 = scalar_select %p1428, %s93, 1
        %s1430 = scalar_lea.vmem %s41, %s1429
        %p1431 = pneg %p626
        %p1432 = pneg %p623
        %p1433 = scmp.lt.s32.totalorder %s93, 1
        %s1434 = scalar_select %p1433, %s93, 1
        %s1435 = smul.addr %s1434, 8
        %s1436 = smul.addr %s1435, 4
        %s1437 = scalar_lea.vmem %s43, %s1436
        %p1438 = pneg %p652
        %p1439 = pneg %p649
        %p1440 = scmp.lt.s32.totalorder %s93, 1
        %s1441 = scalar_select %p1440, %s93, 1
        %s1442 = scalar_lea.vmem %s45, %s1441
        %p1443 = pneg %p678
        %p1444 = pneg %p675
        %s1445 = sand.u32 %s88, 1
        %s1446 = scalar_lea.sflag [#allocation14], %s1445
        %s1447 = sand.u32 %s691, 1
        %s1448 = scalar_lea.vmem [#allocation13], %s1447
        %p1449 = pneg %p704
        %p1450 = pneg %p701
        %s1451 = sand.u32 %s88, 1
        %s1452 = scalar_lea.sflag [#allocation14], %s1451
        %s1453 = sand.u32 %s717, 1
        %s1454 = scalar_lea.vmem [#allocation15], %s1453
        %p1455 = pneg %p730
        %p1456 = pneg %p727
        %s1457 = sand.u32 %s88, 1
        %s1458 = scalar_lea.sflag [#allocation17], %s1457
        %s1459 = sand.u32 %s743, 1
        %s1460 = scalar_lea.vmem [#allocation16], %s1459
        %p1461 = pneg %p756
        %p1462 = pneg %p753
        %s1463 = sand.u32 %s88, 1
        %s1464 = scalar_lea.sflag [#allocation17], %s1463
        %s1465 = sand.u32 %s769, 1
        %s1466 = scalar_lea.vmem [#allocation18], %s1465
        %p1467 = pneg %p782
        %p1468 = pneg %p779
        %s1469 = sand.u32 %s88, 1
        %s1470 = scalar_lea.sflag [#allocation20], %s1469
        %s1471 = sand.u32 %s795, 1
        %s1472 = scalar_lea.vmem [#allocation19], %s1471
        %p1473 = pneg %p808
        %p1474 = pneg %p805
        %s1475 = sand.u32 %s88, 1
        %s1476 = scalar_lea.sflag [#allocation20], %s1475
        %s1477 = sand.u32 %s821, 1
        %s1478 = scalar_lea.vmem [#allocation21], %s1477
        %p1479 = pneg %p834
        %p1480 = pneg %p831
        %p1481 = pneg %p862
        %p1482 = pneg %p859
        %s1483 = smul.u32 2, %s92
        %p1484 = scmp.lt.s32.totalorder %s93, 1
        %s1485 = scalar_select %p1484, %s93, 1
        %p1486 = scmp.lt.s32.totalorder %s1483, 1
        %s1487 = scalar_select %p1486, %s1483, 1
        %s1488 = smul.addr %s1485, 2
        %s1489 = sadd.s32 %s1487, %s1488
        %s1490 = smul.addr %s1489, 8
        %s1491 = scalar_lea.vmem %s59, %s1490
        %s1492 = smul.u32 2, %s92
        %p1493 = scmp.lt.s32.totalorder %s1492, 1
        %s1494 = scalar_select %p1493, %s1492, 1
        %s1495 = smul.addr %s1494, 8
        %s1496 = scalar_lea.vmem %s1, %s1495
        %s1497 = smul.u32 2, %s92
        %s1498 = smul.u32 2, %s92
        %p1499 = scmp.lt.s32.totalorder %s1498, 1
        %s1500 = scalar_select %p1499, %s1498, 1
        %s1501 = smul.addr %s1500, 8
        %s1502 = scalar_lea.vmem %s5, %s1501
        %s1503 = smul.u32 2, %s92
        %p1504 = scmp.lt.s32.totalorder %s93, 1
        %s1505 = scalar_select %p1504, %s93, 1
        %s1506 = smul.addr %s1505, 4
        %s1507 = smul.addr %s1506, 4
        %s1508 = scalar_lea.vmem %s11, %s1507
        %p1509 = scmp.lt.s32.totalorder %s93, 1
        %s1510 = scalar_select %p1509, %s93, 1
        %s1511 = scalar_lea.vmem %s13, %s1510
        %p1512 = scmp.lt.s32.totalorder %s93, 1
        %s1513 = scalar_select %p1512, %s93, 1
        %s1514 = smul.addr %s1513, 4
        %s1515 = smul.addr %s1514, 4
        %s1516 = scalar_lea.vmem %s15, %s1515
        %p1517 = scmp.lt.s32.totalorder %s93, 1
        %s1518 = scalar_select %p1517, %s93, 1
        %s1519 = scalar_lea.vmem %s17, %s1518
        %p1520 = scmp.lt.s32.totalorder %s93, 1
        %s1521 = scalar_select %p1520, %s93, 1
        %s1522 = smul.addr %s1521, 4
        %s1523 = smul.addr %s1522, 4
        %s1524 = scalar_lea.vmem %s19, %s1523
        %p1525 = scmp.lt.s32.totalorder %s93, 1
        %s1526 = scalar_select %p1525, %s93, 1
        %s1527 = scalar_lea.vmem %s21, %s1526
        %p1528 = scmp.lt.s32.totalorder %s93, 1
        %s1529 = scalar_select %p1528, %s93, 1
        %s1530 = scalar_lea.vmem %s25, %s1529
        %p1531 = scmp.lt.s32.totalorder %s93, 1
        %s1532 = scalar_select %p1531, %s93, 1
        %s1533 = scalar_lea.vmem %s29, %s1532
        %p1534 = scmp.lt.s32.totalorder %s93, 1
        %s1535 = scalar_select %p1534, %s93, 1
        %s1536 = scalar_lea.vmem %s33, %s1535
        %p1537 = scmp.lt.s32.totalorder %s93, 1
        %s1538 = scalar_select %p1537, %s93, 1
        %s1539 = scalar_lea.vmem %s37, %s1538
        %p1540 = scmp.lt.s32.totalorder %s93, 1
        %s1541 = scalar_select %p1540, %s93, 1
        %s1542 = scalar_lea.vmem %s41, %s1541
        %p1543 = scmp.lt.s32.totalorder %s93, 1
        %s1544 = scalar_select %p1543, %s93, 1
        %s1545 = smul.addr %s1544, 8
        %s1546 = smul.addr %s1545, 4
        %s1547 = scalar_lea.vmem %s43, %s1546
        %p1548 = scmp.lt.s32.totalorder %s93, 1
        %s1549 = scalar_select %p1548, %s93, 1
        %s1550 = scalar_lea.vmem %s45, %s1549
        %s1551 = smul.u32 2, %s92
        %p1552 = scmp.lt.s32.totalorder %s93, 1
        %s1553 = scalar_select %p1552, %s93, 1
        %p1554 = scmp.lt.s32.totalorder %s1551, 1
        %s1555 = scalar_select %p1554, %s1551, 1
        %s1556 = smul.addr %s1553, 2
        %s1557 = sadd.s32 %s1555, %s1556
        %s1558 = smul.addr %s1557, 8
        %s1559 = scalar_lea.vmem %s59, %s1558
        %s1560 = smul.u32 2, %s92
        %p1562 = scmp.eq.s32.totalorder %s93, 0
        // Predicated region
        $region181: #{transformer_forward.3} parent=135 // pred_check
          %p1563 = pneg %p1562
        $region182: #{transformer_forward.3} parent=135 // pred_check_branch
          %1565 = sbr.rel (%p1563) target = $region184
        $region183: #{transformer_forward.3} parent=135 // pred_region
          %v1566 = vld [vmem:[%s1496] sm:$0xff]
          %v1567 = vld [vmem:[%s1496 + $0x8] sm:$0xff]
          %vm1568 = vcmask 261120
          %1569 = vst.msk [vmem:[#allocation2] sm:$0xff] %vm1568, %v1566
          %1570 = vst.msk [vmem:[#allocation2 + $0x8] sm:$0xff] %vm1568, %v1567
          %v1571 = vld [vmem:[%s1502] sm:$0xff]
          %v1572 = vld [vmem:[%s1502 + $0x8] sm:$0xff]
          %v1573 = vpack.c.bf16 %v1571, %v1571
          %v1574 = vpack.c.bf16 %v1572, %v1572
          %vm1575 = vcmask 257024
          %1576 = vst.msk [vmem:[#allocation4] sm:$0xf] %vm1575, %v1573
          %1577 = vst.msk [vmem:[#allocation4 + $0x4] sm:$0xf] %vm1575, %v1574
          %v1578 = vld [vmem:[%s7] sm:$0xff]
          %v1579 = vadd.f32 %v1571, %v1578
          %v1580 = vadd.f32 %v1572, %v1578
          %v1581 = vpack.c.bf16 %v1579, %v1579
          %v1582 = vpack.c.bf16 %v1580, %v1580
          %1583 = vst.msk [vmem:[#allocation3] sm:$0xf] %vm1575, %v1581
          %1584 = vst.msk [vmem:[#allocation3 + $0x4] sm:$0xf] %vm1575, %v1582
        $region184: #{transformer_forward.3} parent=135 // pred_fallthru
          _
        %v1585 = vld [vmem:[#allocation2] sm:$0xff]
        %v1586 = vld [vmem:[#allocation2 + $0x8] sm:$0xff]
        %v1587 = vld [vmem:[%s3] sm:$0xff]
        %v1588 = vadd.f32 %v1585, %v1587
        %v1589 = vadd.f32 %v1586, %v1587
        %v1590 = vpack.c.bf16 %v1589, %v1588
        %v1591 = vpack.c.bf16 %v1586, %v1585
        %v1592 = vld [vmem:[%s1508] sm:$0xf]
        %v1593 = vld [vmem:[%s1508 + $0x4] sm:$0xf]
        %v1594 = vld [vmem:[%s1508 + $0x8] sm:$0xf]
        %v1595 = vld [vmem:[%s1508 + $0xc] sm:$0xf]
        %v1596 = vld [vmem:[%s1511] sm:$0x1]
        %v1598 = vperm.slane %v1596, 0
        %v1604 = vunpack.c.l.b16 %v1592
        %v1605 = vunpack.c.l.b16 %v1593
        %v1606 = vunpack.c.l.b16 %v1594
        %v1607 = vunpack.c.l.b16 %v1595
        %v1608 = vpack.c.b16 %v1605, %v1604
        %v1609 = vpack.c.b16 %v1607, %v1606
        %vm1612 = vcmask 261120
        %v1614 = vsel %vm1612, %v1590, 0
        %1616 = vmatpush.bf16.msra.mxu0 0
        %1617 = vmatpush.bf16.msra.mxu0 0
        %1618 = vmatpush.bf16.msra.mxu0 0
        %1619 = vmatpush.bf16.msra.mxu0 0
        %1620 = vmatpush.bf16.msra.mxu0 0
        %1621 = vmatpush.bf16.msra.mxu0 0
        %1622 = vmatpush.bf16.msra.mxu0 %v1609
        %1623 = vmatpush.bf16.msra.mxu0 %v1608
        %1624 = vmatmul.bf16.gmra.mxu0 %v1614
        %v1625 = vpop.f32.mrf.mxu0
        %v1626 = vadd.f32 %v1598, %v1625
        %v1627 = vpop.f32.mrf.mxu0
        %v1628 = vadd.f32 %v1598, %v1627
        %1629 = vdwg.mxu0
        %v1630 = vld [vmem:[%s1516] sm:$0xf]
        %v1631 = vld [vmem:[%s1516 + $0x4] sm:$0xf]
        %v1632 = vld [vmem:[%s1516 + $0x8] sm:$0xf]
        %v1633 = vld [vmem:[%s1516 + $0xc] sm:$0xf]
        %v1634 = vld [vmem:[%s1519] sm:$0x1]
        %v1636 = vperm.slane %v1634, 0
        %v1642 = vunpack.c.l.b16 %v1630
        %v1643 = vunpack.c.l.b16 %v1631
        %v1644 = vunpack.c.l.b16 %v1632
        %v1645 = vunpack.c.l.b16 %v1633
        %v1646 = vpack.c.b16 %v1643, %v1642
        %v1647 = vpack.c.b16 %v1645, %v1644
        %v1651 = vsel %vm1612, %v1591, 0
        %1653 = vmatpush.bf16.msra.mxu0 0
        %1654 = vmatpush.bf16.msra.mxu0 0
        %1655 = vmatpush.bf16.msra.mxu0 0
        %1656 = vmatpush.bf16.msra.mxu0 0
        %1657 = vmatpush.bf16.msra.mxu0 0
        %1658 = vmatpush.bf16.msra.mxu0 0
        %1659 = vmatpush.bf16.msra.mxu0 %v1647
        %1660 = vmatpush.bf16.msra.mxu0 %v1646
        %1661 = vmatmul.bf16.gmra.mxu0 %v1651
        %v1662 = vpop.f32.mrf.mxu0
        %v1663 = vadd.f32 %v1636, %v1662
        %v1664 = vpop.f32.mrf.mxu0
        %v1665 = vadd.f32 %v1636, %v1664
        %1666 = vdwg.mxu0
        %v1667 = vld [vmem:[%s9] sm:$0xff]
        %v1668 = vpack.c.bf16 %v1626, %v1626
        %v1669 = vpack.c.bf16 %v1628, %v1628
        %v1670 = vpack.c.bf16 %v1663, %v1663
        %v1671 = vpack.c.bf16 %v1665, %v1665
        %v1673 = vunpack.c.l.b16 %v1668
        %v1674 = vpack.c.b16 %v1673, %v1673
        %1675 = vrot.lane.b32.xlu0 %v1674, 96
        %v1676 = vpop.permute.xlu0 %1675
        %vm1677 = vcmask 64512
        %v1679 = vsel %vm1677, %v1668, 0
        %v1682 = vsel %vm1677, %v1676, 0
        %1684 = vmatpush.bf16.xpose.msra.mxu0 0
        %1685 = vmatpush.bf16.xpose.msra.mxu0 0
        %1686 = vmatpush.bf16.xpose.msra.mxu0 0
        %1687 = vmatpush.bf16.xpose.msra.mxu0 0
        %1688 = vmatpush.bf16.xpose.msra.mxu0 0
        %1689 = vmatpush.bf16.xpose.msra.mxu0 0
        %1690 = vmatpush.bf16.xpose.msra.mxu0 0
        %1691 = vmatpush.bf16.xpose.msra.mxu0 %v1682
        %1692 = vmatmul.bf16.gmra.mxu0 %v1679
        %v1693 = vpop.f32.mrf.mxu0
        %v1694 = vadd.f32 %v1667, %v1693
        %v1695 = vpop.f32.mrf.mxu0
        %1696 = vdwg.mxu0
        %v1698 = vunpack.c.l.b16 %v1669
        %v1699 = vpack.c.b16 %v1698, %v1698
        %1700 = vrot.lane.b32.xlu0 %v1699, 96
        %v1701 = vpop.permute.xlu0 %1700
        %v1703 = vsel %vm1677, %v1669, 0
        %v1706 = vsel %vm1677, %v1701, 0
        %1708 = vmatpush.bf16.xpose.msra.mxu0 0
        %1709 = vmatpush.bf16.xpose.msra.mxu0 0
        %1710 = vmatpush.bf16.xpose.msra.mxu0 0
        %1711 = vmatpush.bf16.xpose.msra.mxu0 0
        %1712 = vmatpush.bf16.xpose.msra.mxu0 0
        %1713 = vmatpush.bf16.xpose.msra.mxu0 0
        %1714 = vmatpush.bf16.xpose.msra.mxu0 0
        %1715 = vmatpush.bf16.xpose.msra.mxu0 %v1706
        %1716 = vmatmul.bf16.gmra.mxu0 %v1703
        %v1717 = vpop.f32.mrf.mxu0
        %v1718 = vadd.f32 %v1667, %v1717
        %v1719 = vpop.f32.mrf.mxu0
        %1720 = vdwg.mxu0
        %v1721 = vsel %vm1677, %v1694, -inf
        %1722 = vmax.xlane.f32.xlu0 %v1721
        %v1723 = vpop.xlane.xlu0 %1722
        %v1724 = vsel %vm1677, %v1718, -inf
        %1725 = vmax.xlane.f32.xlu0 %v1724
        %v1726 = vpop.xlane.xlu0 %1725
        %v1727 = vsub.f32 %v1694, %v1723
        %v1728 = vsub.f32 %v1718, %v1726
        %v1729 = vmul.f32 %v1727, 1.442695
        %v1730 = vpow.pop %v1729
        %v1731 = vmul.f32 %v1728, 1.442695
        %v1732 = vpow.pop %v1731
        %v1733 = vsel %vm1677, %v1730, 0.0
        %1734 = vadd.xlane.f32.xlu0 %v1733
        %v1735 = vpop.xlane.xlu0 %1734
        %v1736 = vsel %vm1677, %v1732, 0.0
        %1737 = vadd.xlane.f32.xlu0 %v1736
        %v1738 = vpop.xlane.xlu0 %1737
        %v1739 = vrcp.pop %v1735
        %v1740 = vrcp.pop %v1738
        %v1741 = vmul.f32 %v1730, %v1739
        %v1742 = vmul.f32 %v1732, %v1740
        %v1743 = vpack.c.bf16 %v1741, %v1741
        %v1744 = vpack.c.bf16 %v1742, %v1742
        %v1746 = vsel %vm1677, %v1743, 0
        %vm1748 = vcmask 1043456
        %v1750 = vsel %vm1748, %v1670, 0
        %1752 = vmatpush.bf16.msra.mxu0 0
        %1753 = vmatpush.bf16.msra.mxu0 0
        %1754 = vmatpush.bf16.msra.mxu0 0
        %1755 = vmatpush.bf16.msra.mxu0 0
        %1756 = vmatpush.bf16.msra.mxu0 0
        %1757 = vmatpush.bf16.msra.mxu0 0
        %1758 = vmatpush.bf16.msra.mxu0 0
        %1759 = vmatpush.bf16.msra.mxu0 %v1750
        %1760 = vmatmul.bf16.gmra.mxu0 %v1746
        %v1761 = vpop.f32.mrf.mxu0
        %v1762 = vadd.f32 0.0, %v1761
        %v1763 = vpop.f32.mrf.mxu0
        %1764 = vdwg.mxu0
        %v1766 = vsel %vm1677, %v1744, 0
        %v1769 = vsel %vm1748, %v1671, 0
        %1771 = vmatpush.bf16.msra.mxu0 0
        %1772 = vmatpush.bf16.msra.mxu0 0
        %1773 = vmatpush.bf16.msra.mxu0 0
        %1774 = vmatpush.bf16.msra.mxu0 0
        %1775 = vmatpush.bf16.msra.mxu0 0
        %1776 = vmatpush.bf16.msra.mxu0 0
        %1777 = vmatpush.bf16.msra.mxu0 0
        %1778 = vmatpush.bf16.msra.mxu0 %v1769
        %1779 = vmatmul.bf16.gmra.mxu0 %v1766
        %v1780 = vpop.f32.mrf.mxu0
        %v1781 = vadd.f32 0.0, %v1780
        %v1782 = vpop.f32.mrf.mxu0
        %1783 = vdwg.mxu0
        %1784 = vrot.lane.b32.xlu0 %v1674, 120
        %v1785 = vpop.permute.xlu0 %1784
        %1786 = vrot.lane.b32.xlu0 %v1674, 88
        %v1787 = vpop.permute.xlu0 %1786
        %v1789 = vsel %vm1677, %v1785, 0
        %v1792 = vsel %vm1677, %v1787, 0
        %1794 = vmatpush.bf16.xpose.msra.mxu0 0
        %1795 = vmatpush.bf16.xpose.msra.mxu0 0
        %1796 = vmatpush.bf16.xpose.msra.mxu0 0
        %1797 = vmatpush.bf16.xpose.msra.mxu0 0
        %1798 = vmatpush.bf16.xpose.msra.mxu0 0
        %1799 = vmatpush.bf16.xpose.msra.mxu0 0
        %1800 = vmatpush.bf16.xpose.msra.mxu0 0
        %1801 = vmatpush.bf16.xpose.msra.mxu0 %v1792
        %1802 = vmatmul.bf16.gmra.mxu0 %v1789
        %v1803 = vpop.f32.mrf.mxu0
        %v1804 = vadd.f32 %v1667, %v1803
        %v1805 = vpop.f32.mrf.mxu0
        %1806 = vdwg.mxu0
        %1807 = vrot.lane.b32.xlu0 %v1699, 120
        %v1808 = vpop.permute.xlu0 %1807
        %1809 = vrot.lane.b32.xlu0 %v1699, 88
        %v1810 = vpop.permute.xlu0 %1809
        %v1812 = vsel %vm1677, %v1808, 0
        %v1815 = vsel %vm1677, %v1810, 0
        %1817 = vmatpush.bf16.xpose.msra.mxu0 0
        %1818 = vmatpush.bf16.xpose.msra.mxu0 0
        %1819 = vmatpush.bf16.xpose.msra.mxu0 0
        %1820 = vmatpush.bf16.xpose.msra.mxu0 0
        %1821 = vmatpush.bf16.xpose.msra.mxu0 0
        %1822 = vmatpush.bf16.xpose.msra.mxu0 0
        %1823 = vmatpush.bf16.xpose.msra.mxu0 0
        %1824 = vmatpush.bf16.xpose.msra.mxu0 %v1815
        %1825 = vmatmul.bf16.gmra.mxu0 %v1812
        %v1826 = vpop.f32.mrf.mxu0
        %v1827 = vadd.f32 %v1667, %v1826
        %v1828 = vpop.f32.mrf.mxu0
        %1829 = vdwg.mxu0
        %v1830 = vsel %vm1677, %v1804, -inf
        %1831 = vmax.xlane.f32.xlu0 %v1830
        %v1832 = vpop.xlane.xlu0 %1831
        %v1833 = vsel %vm1677, %v1827, -inf
        %1834 = vmax.xlane.f32.xlu0 %v1833
        %v1835 = vpop.xlane.xlu0 %1834
        %v1836 = vsub.f32 %v1804, %v1832
        %v1837 = vsub.f32 %v1827, %v1835
        %v1838 = vmul.f32 %v1836, 1.442695
        %v1839 = vpow.pop %v1838
        %v1840 = vmul.f32 %v1837, 1.442695
        %v1841 = vpow.pop %v1840
        %v1842 = vsel %vm1677, %v1839, 0.0
        %1843 = vadd.xlane.f32.xlu0 %v1842
        %v1844 = vpop.xlane.xlu0 %1843
        %v1845 = vsel %vm1677, %v1841, 0.0
        %1846 = vadd.xlane.f32.xlu0 %v1845
        %v1847 = vpop.xlane.xlu0 %1846
        %v1848 = vrcp.pop %v1844
        %v1849 = vrcp.pop %v1847
        %v1850 = vmul.f32 %v1839, %v1848
        %v1851 = vmul.f32 %v1841, %v1849
        %v1852 = vpack.c.bf16 %v1850, %v1850
        %v1853 = vpack.c.bf16 %v1851, %v1851
        %v1855 = vunpack.c.l.b16 %v1670
        %v1856 = vpack.c.b16 %v1855, %v1855
        %1857 = vrot.lane.b32.xlu0 %v1856, 120
        %v1858 = vpop.permute.xlu0 %1857
        %v1860 = vsel %vm1677, %v1852, 0
        %v1863 = vsel %vm1748, %v1858, 0
        %1865 = vmatpush.bf16.msra.mxu0 0
        %1866 = vmatpush.bf16.msra.mxu0 0
        %1867 = vmatpush.bf16.msra.mxu0 0
        %1868 = vmatpush.bf16.msra.mxu0 0
        %1869 = vmatpush.bf16.msra.mxu0 0
        %1870 = vmatpush.bf16.msra.mxu0 0
        %1871 = vmatpush.bf16.msra.mxu0 0
        %1872 = vmatpush.bf16.msra.mxu0 %v1863
        %1873 = vmatmul.bf16.gmra.mxu0 %v1860
        %v1874 = vpop.f32.mrf.mxu0
        %v1875 = vadd.f32 0.0, %v1874
        %v1876 = vpop.f32.mrf.mxu0
        %1877 = vdwg.mxu0
        %v1879 = vunpack.c.l.b16 %v1671
        %v1880 = vpack.c.b16 %v1879, %v1879
        %1881 = vrot.lane.b32.xlu0 %v1880, 120
        %v1882 = vpop.permute.xlu0 %1881
        %v1884 = vsel %vm1677, %v1853, 0
        %v1887 = vsel %vm1748, %v1882, 0
        %1889 = vmatpush.bf16.msra.mxu0 0
        %1890 = vmatpush.bf16.msra.mxu0 0
        %1891 = vmatpush.bf16.msra.mxu0 0
        %1892 = vmatpush.bf16.msra.mxu0 0
        %1893 = vmatpush.bf16.msra.mxu0 0
        %1894 = vmatpush.bf16.msra.mxu0 0
        %1895 = vmatpush.bf16.msra.mxu0 0
        %1896 = vmatpush.bf16.msra.mxu0 %v1887
        %1897 = vmatmul.bf16.gmra.mxu0 %v1884
        %v1898 = vpop.f32.mrf.mxu0
        %v1899 = vadd.f32 0.0, %v1898
        %v1900 = vpop.f32.mrf.mxu0
        %1901 = vdwg.mxu0
        %1902 = vrot.lane.b32.xlu0 %v1674, 112
        %v1903 = vpop.permute.xlu0 %1902
        %1904 = vrot.lane.b32.xlu0 %v1674, 80
        %v1905 = vpop.permute.xlu0 %1904
        %v1907 = vsel %vm1677, %v1903, 0
        %v1910 = vsel %vm1677, %v1905, 0
        %1912 = vmatpush.bf16.xpose.msra.mxu0 0
        %1913 = vmatpush.bf16.xpose.msra.mxu0 0
        %1914 = vmatpush.bf16.xpose.msra.mxu0 0
        %1915 = vmatpush.bf16.xpose.msra.mxu0 0
        %1916 = vmatpush.bf16.xpose.msra.mxu0 0
        %1917 = vmatpush.bf16.xpose.msra.mxu0 0
        %1918 = vmatpush.bf16.xpose.msra.mxu0 0
        %1919 = vmatpush.bf16.xpose.msra.mxu0 %v1910
        %1920 = vmatmul.bf16.gmra.mxu0 %v1907
        %v1921 = vpop.f32.mrf.mxu0
        %v1922 = vadd.f32 %v1667, %v1921
        %v1923 = vpop.f32.mrf.mxu0
        %1924 = vdwg.mxu0
        %1925 = vrot.lane.b32.xlu0 %v1699, 112
        %v1926 = vpop.permute.xlu0 %1925
        %1927 = vrot.lane.b32.xlu0 %v1699, 80
        %v1928 = vpop.permute.xlu0 %1927
        %v1930 = vsel %vm1677, %v1926, 0
        %v1933 = vsel %vm1677, %v1928, 0
        %1935 = vmatpush.bf16.xpose.msra.mxu0 0
        %1936 = vmatpush.bf16.xpose.msra.mxu0 0
        %1937 = vmatpush.bf16.xpose.msra.mxu0 0
        %1938 = vmatpush.bf16.xpose.msra.mxu0 0
        %1939 = vmatpush.bf16.xpose.msra.mxu0 0
        %1940 = vmatpush.bf16.xpose.msra.mxu0 0
        %1941 = vmatpush.bf16.xpose.msra.mxu0 0
        %1942 = vmatpush.bf16.xpose.msra.mxu0 %v1933
        %1943 = vmatmul.bf16.gmra.mxu0 %v1930
        %v1944 = vpop.f32.mrf.mxu0
        %v1945 = vadd.f32 %v1667, %v1944
        %v1946 = vpop.f32.mrf.mxu0
        %1947 = vdwg.mxu0
        %v1948 = vsel %vm1677, %v1922, -inf
        %1949 = vmax.xlane.f32.xlu0 %v1948
        %v1950 = vpop.xlane.xlu0 %1949
        %v1951 = vsel %vm1677, %v1945, -inf
        %1952 = vmax.xlane.f32.xlu0 %v1951
        %v1953 = vpop.xlane.xlu0 %1952
        %v1954 = vsub.f32 %v1922, %v1950
        %v1955 = vsub.f32 %v1945, %v1953
        %v1956 = vmul.f32 %v1954, 1.442695
        %v1957 = vpow.pop %v1956
        %v1958 = vmul.f32 %v1955, 1.442695
        %v1959 = vpow.pop %v1958
        %v1960 = vsel %vm1677, %v1957, 0.0
        %1961 = vadd.xlane.f32.xlu0 %v1960
        %v1962 = vpop.xlane.xlu0 %1961
        %v1963 = vsel %vm1677, %v1959, 0.0
        %1964 = vadd.xlane.f32.xlu0 %v1963
        %v1965 = vpop.xlane.xlu0 %1964
        %v1966 = vrcp.pop %v1962
        %v1967 = vrcp.pop %v1965
        %v1968 = vmul.f32 %v1957, %v1966
        %v1969 = vmul.f32 %v1959, %v1967
        %v1970 = vpack.c.bf16 %v1968, %v1968
        %v1971 = vpack.c.bf16 %v1969, %v1969
        %1972 = vrot.lane.b32.xlu0 %v1856, 112
        %v1973 = vpop.permute.xlu0 %1972
        %v1975 = vsel %vm1677, %v1970, 0
        %v1978 = vsel %vm1748, %v1973, 0
        %1980 = vmatpush.bf16.msra.mxu0 0
        %1981 = vmatpush.bf16.msra.mxu0 0
        %1982 = vmatpush.bf16.msra.mxu0 0
        %1983 = vmatpush.bf16.msra.mxu0 0
        %1984 = vmatpush.bf16.msra.mxu0 0
        %1985 = vmatpush.bf16.msra.mxu0 0
        %1986 = vmatpush.bf16.msra.mxu0 0
        %1987 = vmatpush.bf16.msra.mxu0 %v1978
        %1988 = vmatmul.bf16.gmra.mxu0 %v1975
        %v1989 = vpop.f32.mrf.mxu0
        %v1990 = vadd.f32 0.0, %v1989
        %v1991 = vpop.f32.mrf.mxu0
        %1992 = vdwg.mxu0
        %1993 = vrot.lane.b32.xlu0 %v1880, 112
        %v1994 = vpop.permute.xlu0 %1993
        %v1996 = vsel %vm1677, %v1971, 0
        %v1999 = vsel %vm1748, %v1994, 0
        %2001 = vmatpush.bf16.msra.mxu0 0
        %2002 = vmatpush.bf16.msra.mxu0 0
        %2003 = vmatpush.bf16.msra.mxu0 0
        %2004 = vmatpush.bf16.msra.mxu0 0
        %2005 = vmatpush.bf16.msra.mxu0 0
        %2006 = vmatpush.bf16.msra.mxu0 0
        %2007 = vmatpush.bf16.msra.mxu0 0
        %2008 = vmatpush.bf16.msra.mxu0 %v1999
        %2009 = vmatmul.bf16.gmra.mxu0 %v1996
        %v2010 = vpop.f32.mrf.mxu0
        %v2011 = vadd.f32 0.0, %v2010
        %v2012 = vpop.f32.mrf.mxu0
        %2013 = vdwg.mxu0
        %2014 = vrot.lane.b32.xlu0 %v1674, 104
        %v2015 = vpop.permute.xlu0 %2014
        %2016 = vrot.lane.b32.xlu0 %v1674, 72
        %v2017 = vpop.permute.xlu0 %2016
        %v2019 = vsel %vm1677, %v2015, 0
        %v2022 = vsel %vm1677, %v2017, 0
        %2024 = vmatpush.bf16.xpose.msra.mxu0 0
        %2025 = vmatpush.bf16.xpose.msra.mxu0 0
        %2026 = vmatpush.bf16.xpose.msra.mxu0 0
        %2027 = vmatpush.bf16.xpose.msra.mxu0 0
        %2028 = vmatpush.bf16.xpose.msra.mxu0 0
        %2029 = vmatpush.bf16.xpose.msra.mxu0 0
        %2030 = vmatpush.bf16.xpose.msra.mxu0 0
        %2031 = vmatpush.bf16.xpose.msra.mxu0 %v2022
        %2032 = vmatmul.bf16.gmra.mxu0 %v2019
        %v2033 = vpop.f32.mrf.mxu0
        %v2034 = vadd.f32 %v1667, %v2033
        %v2035 = vpop.f32.mrf.mxu0
        %2036 = vdwg.mxu0
        %2037 = vrot.lane.b32.xlu0 %v1699, 104
        %v2038 = vpop.permute.xlu0 %2037
        %2039 = vrot.lane.b32.xlu0 %v1699, 72
        %v2040 = vpop.permute.xlu0 %2039
        %v2042 = vsel %vm1677, %v2038, 0
        %v2045 = vsel %vm1677, %v2040, 0
        %2047 = vmatpush.bf16.xpose.msra.mxu0 0
        %2048 = vmatpush.bf16.xpose.msra.mxu0 0
        %2049 = vmatpush.bf16.xpose.msra.mxu0 0
        %2050 = vmatpush.bf16.xpose.msra.mxu0 0
        %2051 = vmatpush.bf16.xpose.msra.mxu0 0
        %2052 = vmatpush.bf16.xpose.msra.mxu0 0
        %2053 = vmatpush.bf16.xpose.msra.mxu0 0
        %2054 = vmatpush.bf16.xpose.msra.mxu0 %v2045
        %2055 = vmatmul.bf16.gmra.mxu0 %v2042
        %v2056 = vpop.f32.mrf.mxu0
        %v2057 = vadd.f32 %v1667, %v2056
        %v2058 = vpop.f32.mrf.mxu0
        %2059 = vdwg.mxu0
        %v2060 = vsel %vm1677, %v2034, -inf
        %2061 = vmax.xlane.f32.xlu0 %v2060
        %v2062 = vpop.xlane.xlu0 %2061
        %v2063 = vsel %vm1677, %v2057, -inf
        %2064 = vmax.xlane.f32.xlu0 %v2063
        %v2065 = vpop.xlane.xlu0 %2064
        %v2066 = vsub.f32 %v2034, %v2062
        %v2067 = vsub.f32 %v2057, %v2065
        %v2068 = vmul.f32 %v2066, 1.442695
        %v2069 = vpow.pop %v2068
        %v2070 = vmul.f32 %v2067, 1.442695
        %v2071 = vpow.pop %v2070
        %v2072 = vsel %vm1677, %v2069, 0.0
        %2073 = vadd.xlane.f32.xlu0 %v2072
        %v2074 = vpop.xlane.xlu0 %2073
        %v2075 = vsel %vm1677, %v2071, 0.0
        %2076 = vadd.xlane.f32.xlu0 %v2075
        %v2077 = vpop.xlane.xlu0 %2076
        %v2078 = vrcp.pop %v2074
        %v2079 = vrcp.pop %v2077
        %v2080 = vmul.f32 %v2069, %v2078
        %v2081 = vmul.f32 %v2071, %v2079
        %v2082 = vpack.c.bf16 %v2080, %v2080
        %v2083 = vpack.c.bf16 %v2081, %v2081
        %2084 = vrot.lane.b32.xlu0 %v1856, 104
        %v2085 = vpop.permute.xlu0 %2084
        %v2087 = vsel %vm1677, %v2082, 0
        %v2090 = vsel %vm1748, %v2085, 0
        %2092 = vmatpush.bf16.msra.mxu0 0
        %2093 = vmatpush.bf16.msra.mxu0 0
        %2094 = vmatpush.bf16.msra.mxu0 0
        %2095 = vmatpush.bf16.msra.mxu0 0
        %2096 = vmatpush.bf16.msra.mxu0 0
        %2097 = vmatpush.bf16.msra.mxu0 0
        %2098 = vmatpush.bf16.msra.mxu0 0
        %2099 = vmatpush.bf16.msra.mxu0 %v2090
        %2100 = vmatmul.bf16.gmra.mxu0 %v2087
        %v2101 = vpop.f32.mrf.mxu0
        %v2102 = vadd.f32 0.0, %v2101
        %v2103 = vpop.f32.mrf.mxu0
        %2104 = vdwg.mxu0
        %2105 = vrot.lane.b32.xlu0 %v1880, 104
        %v2106 = vpop.permute.xlu0 %2105
        %v2108 = vsel %vm1677, %v2083, 0
        %v2111 = vsel %vm1748, %v2106, 0
        %2113 = vmatpush.bf16.msra.mxu0 0
        %2114 = vmatpush.bf16.msra.mxu0 0
        %2115 = vmatpush.bf16.msra.mxu0 0
        %2116 = vmatpush.bf16.msra.mxu0 0
        %2117 = vmatpush.bf16.msra.mxu0 0
        %2118 = vmatpush.bf16.msra.mxu0 0
        %2119 = vmatpush.bf16.msra.mxu0 0
        %2120 = vmatpush.bf16.msra.mxu0 %v2111
        %2121 = vmatmul.bf16.gmra.mxu0 %v2108
        %v2122 = vpop.f32.mrf.mxu0
        %v2123 = vadd.f32 0.0, %v2122
        %v2124 = vpop.f32.mrf.mxu0
        %2125 = vdwg.mxu0
        %2128 = vrot.lane.b32.xlu0 %v1875, 8
        %v2129 = vpop.permute.xlu0 %2128
        %2130 = vrot.lane.b32.xlu0 %v1899, 8
        %v2131 = vpop.permute.xlu0 %2130
        %2136 = vrot.lane.b32.xlu0 %v1990, 16
        %v2137 = vpop.permute.xlu0 %2136
        %2138 = vrot.lane.b32.xlu0 %v2011, 16
        %v2139 = vpop.permute.xlu0 %2138
        %2144 = vrot.lane.b32.xlu0 %v2102, 24
        %v2145 = vpop.permute.xlu0 %2144
        %2146 = vrot.lane.b32.xlu0 %v2123, 24
        %v2147 = vpop.permute.xlu0 %2146
        %v2150 = vsel %vm1677, %v1762, %v2129
        %v2151 = vsel %vm1677, %v1781, %v2131
        %vm2152 = vcmask 130048
        %v2153 = vsel %vm2152, %v2150, %v2137
        %v2154 = vsel %vm2152, %v2151, %v2139
        %vm2155 = vcmask 195584
        %v2156 = vsel %vm2155, %v2153, %v2145
        %v2157 = vsel %vm2155, %v2154, %v2147
        %v2158 = vpack.c.bf16 %v2157, %v2156
        %v2159 = vld [vmem:[%s1524] sm:$0xf]
        %v2160 = vld [vmem:[%s1524 + $0x4] sm:$0xf]
        %v2161 = vld [vmem:[%s1524 + $0x8] sm:$0xf]
        %v2162 = vld [vmem:[%s1524 + $0xc] sm:$0xf]
        %v2163 = vld [vmem:[%s1527] sm:$0x1]
        %v2165 = vperm.slane %v2163, 0
        %v2171 = vunpack.c.l.b16 %v2159
        %v2172 = vunpack.c.l.b16 %v2160
        %v2173 = vunpack.c.l.b16 %v2161
        %v2174 = vunpack.c.l.b16 %v2162
        %v2175 = vpack.c.b16 %v2172, %v2171
        %v2176 = vpack.c.b16 %v2174, %v2173
        %v2180 = vsel %vm1612, %v2158, 0
        %2182 = vmatpush.bf16.msra.mxu0 0
        %2183 = vmatpush.bf16.msra.mxu0 0
        %2184 = vmatpush.bf16.msra.mxu0 0
        %2185 = vmatpush.bf16.msra.mxu0 0
        %2186 = vmatpush.bf16.msra.mxu0 0
        %2187 = vmatpush.bf16.msra.mxu0 0
        %2188 = vmatpush.bf16.msra.mxu0 %v2176
        %2189 = vmatpush.bf16.msra.mxu0 %v2175
        %2190 = vmatmul.bf16.gmra.mxu0 %v2180
        %v2191 = vpop.f32.mrf.mxu0
        %v2192 = vadd.f32 %v2165, %v2191
        %v2193 = vpop.f32.mrf.mxu0
        %v2194 = vadd.f32 %v2165, %v2193
        %2195 = vdwg.mxu0
        %v2196 = vld [vmem:[%s1266] sm:$0x1]
        %v2197 = vld [vmem:[%s1275] sm:$0x1]
        %v2198 = vadd.f32 %v1585, %v2192
        %v2199 = vadd.f32 %v1586, %v2194
        %v2200 = vsel %vm1612, %v2198, 0.0
        %2201 = vadd.xlane.f32.xlu0 %v2200
        %v2202 = vpop.xlane.xlu0 %2201
        %v2203 = vsel %vm1612, %v2199, 0.0
        %2204 = vadd.xlane.f32.xlu0 %v2203
        %v2205 = vpop.xlane.xlu0 %2204
        %v2206 = vrcp.pop 32.0
        %v2207 = vmul.f32 32.0, %v2206
        %v2208 = vsub.f32 1.0, %v2207
        %v2209 = vmul.f32 %v2206, %v2208
        %v2210 = vadd.f32 %v2206, %v2209
        %vm2211 = vweird.f32 %v2206
        %v2212 = vsel %vm2211, %v2206, %v2210
        %v2213 = vmul.f32 %v2202, %v2212
        %v2214 = vmul.f32 %v2205, %v2212
        %v2215 = vsub.f32 %v2198, %v2213
        %v2216 = vsub.f32 %v2199, %v2214
        %v2217 = vmul.f32 %v2215, %v2215
        %v2218 = vmul.f32 %v2216, %v2216
        %v2219 = vsel %vm1612, %v2217, 0.0
        %2220 = vadd.xlane.f32.xlu0 %v2219
        %v2221 = vpop.xlane.xlu0 %2220
        %v2222 = vsel %vm1612, %v2218, 0.0
        %2223 = vadd.xlane.f32.xlu0 %v2222
        %v2224 = vpop.xlane.xlu0 %2223
        %v2225 = vmul.f32 %v2221, %v2212
        %v2226 = vmul.f32 %v2224, %v2212
        %v2227 = vadd.f32 %v2225, 1e-05
        %v2228 = vadd.f32 %v2226, 1e-05
        %v2229 = vrsqrt.pop %v2227
        %v2230 = vmul.f32 %v2229, %v2227
        %v2231 = vmul.f32 %v2230, %v2229
        %v2232 = vmul.f32 0.5, %v2231
        %v2233 = vsub.f32 1.5, %v2232
        %v2234 = vmul.f32 %v2229, %v2233
        %vm2235 = vweird.f32 %v2227
        %vm2236 = vweird.f32 %v2229
        %vm2237 = vmor %vm2235, %vm2236
        %v2238 = vsel %vm2237, %v2229, %v2234
        %v2239 = vrsqrt.pop %v2228
        %v2240 = vmul.f32 %v2239, %v2228
        %v2241 = vmul.f32 %v2240, %v2239
        %v2242 = vmul.f32 0.5, %v2241
        %v2243 = vsub.f32 1.5, %v2242
        %v2244 = vmul.f32 %v2239, %v2243
        %vm2245 = vweird.f32 %v2228
        %vm2246 = vweird.f32 %v2239
        %vm2247 = vmor %vm2245, %vm2246
        %v2248 = vsel %vm2247, %v2239, %v2244
        %v2249 = vmul.f32 %v2215, %v2238
        %v2250 = vmul.f32 %v2216, %v2248
        %v2252 = vperm.slane %v2196, 0
        %v2254 = vmul.f32 %v2249, %v2252
        %v2255 = vmul.f32 %v2250, %v2252
        %v2257 = vperm.slane %v2197, 0
        %v2259 = vadd.f32 %v2254, %v2257
        %v2260 = vadd.f32 %v2255, %v2257
        %v2261 = vadd.f32 %v2259, %v1587
        %v2262 = vadd.f32 %v2260, %v1587
        %v2263 = vpack.c.bf16 %v2262, %v2261
        %v2264 = vld [vmem:[%s1217] sm:$0xf]
        %v2265 = vld [vmem:[%s1217 + $0x4] sm:$0xf]
        %v2266 = vld [vmem:[%s1217 + $0x8] sm:$0xf]
        %v2267 = vld [vmem:[%s1217 + $0xc] sm:$0xf]
        %v2268 = vld [vmem:[%s1530] sm:$0x1]
        %v2270 = vperm.slane %v2268, 0
        %v2276 = vunpack.c.l.b16 %v2264
        %v2277 = vunpack.c.l.b16 %v2265
        %v2278 = vunpack.c.l.b16 %v2266
        %v2279 = vunpack.c.l.b16 %v2267
        %v2280 = vpack.c.b16 %v2277, %v2276
        %v2281 = vpack.c.b16 %v2279, %v2278
        %v2285 = vsel %vm1612, %v2263, 0
        %2287 = vmatpush.bf16.msra.mxu0 0
        %2288 = vmatpush.bf16.msra.mxu0 0
        %2289 = vmatpush.bf16.msra.mxu0 0
        %2290 = vmatpush.bf16.msra.mxu0 0
        %2291 = vmatpush.bf16.msra.mxu0 0
        %2292 = vmatpush.bf16.msra.mxu0 0
        %2293 = vmatpush.bf16.msra.mxu0 %v2281
        %2294 = vmatpush.bf16.msra.mxu0 %v2280
        %2295 = vmatmul.bf16.gmra.mxu0 %v2285
        %v2296 = vpop.f32.mrf.mxu0
        %v2297 = vadd.f32 %v2270, %v2296
        %v2298 = vpop.f32.mrf.mxu0
        %v2299 = vadd.f32 %v2270, %v2298
        %2300 = vdwg.mxu0
        %v2301 = vld [vmem:[#allocation3] sm:$0xf]
        %v2302 = vld [vmem:[#allocation3 + $0x4] sm:$0xf]
        %v2303 = vld [vmem:[%s1227] sm:$0xf]
        %v2304 = vld [vmem:[%s1227 + $0x4] sm:$0xf]
        %v2305 = vld [vmem:[%s1227 + $0x8] sm:$0xf]
        %v2306 = vld [vmem:[%s1227 + $0xc] sm:$0xf]
        %v2307 = vld [vmem:[%s1533] sm:$0x1]
        %v2309 = vperm.slane %v2307, 0
        %v2313 = vunpack.c.l.b16 %v2301
        %v2314 = vunpack.c.l.b16 %v2302
        %v2315 = vpack.c.b16 %v2314, %v2313
        %v2320 = vunpack.c.l.b16 %v2303
        %v2321 = vunpack.c.l.b16 %v2304
        %v2322 = vunpack.c.l.b16 %v2305
        %v2323 = vunpack.c.l.b16 %v2306
        %v2324 = vpack.c.b16 %v2321, %v2320
        %v2325 = vpack.c.b16 %v2323, %v2322
        %v2329 = vsel %vm1612, %v2315, 0
        %2331 = vmatpush.bf16.msra.mxu0 0
        %2332 = vmatpush.bf16.msra.mxu0 0
        %2333 = vmatpush.bf16.msra.mxu0 0
        %2334 = vmatpush.bf16.msra.mxu0 0
        %2335 = vmatpush.bf16.msra.mxu0 0
        %2336 = vmatpush.bf16.msra.mxu0 0
        %2337 = vmatpush.bf16.msra.mxu0 %v2325
        %2338 = vmatpush.bf16.msra.mxu0 %v2324
        %2339 = vmatmul.bf16.gmra.mxu0 %v2329
        %v2340 = vpop.f32.mrf.mxu0
        %v2341 = vadd.f32 %v2309, %v2340
        %v2342 = vpop.f32.mrf.mxu0
        %v2343 = vadd.f32 %v2309, %v2342
        %2344 = vdwg.mxu0
        %v2345 = vld [vmem:[#allocation4] sm:$0xf]
        %v2346 = vld [vmem:[#allocation4 + $0x4] sm:$0xf]
        %v2347 = vld [vmem:[%s1237] sm:$0xf]
        %v2348 = vld [vmem:[%s1237 + $0x4] sm:$0xf]
        %v2349 = vld [vmem:[%s1237 + $0x8] sm:$0xf]
        %v2350 = vld [vmem:[%s1237 + $0xc] sm:$0xf]
        %v2351 = vld [vmem:[%s1536] sm:$0x1]
        %v2353 = vperm.slane %v2351, 0
        %v2357 = vunpack.c.l.b16 %v2345
        %v2358 = vunpack.c.l.b16 %v2346
        %v2359 = vpack.c.b16 %v2358, %v2357
        %v2364 = vunpack.c.l.b16 %v2347
        %v2365 = vunpack.c.l.b16 %v2348
        %v2366 = vunpack.c.l.b16 %v2349
        %v2367 = vunpack.c.l.b16 %v2350
        %v2368 = vpack.c.b16 %v2365, %v2364
        %v2369 = vpack.c.b16 %v2367, %v2366
        %v2373 = vsel %vm1612, %v2359, 0
        %2375 = vmatpush.bf16.msra.mxu0 0
        %2376 = vmatpush.bf16.msra.mxu0 0
        %2377 = vmatpush.bf16.msra.mxu0 0
        %2378 = vmatpush.bf16.msra.mxu0 0
        %2379 = vmatpush.bf16.msra.mxu0 0
        %2380 = vmatpush.bf16.msra.mxu0 0
        %2381 = vmatpush.bf16.msra.mxu0 %v2369
        %2382 = vmatpush.bf16.msra.mxu0 %v2368
        %2383 = vmatmul.bf16.gmra.mxu0 %v2373
        %v2384 = vpop.f32.mrf.mxu0
        %v2385 = vadd.f32 %v2353, %v2384
        %v2386 = vpop.f32.mrf.mxu0
        %v2387 = vadd.f32 %v2353, %v2386
        %2388 = vdwg.mxu0
        %v2389 = vpack.c.bf16 %v2297, %v2297
        %v2390 = vpack.c.bf16 %v2299, %v2299
        %v2391 = vpack.c.bf16 %v2341, %v2341
        %v2392 = vpack.c.bf16 %v2343, %v2343
        %v2393 = vpack.c.bf16 %v2385, %v2385
        %v2394 = vpack.c.bf16 %v2387, %v2387
        %v2396 = vsel %vm1677, %v2389, 0
        %v2399 = vsel %vm1677, %v2391, 0
        %2401 = vmatpush.bf16.xpose.msra.mxu0 0
        %2402 = vmatpush.bf16.xpose.msra.mxu0 0
        %2403 = vmatpush.bf16.xpose.msra.mxu0 0
        %2404 = vmatpush.bf16.xpose.msra.mxu0 0
        %2405 = vmatpush.bf16.xpose.msra.mxu0 0
        %2406 = vmatpush.bf16.xpose.msra.mxu0 0
        %2407 = vmatpush.bf16.xpose.msra.mxu0 0
        %2408 = vmatpush.bf16.xpose.msra.mxu0 %v2399
        %2409 = vmatmul.bf16.gmra.mxu0 %v2396
        %v2410 = vpop.f32.mrf.mxu0
        %v2411 = vadd.f32 0.0, %v2410
        %v2412 = vpop.f32.mrf.mxu0
        %2413 = vdwg.mxu0
        %v2415 = vsel %vm1677, %v2390, 0
        %v2418 = vsel %vm1677, %v2392, 0
        %2420 = vmatpush.bf16.xpose.msra.mxu0 0
        %2421 = vmatpush.bf16.xpose.msra.mxu0 0
        %2422 = vmatpush.bf16.xpose.msra.mxu0 0
        %2423 = vmatpush.bf16.xpose.msra.mxu0 0
        %2424 = vmatpush.bf16.xpose.msra.mxu0 0
        %2425 = vmatpush.bf16.xpose.msra.mxu0 0
        %2426 = vmatpush.bf16.xpose.msra.mxu0 0
        %2427 = vmatpush.bf16.xpose.msra.mxu0 %v2418
        %2428 = vmatmul.bf16.gmra.mxu0 %v2415
        %v2429 = vpop.f32.mrf.mxu0
        %v2430 = vadd.f32 0.0, %v2429
        %v2431 = vpop.f32.mrf.mxu0
        %2432 = vdwg.mxu0
        %v2433 = vsel %vm1677, %v2411, -inf
        %2434 = vmax.xlane.f32.xlu0 %v2433
        %v2435 = vpop.xlane.xlu0 %2434
        %v2436 = vsel %vm1677, %v2430, -inf
        %2437 = vmax.xlane.f32.xlu0 %v2436
        %v2438 = vpop.xlane.xlu0 %2437
        %v2439 = vsub.f32 %v2411, %v2435
        %v2440 = vsub.f32 %v2430, %v2438
        %v2441 = vmul.f32 %v2439, 1.442695
        %v2442 = vpow.pop %v2441
        %v2443 = vmul.f32 %v2440, 1.442695
        %v2444 = vpow.pop %v2443
        %v2445 = vsel %vm1677, %v2442, 0.0
        %2446 = vadd.xlane.f32.xlu0 %v2445
        %v2447 = vpop.xlane.xlu0 %2446
        %v2448 = vsel %vm1677, %v2444, 0.0
        %2449 = vadd.xlane.f32.xlu0 %v2448
        %v2450 = vpop.xlane.xlu0 %2449
        %v2451 = vrcp.pop %v2447
        %v2452 = vrcp.pop %v2450
        %v2453 = vmul.f32 %v2442, %v2451
        %v2454 = vmul.f32 %v2444, %v2452
        %v2455 = vpack.c.bf16 %v2453, %v2453
        %v2456 = vpack.c.bf16 %v2454, %v2454
        %v2458 = vsel %vm1677, %v2455, 0
        %v2461 = vsel %vm1748, %v2393, 0
        %2463 = vmatpush.bf16.msra.mxu0 0
        %2464 = vmatpush.bf16.msra.mxu0 0
        %2465 = vmatpush.bf16.msra.mxu0 0
        %2466 = vmatpush.bf16.msra.mxu0 0
        %2467 = vmatpush.bf16.msra.mxu0 0
        %2468 = vmatpush.bf16.msra.mxu0 0
        %2469 = vmatpush.bf16.msra.mxu0 0
        %2470 = vmatpush.bf16.msra.mxu0 %v2461
        %2471 = vmatmul.bf16.gmra.mxu0 %v2458
        %v2472 = vpop.f32.mrf.mxu0
        %v2473 = vadd.f32 0.0, %v2472
        %v2474 = vpop.f32.mrf.mxu0
        %2475 = vdwg.mxu0
        %v2477 = vsel %vm1677, %v2456, 0
        %v2480 = vsel %vm1748, %v2394, 0
        %2482 = vmatpush.bf16.msra.mxu0 0
        %2483 = vmatpush.bf16.msra.mxu0 0
        %2484 = vmatpush.bf16.msra.mxu0 0
        %2485 = vmatpush.bf16.msra.mxu0 0
        %2486 = vmatpush.bf16.msra.mxu0 0
        %2487 = vmatpush.bf16.msra.mxu0 0
        %2488 = vmatpush.bf16.msra.mxu0 0
        %2489 = vmatpush.bf16.msra.mxu0 %v2480
        %2490 = vmatmul.bf16.gmra.mxu0 %v2477
        %v2491 = vpop.f32.mrf.mxu0
        %v2492 = vadd.f32 0.0, %v2491
        %v2493 = vpop.f32.mrf.mxu0
        %2494 = vdwg.mxu0
        %v2496 = vunpack.c.l.b16 %v2389
        %v2497 = vpack.c.b16 %v2496, %v2496
        %2498 = vrot.lane.b32.xlu0 %v2497, 120
        %v2499 = vpop.permute.xlu0 %2498
        %v2501 = vunpack.c.l.b16 %v2391
        %v2502 = vpack.c.b16 %v2501, %v2501
        %2503 = vrot.lane.b32.xlu0 %v2502, 120
        %v2504 = vpop.permute.xlu0 %2503
        %v2506 = vsel %vm1677, %v2499, 0
        %v2509 = vsel %vm1677, %v2504, 0
        %2511 = vmatpush.bf16.xpose.msra.mxu0 0
        %2512 = vmatpush.bf16.xpose.msra.mxu0 0
        %2513 = vmatpush.bf16.xpose.msra.mxu0 0
        %2514 = vmatpush.bf16.xpose.msra.mxu0 0
        %2515 = vmatpush.bf16.xpose.msra.mxu0 0
        %2516 = vmatpush.bf16.xpose.msra.mxu0 0
        %2517 = vmatpush.bf16.xpose.msra.mxu0 0
        %2518 = vmatpush.bf16.xpose.msra.mxu0 %v2509
        %2519 = vmatmul.bf16.gmra.mxu0 %v2506
        %v2520 = vpop.f32.mrf.mxu0
        %v2521 = vadd.f32 0.0, %v2520
        %v2522 = vpop.f32.mrf.mxu0
        %2523 = vdwg.mxu0
        %v2525 = vunpack.c.l.b16 %v2390
        %v2526 = vpack.c.b16 %v2525, %v2525
        %2527 = vrot.lane.b32.xlu0 %v2526, 120
        %v2528 = vpop.permute.xlu0 %2527
        %v2530 = vunpack.c.l.b16 %v2392
        %v2531 = vpack.c.b16 %v2530, %v2530
        %2532 = vrot.lane.b32.xlu0 %v2531, 120
        %v2533 = vpop.permute.xlu0 %2532
        %v2535 = vsel %vm1677, %v2528, 0
        %v2538 = vsel %vm1677, %v2533, 0
        %2540 = vmatpush.bf16.xpose.msra.mxu0 0
        %2541 = vmatpush.bf16.xpose.msra.mxu0 0
        %2542 = vmatpush.bf16.xpose.msra.mxu0 0
        %2543 = vmatpush.bf16.xpose.msra.mxu0 0
        %2544 = vmatpush.bf16.xpose.msra.mxu0 0
        %2545 = vmatpush.bf16.xpose.msra.mxu0 0
        %2546 = vmatpush.bf16.xpose.msra.mxu0 0
        %2547 = vmatpush.bf16.xpose.msra.mxu0 %v2538
        %2548 = vmatmul.bf16.gmra.mxu0 %v2535
        %v2549 = vpop.f32.mrf.mxu0
        %v2550 = vadd.f32 0.0, %v2549
        %v2551 = vpop.f32.mrf.mxu0
        %2552 = vdwg.mxu0
        %v2553 = vsel %vm1677, %v2521, -inf
        %2554 = vmax.xlane.f32.xlu0 %v2553
        %v2555 = vpop.xlane.xlu0 %2554
        %v2556 = vsel %vm1677, %v2550, -inf
        %2557 = vmax.xlane.f32.xlu0 %v2556
        %v2558 = vpop.xlane.xlu0 %2557
        %v2559 = vsub.f32 %v2521, %v2555
        %v2560 = vsub.f32 %v2550, %v2558
        %v2561 = vmul.f32 %v2559, 1.442695
        %v2562 = vpow.pop %v2561
        %v2563 = vmul.f32 %v2560, 1.442695
        %v2564 = vpow.pop %v2563
        %v2565 = vsel %vm1677, %v2562, 0.0
        %2566 = vadd.xlane.f32.xlu0 %v2565
        %v2567 = vpop.xlane.xlu0 %2566
        %v2568 = vsel %vm1677, %v2564, 0.0
        %2569 = vadd.xlane.f32.xlu0 %v2568
        %v2570 = vpop.xlane.xlu0 %2569
        %v2571 = vrcp.pop %v2567
        %v2572 = vrcp.pop %v2570
        %v2573 = vmul.f32 %v2562, %v2571
        %v2574 = vmul.f32 %v2564, %v2572
        %v2575 = vpack.c.bf16 %v2573, %v2573
        %v2576 = vpack.c.bf16 %v2574, %v2574
        %v2578 = vunpack.c.l.b16 %v2393
        %v2579 = vpack.c.b16 %v2578, %v2578
        %2580 = vrot.lane.b32.xlu0 %v2579, 120
        %v2581 = vpop.permute.xlu0 %2580
        %v2583 = vsel %vm1677, %v2575, 0
        %v2586 = vsel %vm1748, %v2581, 0
        %2588 = vmatpush.bf16.msra.mxu0 0
        %2589 = vmatpush.bf16.msra.mxu0 0
        %2590 = vmatpush.bf16.msra.mxu0 0
        %2591 = vmatpush.bf16.msra.mxu0 0
        %2592 = vmatpush.bf16.msra.mxu0 0
        %2593 = vmatpush.bf16.msra.mxu0 0
        %2594 = vmatpush.bf16.msra.mxu0 0
        %2595 = vmatpush.bf16.msra.mxu0 %v2586
        %2596 = vmatmul.bf16.gmra.mxu0 %v2583
        %v2597 = vpop.f32.mrf.mxu0
        %v2598 = vadd.f32 0.0, %v2597
        %v2599 = vpop.f32.mrf.mxu0
        %2600 = vdwg.mxu0
        %v2602 = vunpack.c.l.b16 %v2394
        %v2603 = vpack.c.b16 %v2602, %v2602
        %2604 = vrot.lane.b32.xlu0 %v2603, 120
        %v2605 = vpop.permute.xlu0 %2604
        %v2607 = vsel %vm1677, %v2576, 0
        %v2610 = vsel %vm1748, %v2605, 0
        %2612 = vmatpush.bf16.msra.mxu0 0
        %2613 = vmatpush.bf16.msra.mxu0 0
        %2614 = vmatpush.bf16.msra.mxu0 0
        %2615 = vmatpush.bf16.msra.mxu0 0
        %2616 = vmatpush.bf16.msra.mxu0 0
        %2617 = vmatpush.bf16.msra.mxu0 0
        %2618 = vmatpush.bf16.msra.mxu0 0
        %2619 = vmatpush.bf16.msra.mxu0 %v2610
        %2620 = vmatmul.bf16.gmra.mxu0 %v2607
        %v2621 = vpop.f32.mrf.mxu0
        %v2622 = vadd.f32 0.0, %v2621
        %v2623 = vpop.f32.mrf.mxu0
        %2624 = vdwg.mxu0
        %2625 = vrot.lane.b32.xlu0 %v2497, 112
        %v2626 = vpop.permute.xlu0 %2625
        %2627 = vrot.lane.b32.xlu0 %v2502, 112
        %v2628 = vpop.permute.xlu0 %2627
        %v2630 = vsel %vm1677, %v2626, 0
        %v2633 = vsel %vm1677, %v2628, 0
        %2635 = vmatpush.bf16.xpose.msra.mxu0 0
        %2636 = vmatpush.bf16.xpose.msra.mxu0 0
        %2637 = vmatpush.bf16.xpose.msra.mxu0 0
        %2638 = vmatpush.bf16.xpose.msra.mxu0 0
        %2639 = vmatpush.bf16.xpose.msra.mxu0 0
        %2640 = vmatpush.bf16.xpose.msra.mxu0 0
        %2641 = vmatpush.bf16.xpose.msra.mxu0 0
        %2642 = vmatpush.bf16.xpose.msra.mxu0 %v2633
        %2643 = vmatmul.bf16.gmra.mxu0 %v2630
        %v2644 = vpop.f32.mrf.mxu0
        %v2645 = vadd.f32 0.0, %v2644
        %v2646 = vpop.f32.mrf.mxu0
        %2647 = vdwg.mxu0
        %2648 = vrot.lane.b32.xlu0 %v2526, 112
        %v2649 = vpop.permute.xlu0 %2648
        %2650 = vrot.lane.b32.xlu0 %v2531, 112
        %v2651 = vpop.permute.xlu0 %2650
        %v2653 = vsel %vm1677, %v2649, 0
        %v2656 = vsel %vm1677, %v2651, 0
        %2658 = vmatpush.bf16.xpose.msra.mxu0 0
        %2659 = vmatpush.bf16.xpose.msra.mxu0 0
        %2660 = vmatpush.bf16.xpose.msra.mxu0 0
        %2661 = vmatpush.bf16.xpose.msra.mxu0 0
        %2662 = vmatpush.bf16.xpose.msra.mxu0 0
        %2663 = vmatpush.bf16.xpose.msra.mxu0 0
        %2664 = vmatpush.bf16.xpose.msra.mxu0 0
        %2665 = vmatpush.bf16.xpose.msra.mxu0 %v2656
        %2666 = vmatmul.bf16.gmra.mxu0 %v2653
        %v2667 = vpop.f32.mrf.mxu0
        %v2668 = vadd.f32 0.0, %v2667
        %v2669 = vpop.f32.mrf.mxu0
        %2670 = vdwg.mxu0
        %v2671 = vsel %vm1677, %v2645, -inf
        %2672 = vmax.xlane.f32.xlu0 %v2671
        %v2673 = vpop.xlane.xlu0 %2672
        %v2674 = vsel %vm1677, %v2668, -inf
        %2675 = vmax.xlane.f32.xlu0 %v2674
        %v2676 = vpop.xlane.xlu0 %2675
        %v2677 = vsub.f32 %v2645, %v2673
        %v2678 = vsub.f32 %v2668, %v2676
        %v2679 = vmul.f32 %v2677, 1.442695
        %v2680 = vpow.pop %v2679
        %v2681 = vmul.f32 %v2678, 1.442695
        %v2682 = vpow.pop %v2681
        %v2683 = vsel %vm1677, %v2680, 0.0
        %2684 = vadd.xlane.f32.xlu0 %v2683
        %v2685 = vpop.xlane.xlu0 %2684
        %v2686 = vsel %vm1677, %v2682, 0.0
        %2687 = vadd.xlane.f32.xlu0 %v2686
        %v2688 = vpop.xlane.xlu0 %2687
        %v2689 = vrcp.pop %v2685
        %v2690 = vrcp.pop %v2688
        %v2691 = vmul.f32 %v2680, %v2689
        %v2692 = vmul.f32 %v2682, %v2690
        %v2693 = vpack.c.bf16 %v2691, %v2691
        %v2694 = vpack.c.bf16 %v2692, %v2692
        %2695 = vrot.lane.b32.xlu0 %v2579, 112
        %v2696 = vpop.permute.xlu0 %2695
        %v2698 = vsel %vm1677, %v2693, 0
        %v2701 = vsel %vm1748, %v2696, 0
        %2703 = vmatpush.bf16.msra.mxu0 0
        %2704 = vmatpush.bf16.msra.mxu0 0
        %2705 = vmatpush.bf16.msra.mxu0 0
        %2706 = vmatpush.bf16.msra.mxu0 0
        %2707 = vmatpush.bf16.msra.mxu0 0
        %2708 = vmatpush.bf16.msra.mxu0 0
        %2709 = vmatpush.bf16.msra.mxu0 0
        %2710 = vmatpush.bf16.msra.mxu0 %v2701
        %2711 = vmatmul.bf16.gmra.mxu0 %v2698
        %v2712 = vpop.f32.mrf.mxu0
        %v2713 = vadd.f32 0.0, %v2712
        %v2714 = vpop.f32.mrf.mxu0
        %2715 = vdwg.mxu0
        %2716 = vrot.lane.b32.xlu0 %v2603, 112
        %v2717 = vpop.permute.xlu0 %2716
        %v2719 = vsel %vm1677, %v2694, 0
        %v2722 = vsel %vm1748, %v2717, 0
        %2724 = vmatpush.bf16.msra.mxu0 0
        %2725 = vmatpush.bf16.msra.mxu0 0
        %2726 = vmatpush.bf16.msra.mxu0 0
        %2727 = vmatpush.bf16.msra.mxu0 0
        %2728 = vmatpush.bf16.msra.mxu0 0
        %2729 = vmatpush.bf16.msra.mxu0 0
        %2730 = vmatpush.bf16.msra.mxu0 0
        %2731 = vmatpush.bf16.msra.mxu0 %v2722
        %2732 = vmatmul.bf16.gmra.mxu0 %v2719
        %v2733 = vpop.f32.mrf.mxu0
        %v2734 = vadd.f32 0.0, %v2733
        %v2735 = vpop.f32.mrf.mxu0
        %2736 = vdwg.mxu0
        %2737 = vrot.lane.b32.xlu0 %v2497, 104
        %v2738 = vpop.permute.xlu0 %2737
        %2739 = vrot.lane.b32.xlu0 %v2502, 104
        %v2740 = vpop.permute.xlu0 %2739
        %v2742 = vsel %vm1677, %v2738, 0
        %v2745 = vsel %vm1677, %v2740, 0
        %2747 = vmatpush.bf16.xpose.msra.mxu0 0
        %2748 = vmatpush.bf16.xpose.msra.mxu0 0
        %2749 = vmatpush.bf16.xpose.msra.mxu0 0
        %2750 = vmatpush.bf16.xpose.msra.mxu0 0
        %2751 = vmatpush.bf16.xpose.msra.mxu0 0
        %2752 = vmatpush.bf16.xpose.msra.mxu0 0
        %2753 = vmatpush.bf16.xpose.msra.mxu0 0
        %2754 = vmatpush.bf16.xpose.msra.mxu0 %v2745
        %2755 = vmatmul.bf16.gmra.mxu0 %v2742
        %v2756 = vpop.f32.mrf.mxu0
        %v2757 = vadd.f32 0.0, %v2756
        %v2758 = vpop.f32.mrf.mxu0
        %2759 = vdwg.mxu0
        %2760 = vrot.lane.b32.xlu0 %v2526, 104
        %v2761 = vpop.permute.xlu0 %2760
        %2762 = vrot.lane.b32.xlu0 %v2531, 104
        %v2763 = vpop.permute.xlu0 %2762
        %v2765 = vsel %vm1677, %v2761, 0
        %v2768 = vsel %vm1677, %v2763, 0
        %2770 = vmatpush.bf16.xpose.msra.mxu0 0
        %2771 = vmatpush.bf16.xpose.msra.mxu0 0
        %2772 = vmatpush.bf16.xpose.msra.mxu0 0
        %2773 = vmatpush.bf16.xpose.msra.mxu0 0
        %2774 = vmatpush.bf16.xpose.msra.mxu0 0
        %2775 = vmatpush.bf16.xpose.msra.mxu0 0
        %2776 = vmatpush.bf16.xpose.msra.mxu0 0
        %2777 = vmatpush.bf16.xpose.msra.mxu0 %v2768
        %2778 = vmatmul.bf16.gmra.mxu0 %v2765
        %v2779 = vpop.f32.mrf.mxu0
        %v2780 = vadd.f32 0.0, %v2779
        %v2781 = vpop.f32.mrf.mxu0
        %2782 = vdwg.mxu0
        %v2783 = vsel %vm1677, %v2757, -inf
        %2784 = vmax.xlane.f32.xlu0 %v2783
        %v2785 = vpop.xlane.xlu0 %2784
        %v2786 = vsel %vm1677, %v2780, -inf
        %2787 = vmax.xlane.f32.xlu0 %v2786
        %v2788 = vpop.xlane.xlu0 %2787
        %v2789 = vsub.f32 %v2757, %v2785
        %v2790 = vsub.f32 %v2780, %v2788
        %v2791 = vmul.f32 %v2789, 1.442695
        %v2792 = vpow.pop %v2791
        %v2793 = vmul.f32 %v2790, 1.442695
        %v2794 = vpow.pop %v2793
        %v2795 = vsel %vm1677, %v2792, 0.0
        %2796 = vadd.xlane.f32.xlu0 %v2795
        %v2797 = vpop.xlane.xlu0 %2796
        %v2798 = vsel %vm1677, %v2794, 0.0
        %2799 = vadd.xlane.f32.xlu0 %v2798
        %v2800 = vpop.xlane.xlu0 %2799
        %v2801 = vrcp.pop %v2797
        %v2802 = vrcp.pop %v2800
        %v2803 = vmul.f32 %v2792, %v2801
        %v2804 = vmul.f32 %v2794, %v2802
        %v2805 = vpack.c.bf16 %v2803, %v2803
        %v2806 = vpack.c.bf16 %v2804, %v2804
        %2807 = vrot.lane.b32.xlu0 %v2579, 104
        %v2808 = vpop.permute.xlu0 %2807
        %v2810 = vsel %vm1677, %v2805, 0
        %v2813 = vsel %vm1748, %v2808, 0
        %2815 = vmatpush.bf16.msra.mxu0 0
        %2816 = vmatpush.bf16.msra.mxu0 0
        %2817 = vmatpush.bf16.msra.mxu0 0
        %2818 = vmatpush.bf16.msra.mxu0 0
        %2819 = vmatpush.bf16.msra.mxu0 0
        %2820 = vmatpush.bf16.msra.mxu0 0
        %2821 = vmatpush.bf16.msra.mxu0 0
        %2822 = vmatpush.bf16.msra.mxu0 %v2813
        %2823 = vmatmul.bf16.gmra.mxu0 %v2810
        %v2824 = vpop.f32.mrf.mxu0
        %v2825 = vadd.f32 0.0, %v2824
        %v2826 = vpop.f32.mrf.mxu0
        %2827 = vdwg.mxu0
        %2828 = vrot.lane.b32.xlu0 %v2603, 104
        %v2829 = vpop.permute.xlu0 %2828
        %v2831 = vsel %vm1677, %v2806, 0
        %v2834 = vsel %vm1748, %v2829, 0
        %2836 = vmatpush.bf16.msra.mxu0 0
        %2837 = vmatpush.bf16.msra.mxu0 0
        %2838 = vmatpush.bf16.msra.mxu0 0
        %2839 = vmatpush.bf16.msra.mxu0 0
        %2840 = vmatpush.bf16.msra.mxu0 0
        %2841 = vmatpush.bf16.msra.mxu0 0
        %2842 = vmatpush.bf16.msra.mxu0 0
        %2843 = vmatpush.bf16.msra.mxu0 %v2834
        %2844 = vmatmul.bf16.gmra.mxu0 %v2831
        %v2845 = vpop.f32.mrf.mxu0
        %v2846 = vadd.f32 0.0, %v2845
        %v2847 = vpop.f32.mrf.mxu0
        %2848 = vdwg.mxu0
        %2851 = vrot.lane.b32.xlu0 %v2598, 8
        %v2852 = vpop.permute.xlu0 %2851
        %2853 = vrot.lane.b32.xlu0 %v2622, 8
        %v2854 = vpop.permute.xlu0 %2853
        %2859 = vrot.lane.b32.xlu0 %v2713, 16
        %v2860 = vpop.permute.xlu0 %2859
        %2861 = vrot.lane.b32.xlu0 %v2734, 16
        %v2862 = vpop.permute.xlu0 %2861
        %2867 = vrot.lane.b32.xlu0 %v2825, 24
        %v2868 = vpop.permute.xlu0 %2867
        %2869 = vrot.lane.b32.xlu0 %v2846, 24
        %v2870 = vpop.permute.xlu0 %2869
        %v2873 = vsel %vm1677, %v2473, %v2852
        %v2874 = vsel %vm1677, %v2492, %v2854
        %v2875 = vsel %vm2152, %v2873, %v2860
        %v2876 = vsel %vm2152, %v2874, %v2862
        %v2877 = vsel %vm2155, %v2875, %v2868
        %v2878 = vsel %vm2155, %v2876, %v2870
        %v2879 = vpack.c.bf16 %v2878, %v2877
        %v2880 = vld [vmem:[%s1247] sm:$0xf]
        %v2881 = vld [vmem:[%s1247 + $0x4] sm:$0xf]
        %v2882 = vld [vmem:[%s1247 + $0x8] sm:$0xf]
        %v2883 = vld [vmem:[%s1247 + $0xc] sm:$0xf]
        %v2884 = vld [vmem:[%s1539] sm:$0x1]
        %v2886 = vperm.slane %v2884, 0
        %v2892 = vunpack.c.l.b16 %v2880
        %v2893 = vunpack.c.l.b16 %v2881
        %v2894 = vunpack.c.l.b16 %v2882
        %v2895 = vunpack.c.l.b16 %v2883
        %v2896 = vpack.c.b16 %v2893, %v2892
        %v2897 = vpack.c.b16 %v2895, %v2894
        %v2901 = vsel %vm1612, %v2879, 0
        %2903 = vmatpush.bf16.msra.mxu0 0
        %2904 = vmatpush.bf16.msra.mxu0 0
        %2905 = vmatpush.bf16.msra.mxu0 0
        %2906 = vmatpush.bf16.msra.mxu0 0
        %2907 = vmatpush.bf16.msra.mxu0 0
        %2908 = vmatpush.bf16.msra.mxu0 0
        %2909 = vmatpush.bf16.msra.mxu0 %v2897
        %2910 = vmatpush.bf16.msra.mxu0 %v2896
        %2911 = vmatmul.bf16.gmra.mxu0 %v2901
        %v2912 = vpop.f32.mrf.mxu0
        %v2913 = vadd.f32 %v2886, %v2912
        %v2914 = vpop.f32.mrf.mxu0
        %v2915 = vadd.f32 %v2886, %v2914
        %2916 = vdwg.mxu0
        %v2917 = vld [vmem:[%s1284] sm:$0x1]
        %v2918 = vld [vmem:[%s1293] sm:$0x1]
        %v2919 = vadd.f32 %v2259, %v2913
        %v2920 = vadd.f32 %v2260, %v2915
        %v2921 = vsel %vm1612, %v2919, 0.0
        %2922 = vadd.xlane.f32.xlu0 %v2921
        %v2923 = vpop.xlane.xlu0 %2922
        %v2924 = vsel %vm1612, %v2920, 0.0
        %2925 = vadd.xlane.f32.xlu0 %v2924
        %v2926 = vpop.xlane.xlu0 %2925
        %v2927 = vmul.f32 %v2923, %v2212
        %v2928 = vmul.f32 %v2926, %v2212
        %v2929 = vsub.f32 %v2919, %v2927
        %v2930 = vsub.f32 %v2920, %v2928
        %v2931 = vmul.f32 %v2929, %v2929
        %v2932 = vmul.f32 %v2930, %v2930
        %v2933 = vsel %vm1612, %v2931, 0.0
        %2934 = vadd.xlane.f32.xlu0 %v2933
        %v2935 = vpop.xlane.xlu0 %2934
        %v2936 = vsel %vm1612, %v2932, 0.0
        %2937 = vadd.xlane.f32.xlu0 %v2936
        %v2938 = vpop.xlane.xlu0 %2937
        %v2939 = vmul.f32 %v2935, %v2212
        %v2940 = vmul.f32 %v2938, %v2212
        %v2941 = vadd.f32 %v2939, 1e-05
        %v2942 = vadd.f32 %v2940, 1e-05
        %v2943 = vrsqrt.pop %v2941
        %v2944 = vmul.f32 %v2943, %v2941
        %v2945 = vmul.f32 %v2944, %v2943
        %v2946 = vmul.f32 0.5, %v2945
        %v2947 = vsub.f32 1.5, %v2946
        %v2948 = vmul.f32 %v2943, %v2947
        %vm2949 = vweird.f32 %v2941
        %vm2950 = vweird.f32 %v2943
        %vm2951 = vmor %vm2949, %vm2950
        %v2952 = vsel %vm2951, %v2943, %v2948
        %v2953 = vrsqrt.pop %v2942
        %v2954 = vmul.f32 %v2953, %v2942
        %v2955 = vmul.f32 %v2954, %v2953
        %v2956 = vmul.f32 0.5, %v2955
        %v2957 = vsub.f32 1.5, %v2956
        %v2958 = vmul.f32 %v2953, %v2957
        %vm2959 = vweird.f32 %v2942
        %vm2960 = vweird.f32 %v2953
        %vm2961 = vmor %vm2959, %vm2960
        %v2962 = vsel %vm2961, %v2953, %v2958
        %v2963 = vmul.f32 %v2929, %v2952
        %v2964 = vmul.f32 %v2930, %v2962
        %v2966 = vperm.slane %v2917, 0
        %v2968 = vmul.f32 %v2963, %v2966
        %v2969 = vmul.f32 %v2964, %v2966
        %v2971 = vperm.slane %v2918, 0
        %v2973 = vadd.f32 %v2968, %v2971
        %v2974 = vadd.f32 %v2969, %v2971
        %v2975 = vpack.c.bf16 %v2974, %v2973
        %v2976 = vld [vmem:[%s1257] sm:$0xf]
        %v2977 = vld [vmem:[%s1257 + $0x4] sm:$0xf]
        %v2978 = vld [vmem:[%s1257 + $0x8] sm:$0xf]
        %v2979 = vld [vmem:[%s1257 + $0xc] sm:$0xf]
        %v2980 = vld [vmem:[%s1542] sm:$0x1]
        %v2982 = vperm.slane %v2980, 0
        %v2988 = vunpack.c.l.b16 %v2976
        %v2989 = vunpack.c.l.b16 %v2977
        %v2990 = vunpack.c.l.b16 %v2978
        %v2991 = vunpack.c.l.b16 %v2979
        %v2992 = vpack.c.b16 %v2989, %v2988
        %v2993 = vpack.c.b16 %v2991, %v2990
        %v2997 = vsel %vm1612, %v2975, 0
        %2999 = vmatpush.bf16.msra.mxu0 0
        %3000 = vmatpush.bf16.msra.mxu0 0
        %3001 = vmatpush.bf16.msra.mxu0 0
        %3002 = vmatpush.bf16.msra.mxu0 0
        %3003 = vmatpush.bf16.msra.mxu0 0
        %3004 = vmatpush.bf16.msra.mxu0 0
        %3005 = vmatpush.bf16.msra.mxu0 %v2993
        %3006 = vmatpush.bf16.msra.mxu0 %v2992
        %3007 = vmatmul.bf16.gmra.mxu0 %v2997
        %v3008 = vpop.f32.mrf.mxu0
        %v3009 = vadd.f32 %v2982, %v3008
        %v3010 = vpop.f32.mrf.mxu0
        %v3011 = vadd.f32 %v2982, %v3010
        %3012 = vdwg.mxu0
        %v3013 = vmax.f32 %v3009, 0.0
        %v3014 = vmax.f32 %v3011, 0.0
        %v3015 = vpack.c.bf16 %v3014, %v3013
        %v3016 = vld [vmem:[%s1547] sm:$0xf]
        %v3017 = vld [vmem:[%s1547 + $0x4] sm:$0xf]
        %v3018 = vld [vmem:[%s1547 + $0x8] sm:$0xf]
        %v3019 = vld [vmem:[%s1547 + $0xc] sm:$0xf]
        %v3020 = vld [vmem:[%s1547 + $0x10] sm:$0xf]
        %v3021 = vld [vmem:[%s1547 + $0x14] sm:$0xf]
        %v3022 = vld [vmem:[%s1547 + $0x18] sm:$0xf]
        %v3023 = vld [vmem:[%s1547 + $0x1c] sm:$0xf]
        %v3024 = vld [vmem:[%s1550] sm:$0x1]
        %v3026 = vperm.slane %v3024, 0
        %v3036 = vunpack.c.l.b16 %v3016
        %v3037 = vunpack.c.l.b16 %v3017
        %v3038 = vunpack.c.l.b16 %v3018
        %v3039 = vunpack.c.l.b16 %v3019
        %v3040 = vunpack.c.l.b16 %v3020
        %v3041 = vunpack.c.l.b16 %v3021
        %v3042 = vunpack.c.l.b16 %v3022
        %v3043 = vunpack.c.l.b16 %v3023
        %v3044 = vpack.c.b16 %v3037, %v3036
        %v3045 = vpack.c.b16 %v3039, %v3038
        %v3046 = vpack.c.b16 %v3041, %v3040
        %v3047 = vpack.c.b16 %v3043, %v3042
        %vm3052 = vcmask 523264
        %v3054 = vsel %vm3052, %v3015, 0
        %3056 = vmatpush.bf16.msra.mxu0 0
        %3057 = vmatpush.bf16.msra.mxu0 0
        %3058 = vmatpush.bf16.msra.mxu0 0
        %3059 = vmatpush.bf16.msra.mxu0 0
        %3060 = vmatpush.bf16.msra.mxu0 %v3047
        %3061 = vmatpush.bf16.msra.mxu0 %v3046
        %3062 = vmatpush.bf16.msra.mxu0 %v3045
        %3063 = vmatpush.bf16.msra.mxu0 %v3044
        %3064 = vmatmul.bf16.gmra.mxu0 %v3054
        %v3065 = vpop.f32.mrf.mxu0
        %v3066 = vadd.f32 %v3026, %v3065
        %v3067 = vpop.f32.mrf.mxu0
        %v3068 = vadd.f32 %v3026, %v3067
        %3069 = vdwg.mxu0
        %v3070 = vld [vmem:[%s1302] sm:$0x1]
        %v3071 = vld [vmem:[%s1311] sm:$0x1]
        %v3072 = vadd.f32 %v2973, %v3066
        %v3073 = vadd.f32 %v2974, %v3068
        %v3074 = vsel %vm1612, %v3072, 0.0
        %3075 = vadd.xlane.f32.xlu0 %v3074
        %v3076 = vpop.xlane.xlu0 %3075
        %v3077 = vsel %vm1612, %v3073, 0.0
        %3078 = vadd.xlane.f32.xlu0 %v3077
        %v3079 = vpop.xlane.xlu0 %3078
        %v3080 = vmul.f32 %v3076, %v2212
        %v3081 = vmul.f32 %v3079, %v2212
        %v3082 = vsub.f32 %v3072, %v3080
        %v3083 = vsub.f32 %v3073, %v3081
        %v3084 = vmul.f32 %v3082, %v3082
        %v3085 = vmul.f32 %v3083, %v3083
        %v3086 = vsel %vm1612, %v3084, 0.0
        %3087 = vadd.xlane.f32.xlu0 %v3086
        %v3088 = vpop.xlane.xlu0 %3087
        %v3089 = vsel %vm1612, %v3085, 0.0
        %3090 = vadd.xlane.f32.xlu0 %v3089
        %v3091 = vpop.xlane.xlu0 %3090
        %v3092 = vmul.f32 %v3088, %v2212
        %v3093 = vmul.f32 %v3091, %v2212
        %v3094 = vadd.f32 %v3092, 1e-05
        %v3095 = vadd.f32 %v3093, 1e-05
        %v3096 = vrsqrt.pop %v3094
        %v3097 = vmul.f32 %v3096, %v3094
        %v3098 = vmul.f32 %v3097, %v3096
        %v3099 = vmul.f32 0.5, %v3098
        %v3100 = vsub.f32 1.5, %v3099
        %v3101 = vmul.f32 %v3096, %v3100
        %vm3102 = vweird.f32 %v3094
        %vm3103 = vweird.f32 %v3096
        %vm3104 = vmor %vm3102, %vm3103
        %v3105 = vsel %vm3104, %v3096, %v3101
        %v3106 = vrsqrt.pop %v3095
        %v3107 = vmul.f32 %v3106, %v3095
        %v3108 = vmul.f32 %v3107, %v3106
        %v3109 = vmul.f32 0.5, %v3108
        %v3110 = vsub.f32 1.5, %v3109
        %v3111 = vmul.f32 %v3106, %v3110
        %vm3112 = vweird.f32 %v3095
        %vm3113 = vweird.f32 %v3106
        %vm3114 = vmor %vm3112, %vm3113
        %v3115 = vsel %vm3114, %v3106, %v3111
        %v3116 = vmul.f32 %v3082, %v3105
        %v3117 = vmul.f32 %v3083, %v3115
        %v3119 = vperm.slane %v3070, 0
        %v3121 = vmul.f32 %v3116, %v3119
        %v3122 = vmul.f32 %v3117, %v3119
        %v3124 = vperm.slane %v3071, 0
        %v3126 = vadd.f32 %v3121, %v3124
        %v3127 = vadd.f32 %v3122, %v3124
        %3128 = vst.msk [vmem:[#allocation2] sm:$0xff] %vm1612, %v3126
        %3129 = vst.msk [vmem:[#allocation2 + $0x8] sm:$0xff] %vm1612, %v3127
        %3130 = vst.msk [vmem:[%s1559] sm:$0xff] %vm1612, %v3126
        %3131 = vst.msk [vmem:[%s1559 + $0x8] sm:$0xff] %vm1612, %v3127
        %s3132 = smul.u32 2, %s92
        %p3133 = scmp.lt.s32.totalorder %s93, 1
        %s3134 = scalar_select %p3133, %s93, 1
        %p3135 = scmp.lt.s32.totalorder %s3132, 1
        %s3136 = scalar_select %p3135, %s3132, 1
        %s3137 = smul.addr %s3134, 2
        %s3138 = sadd.s32 %s3136, %s3137
        %s3139 = smul.addr %s3138, 8
        %s3140 = scalar_lea.vmem %s59, %s3139
        // Predicated region
        $region185: #{transformer_forward.3} parent=135 // pred_check
          %p3141 = pneg %p859
        $region186: #{transformer_forward.3} parent=135 // pred_check_branch
          %3143 = sbr.rel (%p3141) target = $region188
        $region187: #{transformer_forward.3} parent=135 // pred_region
          %s3144 = smul.u32 2, %s92
        $region188: #{transformer_forward.3} parent=135 // pred_fallthru
          _
      $region136: #{transformer_forward.3} parent=5 // pred_fallthru
        _
      %p3145 = scmp.le.s32.totalorder 2, %s83
      // Predicated region
      $region189: #{transformer_forward.3} parent=5 // pred_check
        %p3146 = pneg %p3145
      $region190: #{transformer_forward.3} parent=5 // pred_check_branch
        %3148 = sbr.rel (%p3146) target = $region192
      $region191: #{transformer_forward.3} parent=5 // pred_region
        %s3149 = ssub.s32 %s83, 2
        // Predicated region
        $region193: #{transformer_forward.3} parent=191 // pred_check
          %p3150 = pneg %p865
        $region194: #{transformer_forward.3} parent=191 // pred_check_branch
          %3152 = sbr.rel (%p3150) target = $region196
        $region195: #{transformer_forward.3} parent=191 // pred_region
          %s3153 = smul.u32 2, %s94
          %p3154 = scmp.lt.s32.totalorder %s95, 1
          %s3155 = scalar_select %p3154, %s95, 1
          %p3156 = scmp.lt.s32.totalorder %s3153, 1
          %s3157 = scalar_select %p3156, %s3153, 1
          %s3158 = smul.addr %s3155, 2
          %s3159 = sadd.s32 %s3157, %s3158
          %s3160 = smul.addr %s3159, 8
          %s3161 = scalar_lea.vmem %s59, %s3160
        $region196: #{transformer_forward.3} parent=191 // pred_fallthru
          _
      $region192: #{transformer_forward.3} parent=5 // pred_fallthru
        _
    $region6: #{transformer_forward.3} parent=1 // loop_footer
      %s87 = sadd.s32 1, %s83
    $region7: #{transformer_forward.3} parent=1 // loop_footer_branch
      %82 = sbr.rel target = $region3
    $region8: #{transformer_forward.3} parent=1 // loop_exit
      _
    %3162 = vsyncpa [#allocation6], 1
    %s3163 = scalar_lea.sflag [#allocation6], 1
    %3164 = vsyncpa %s3163, 1
    %3165 = vsyncpa [#allocation8], 1
    %s3166 = scalar_lea.sflag [#allocation8], 1
    %3167 = vsyncpa %s3166, 1
    %3168 = vsyncpa [#allocation11], 1
    %s3169 = scalar_lea.sflag [#allocation11], 1
    %3170 = vsyncpa %s3169, 1
    %3171 = vsyncpa [#allocation14], 1
    %s3172 = scalar_lea.sflag [#allocation14], 1
    %3173 = vsyncpa %s3172, 1
    %3174 = vsyncpa [#allocation17], 1
    %s3175 = scalar_lea.sflag [#allocation17], 1
    %3176 = vsyncpa %s3175, 1
    %3177 = vsyncpa [#allocation20], 1
    %s3178 = scalar_lea.sflag [#allocation20], 1
    %3179 = vsyncpa %s3178, 1

</llo_original>
